<compile_context>
chip_gen: v6e
topology: v6e:2x2x1
jax: 0.10.0
libtpu: 0.0.40
codegen_flags: <defaults>
</compile_context>

<pallas_src>
import functools

import jax
import jax.numpy as jnp
from jax.experimental import pallas as pl
from jax.experimental.pallas import tpu as pltpu  # noqa: F401  (TPU backend)

EPS = 1e-5  # nn.LayerNorm default


def block_kernel(n_embd,
                 x_ref, wqh_ref, wkh_ref, wvh_ref, wph_ref, bp_ref,
                 g1_ref, b1_ref, g2_ref, b2_ref,
                 w1_ref, bw1_ref, w2_ref, bw2_ref,
                 o_ref):
    B, T, Cp = x_ref.shape          # Cp = channel dim padded to a multiple of 128
    H, _, hs = wqh_ref.shape        # heads, padded-C, head_size
    R = B * T

    x = x_ref[...].reshape(R, Cp)   # leading-dim merge only (layout no-op)

    # Channel mask so zero-padded lanes never perturb the LayerNorm statistics.
    lane = jax.lax.broadcasted_iota(jnp.int32, (1, Cp), 1)
    cmask = lane < n_embd
    inv_c = 1.0 / n_embd

    def layernorm(h, gamma, beta):
        mu = jnp.sum(h, axis=-1, keepdims=True) * inv_c
        cent = jnp.where(cmask, h - mu, 0.0)
        var = jnp.sum(cent * cent, axis=-1, keepdims=True) * inv_c
        # gamma/beta are zero in the padded lanes -> output stays 0 there.
        return cent * jax.lax.rsqrt(var + EPS) * gamma + beta

    # ---- x + MultiHeadAttention(LayerNorm1(x)) ----
    h1 = layernorm(x, g1_ref[...], b1_ref[...])            # (R, Cp)

    scale = n_embd ** (-0.5)        # module scales by n_embd (emb_dim), NOT head_size
    row = jax.lax.broadcasted_iota(jnp.int32, (1, T, T), 1)
    col = jax.lax.broadcasted_iota(jnp.int32, (1, T, T), 2)
    causal = row >= col             # (1, T, T), broadcasts over batch

    attn = jnp.zeros((R, Cp), jnp.float32)
    for h in range(H):              # static, small head count; each step is full-batch
        # Per-head projections over ALL B*T rows at once (plain 2-D matmuls,
        # weights already split per head in the wrapper -> no lane slicing).
        q = jnp.dot(h1, wqh_ref[h], preferred_element_type=jnp.float32) * scale
        k = jnp.dot(h1, wkh_ref[h], preferred_element_type=jnp.float32)
        v = jnp.dot(h1, wvh_ref[h], preferred_element_type=jnp.float32)
        qb = q.reshape(B, T, hs)
        kb = k.reshape(B, T, hs)
        vb = v.reshape(B, T, hs)
        # Batched over B, contracting last dims directly (no explicit transpose).
        s = jnp.einsum('bqd,bkd->bqk', qb, kb, preferred_element_type=jnp.float32)
        s = jnp.where(causal, s, -jnp.inf)
        m = jnp.max(s, axis=-1, keepdims=True)
        p = jnp.exp(s - m)
        # Exact divide keeps the tight f32 reference tolerance; at relaxed
        # tolerance use pl.reciprocal(l, approx=True) to push this to the EUP.
        p = p / jnp.sum(p, axis=-1, keepdims=True)
        ob = jnp.einsum('bqk,bkd->bqd', p, vb, preferred_element_type=jnp.float32)
        # Accumulate through this head's slice of the output projection instead
        # of concatenating head outputs along the lane axis.
        attn = attn + jnp.dot(ob.reshape(R, hs), wph_ref[h],
                              preferred_element_type=jnp.float32)

    x1 = x + attn + bp_ref[...]

    # ---- x1 + FeedForward(LayerNorm2(x1)) ----
    h2 = layernorm(x1, g2_ref[...], b2_ref[...])
    ff = jnp.dot(h2, w1_ref[...], preferred_element_type=jnp.float32) + bw1_ref[...]
    ff = jnp.maximum(ff, 0.0)       # ReLU
    ff = jnp.dot(ff, w2_ref[...], preferred_element_type=jnp.float32) + bw2_ref[...]

    # Lane-dense (multiple-of-128) unmasked store.
    o_ref[...] = (x1 + ff).reshape(B, T, Cp).astype(o_ref.dtype)


def _round_up(n, m):
    return ((n + m - 1) // m) * m


def transformer_block(x, params, n_head):
    (wq, wk, wv, wp, bp, g1, b1, g2, b2, w1, bw1, w2, bw2) = params
    B, T, C = x.shape
    hs = C // n_head
    hidden = w1.shape[1]            # = n_head * n_embd per the module definition
    Cp = _round_up(C, 128)
    Hp = _round_up(hidden, 128)

    def pad_to(a, shape):
        return jnp.pad(a, [(0, s - d) for d, s in zip(a.shape, shape)])

    # Wrapper-side layout plumbing: split weights per head (leading head axis)
    # and zero-pad channel / hidden dims to lane-dense widths.
    def split_heads_cols(w):        # (C, C) -> (H, C, hs); head h uses cols h*hs:(h+1)*hs
        return jnp.transpose(w.reshape(C, n_head, hs), (1, 0, 2))

    wqh = pad_to(split_heads_cols(wq), (n_head, Cp, hs))
    wkh = pad_to(split_heads_cols(wk), (n_head, Cp, hs))
    wvh = pad_to(split_heads_cols(wv), (n_head, Cp, hs))
    wph = pad_to(wp.reshape(n_head, hs, C), (n_head, hs, Cp))   # head h = rows h*hs:(h+1)*hs

    xp  = pad_to(x,  (B, T, Cp))
    bpp = pad_to(bp, (1, Cp))
    g1p = pad_to(g1, (1, Cp)); b1p = pad_to(b1, (1, Cp))
    g2p = pad_to(g2, (1, Cp)); b2p = pad_to(b2, (1, Cp))
    w1p = pad_to(w1, (Cp, Hp)); bw1p = pad_to(bw1, (1, Hp))
    w2p = pad_to(w2, (Hp, Cp)); bw2p = pad_to(bw2, (1, Cp))

    kernel = functools.partial(block_kernel, C)

    # Single kernel invocation: no grid, everything VMEM-resident, no
    # per-step pipeline overhead and no weight double-buffering.
    out_p = pl.pallas_call(
        kernel,
        out_shape=jax.ShapeDtypeStruct((B, T, Cp), x.dtype),
    )(xp, wqh, wkh, wvh, wph, bpp, g1p, b1p, g2p, b2p, w1p, bw1p, w2p, bw2p)

    return out_p[..., :C]


def reference_block(x, params, n_head):
    """Pure-JAX reference matching the PyTorch forward pass."""
    (wq, wk, wv, wp, bp, g1, b1, g2, b2, w1, bw1, w2, bw2) = params
    B, T, C = x.shape
    hs = C // n_head

    def ln(h, g, b):
        mu = h.mean(-1, keepdims=True)
        var = ((h - mu) ** 2).mean(-1, keepdims=True)
        return (h - mu) / jnp.sqrt(var + EPS) * g + b

    h1 = ln(x, g1[0], b1[0])
    q, k, v = h1 @ wq, h1 @ wk, h1 @ wv
    scale = C ** (-0.5)
    mask = jnp.tril(jnp.ones((T, T), bool))
    outs = []
    for h in range(n_head):
        s = slice(h * hs, (h + 1) * hs)
        wei = jnp.einsum('btd,bsd->bts', q[..., s], k[..., s]) * scale
        wei = jnp.where(mask, wei, -jnp.inf)
        wei = jax.nn.softmax(wei, axis=-1)
        outs.append(jnp.einsum('bts,bsd->btd', wei, v[..., s]))
    x1 = x + jnp.concatenate(outs, -1) @ wp + bp[0]
    h2 = ln(x1, g2[0], b2[0])
    ff = jnp.maximum(h2 @ w1 + bw1[0], 0.0) @ w2 + bw2[0]
    return x1 + ff


if __name__ == "__main__":
    B, T, C, n_head = 2, 8, 32, 4       # block_size=8, n_embd=32
    hidden = n_head * C                 # FeedForward width per the module

    key = jax.random.PRNGKey(0)
    ks = jax.random.split(key, 10)
    scl = 0.02
    x   = jax.random.normal(ks[0], (B, T, C), jnp.float32)
    wq  = jax.random.normal(ks[1], (C, C), jnp.float32) * scl
    wk  = jax.random.normal(ks[2], (C, C), jnp.float32) * scl
    wv  = jax.random.normal(ks[3], (C, C), jnp.float32) * scl
    wp  = jax.random.normal(ks[4], (C, C), jnp.float32) * scl
    bp  = jax.random.normal(ks[5], (1, C), jnp.float32) * scl
    g1  = jnp.ones((1, C), jnp.float32)   # nn.LayerNorm default init
    b1  = jnp.zeros((1, C), jnp.float32)
    g2  = jnp.ones((1, C), jnp.float32)
    b2  = jnp.zeros((1, C), jnp.float32)
    w1  = jax.random.normal(ks[6], (C, hidden), jnp.float32) * scl
    bw1 = jax.random.normal(ks[7], (1, hidden), jnp.float32) * scl
    w2  = jax.random.normal(ks[8], (hidden, C), jnp.float32) * scl
    bw2 = jax.random.normal(ks[9], (1, C), jnp.float32) * scl

    params = (wq, wk, wv, wp, bp, g1, b1, g2, b2, w1, bw1, w2, bw2)

    out = transformer_block(x, params, n_head)
    out = jax.block_until_ready(out)

    ref = reference_block(x, params, n_head)
    assert out.shape == (B, T, C)
    assert jnp.allclose(out, ref, atol=1e-4, rtol=1e-4), "mismatch vs JAX reference"

    print("KERNEL_OK")
</pallas_src>

<mosaic_0001>
module attributes {stable_mosaic.version = 11 : i64} {
  func.func @block_kernel(%arg0: memref<2x8x128xf32, #tpu.memory_space<vmem>>, %arg1: memref<4x128x8xf32, #tpu.memory_space<vmem>>, %arg2: memref<4x128x8xf32, #tpu.memory_space<vmem>>, %arg3: memref<4x128x8xf32, #tpu.memory_space<vmem>>, %arg4: memref<4x8x128xf32, #tpu.memory_space<vmem>>, %arg5: memref<1x128xf32, #tpu.memory_space<vmem>>, %arg6: memref<1x128xf32, #tpu.memory_space<vmem>>, %arg7: memref<1x128xf32, #tpu.memory_space<vmem>>, %arg8: memref<1x128xf32, #tpu.memory_space<vmem>>, %arg9: memref<1x128xf32, #tpu.memory_space<vmem>>, %arg10: memref<128x128xf32, #tpu.memory_space<vmem>>, %arg11: memref<1x128xf32, #tpu.memory_space<vmem>>, %arg12: memref<128x128xf32, #tpu.memory_space<vmem>>, %arg13: memref<1x128xf32, #tpu.memory_space<vmem>>, %arg14: memref<2x8x128xf32, #tpu.memory_space<vmem>>) attributes {dimension_semantics = [], scalar_prefetch = 0 : i64, scratch_operands = 0 : i64, tpu.core_type = #tpu.core_type<tc>} {
    %c0 = arith.constant 0 : index
    %c0_0 = arith.constant 0 : index
    %c0_1 = arith.constant 0 : index
    %0 = vector.load %arg0[%c0, %c0_0, %c0_1] : memref<2x8x128xf32, #tpu.memory_space<vmem>>, vector<2x8x128xf32>
    %1 = vector.shape_cast %0 : vector<2x8x128xf32> to vector<16x128xf32>
    %2 = tpu.iota {dimensions = array<i32: 1>} : vector<1x128xi32>
    %c32_i32 = arith.constant 32 : i32
    %3 = vector.broadcast %c32_i32 : i32 to vector<1x128xi32>
    %4 = arith.cmpi slt, %2, %3 : vector<1x128xi32>
    %c0_2 = arith.constant 0 : index
    %c0_3 = arith.constant 0 : index
    %5 = vector.load %arg6[%c0_2, %c0_3] : memref<1x128xf32, #tpu.memory_space<vmem>>, vector<1x128xf32>
    %c0_4 = arith.constant 0 : index
    %c0_5 = arith.constant 0 : index
    %6 = vector.load %arg7[%c0_4, %c0_5] : memref<1x128xf32, #tpu.memory_space<vmem>>, vector<1x128xf32>
    %cst = arith.constant dense<0.000000e+00> : vector<16xf32>
    %7 = vector.multi_reduction <add>, %1, %cst [1] : vector<16x128xf32> to vector<16xf32>
    %8 = vector.shape_cast %7 : vector<16xf32> to vector<16x1xf32>
    %cst_6 = arith.constant 3.125000e-02 : f32
    %9 = vector.broadcast %cst_6 : f32 to vector<16x1xf32>
    %10 = arith.mulf %8, %9 : vector<16x1xf32>
    %11 = vector.broadcast %10 : vector<16x1xf32> to vector<16x128xf32>
    %12 = arith.subf %1, %11 : vector<16x128xf32>
    %cst_7 = arith.constant 0.000000e+00 : f32
    %13 = vector.shape_cast %4 : vector<1x128xi1> to vector<1x128xi1>
    %14 = vector.broadcast %13 : vector<1x128xi1> to vector<16x128xi1>
    %15 = vector.broadcast %cst_7 : f32 to vector<16x128xf32>
    %16 = arith.select %14, %12, %15 : vector<16x128xi1>, vector<16x128xf32>
    %17 = arith.mulf %16, %16 : vector<16x128xf32>
    %cst_8 = arith.constant dense<0.000000e+00> : vector<16xf32>
    %18 = vector.multi_reduction <add>, %17, %cst_8 [1] : vector<16x128xf32> to vector<16xf32>
    %19 = vector.shape_cast %18 : vector<16xf32> to vector<16x1xf32>
    %cst_9 = arith.constant 3.125000e-02 : f32
    %20 = vector.broadcast %cst_9 : f32 to vector<16x1xf32>
    %21 = arith.mulf %19, %20 : vector<16x1xf32>
    %cst_10 = arith.constant 9.99999974E-6 : f32
    %22 = vector.broadcast %cst_10 : f32 to vector<16x1xf32>
    %23 = arith.addf %21, %22 : vector<16x1xf32>
    %24 = math.rsqrt %23 : vector<16x1xf32>
    %25 = vector.broadcast %24 : vector<16x1xf32> to vector<16x128xf32>
    %26 = arith.mulf %16, %25 : vector<16x128xf32>
    %27 = vector.broadcast %5 : vector<1x128xf32> to vector<16x128xf32>
    %28 = arith.mulf %26, %27 : vector<16x128xf32>
    %29 = vector.broadcast %6 : vector<1x128xf32> to vector<16x128xf32>
    %30 = arith.addf %28, %29 : vector<16x128xf32>
    %31 = tpu.iota {dimensions = array<i32: 1>} : vector<1x8x8xi32>
    %32 = tpu.iota {dimensions = array<i32: 2>} : vector<1x8x8xi32>
    %33 = arith.cmpi sge, %31, %32 : vector<1x8x8xi32>
    %cst_11 = arith.constant 0.000000e+00 : f32
    %34 = vector.broadcast %cst_11 : f32 to vector<16x128xf32>
    %c0_12 = arith.constant 0 : index
    %c0_13 = arith.constant 0 : index
    %c0_14 = arith.constant 0 : index
    %35 = vector.load %arg1[%c0_12, %c0_13, %c0_14] : memref<4x128x8xf32, #tpu.memory_space<vmem>>, vector<1x128x8xf32>
    %36 = vector.shape_cast %35 : vector<1x128x8xf32> to vector<128x8xf32>
    %cst_15 = arith.constant dense<0.000000e+00> : vector<16x8xf32>
    %37 = tpu.matmul %30, %36, %cst_15 {dimension_numbers = #tpu.dot_dimension_numbers<[1], [0], [0], [1], [0, 0, 1, 1], [], []>} : vector<16x128xf32>, vector<128x8xf32>, vector<16x8xf32> -> vector<16x8xf32>
    %cst_16 = arith.constant 0.176776692 : f32
    %38 = vector.broadcast %cst_16 : f32 to vector<16x8xf32>
    %39 = arith.mulf %37, %38 : vector<16x8xf32>
    %c0_17 = arith.constant 0 : index
    %c0_18 = arith.constant 0 : index
    %c0_19 = arith.constant 0 : index
    %40 = vector.load %arg2[%c0_17, %c0_18, %c0_19] : memref<4x128x8xf32, #tpu.memory_space<vmem>>, vector<1x128x8xf32>
    %41 = vector.shape_cast %40 : vector<1x128x8xf32> to vector<128x8xf32>
    %cst_20 = arith.constant dense<0.000000e+00> : vector<16x8xf32>
    %42 = tpu.matmul %30, %41, %cst_20 {dimension_numbers = #tpu.dot_dimension_numbers<[1], [0], [0], [1], [0, 0, 1, 1], [], []>} : vector<16x128xf32>, vector<128x8xf32>, vector<16x8xf32> -> vector<16x8xf32>
    %c0_21 = arith.constant 0 : index
    %c0_22 = arith.constant 0 : index
    %c0_23 = arith.constant 0 : index
    %43 = vector.load %arg3[%c0_21, %c0_22, %c0_23] : memref<4x128x8xf32, #tpu.memory_space<vmem>>, vector<1x128x8xf32>
    %44 = vector.shape_cast %43 : vector<1x128x8xf32> to vector<128x8xf32>
    %cst_24 = arith.constant dense<0.000000e+00> : vector<16x8xf32>
    %45 = tpu.matmul %30, %44, %cst_24 {dimension_numbers = #tpu.dot_dimension_numbers<[1], [0], [0], [1], [0, 0, 1, 1], [], []>} : vector<16x128xf32>, vector<128x8xf32>, vector<16x8xf32> -> vector<16x8xf32>
    %46 = vector.shape_cast %39 : vector<16x8xf32> to vector<2x8x8xf32>
    %47 = vector.shape_cast %42 : vector<16x8xf32> to vector<2x8x8xf32>
    %48 = vector.shape_cast %45 : vector<16x8xf32> to vector<2x8x8xf32>
    "tpu.trace_start"() <{level = 10 : i32, message = "bqd,bkd->bqk"}> : () -> ()
    %cst_25 = arith.constant dense<0.000000e+00> : vector<2x8x8xf32>
    %49 = tpu.matmul %46, %47, %cst_25 {dimension_numbers = #tpu.dot_dimension_numbers<[2], [2], [1], [1], [0, 0, 0, 1, 1, 1], [0], [0]>} : vector<2x8x8xf32>, vector<2x8x8xf32>, vector<2x8x8xf32> -> vector<2x8x8xf32>
    %cst_26 = arith.constant 0xFF800000 : f32
    "tpu.trace_stop"() : () -> ()
    %50 = vector.shape_cast %33 : vector<1x8x8xi1> to vector<1x8x8xi1>
    %51 = vector.broadcast %50 : vector<1x8x8xi1> to vector<2x8x8xi1>
    %52 = vector.broadcast %cst_26 : f32 to vector<2x8x8xf32>
    %53 = arith.select %51, %49, %52 : vector<2x8x8xi1>, vector<2x8x8xf32>
    %cst_27 = arith.constant dense<0xFF800000> : vector<2x8xf32>
    %54 = vector.multi_reduction <maximumf>, %53, %cst_27 [2] : vector<2x8x8xf32> to vector<2x8xf32>
    %55 = vector.shape_cast %54 : vector<2x8xf32> to vector<2x8x1xf32>
    %56 = vector.broadcast %55 : vector<2x8x1xf32> to vector<2x8x8xf32>
    %57 = arith.subf %53, %56 : vector<2x8x8xf32>
    %58 = math.exp %57 : vector<2x8x8xf32>
    %cst_28 = arith.constant dense<0.000000e+00> : vector<2x8xf32>
    %59 = vector.multi_reduction <add>, %58, %cst_28 [2] : vector<2x8x8xf32> to vector<2x8xf32>
    %60 = vector.shape_cast %59 : vector<2x8xf32> to vector<2x8x1xf32>
    %61 = vector.broadcast %60 : vector<2x8x1xf32> to vector<2x8x8xf32>
    %62 = arith.divf %58, %61 : vector<2x8x8xf32>
    "tpu.trace_start"() <{level = 10 : i32, message = "bqk,bkd->bqd"}> : () -> ()
    %cst_29 = arith.constant dense<0.000000e+00> : vector<2x8x8xf32>
    %63 = tpu.matmul %62, %48, %cst_29 {dimension_numbers = #tpu.dot_dimension_numbers<[2], [1], [1], [2], [0, 0, 0, 1, 1, 2], [0], [0]>} : vector<2x8x8xf32>, vector<2x8x8xf32>, vector<2x8x8xf32> -> vector<2x8x8xf32>
    "tpu.trace_stop"() : () -> ()
    %64 = vector.shape_cast %63 : vector<2x8x8xf32> to vector<16x8xf32>
    %c0_30 = arith.constant 0 : index
    %c0_31 = arith.constant 0 : index
    %c0_32 = arith.constant 0 : index
    %65 = vector.load %arg4[%c0_30, %c0_31, %c0_32] : memref<4x8x128xf32, #tpu.memory_space<vmem>>, vector<1x8x128xf32>
    %66 = vector.shape_cast %65 : vector<1x8x128xf32> to vector<8x128xf32>
    %cst_33 = arith.constant dense<0.000000e+00> : vector<16x128xf32>
    %67 = tpu.matmul %64, %66, %cst_33 {dimension_numbers = #tpu.dot_dimension_numbers<[1], [0], [0], [1], [0, 0, 1, 1], [], []>} : vector<16x8xf32>, vector<8x128xf32>, vector<16x128xf32> -> vector<16x128xf32>
    %68 = arith.addf %34, %67 : vector<16x128xf32>
    %c1 = arith.constant 1 : index
    %c0_34 = arith.constant 0 : index
    %c0_35 = arith.constant 0 : index
    %69 = vector.load %arg1[%c1, %c0_34, %c0_35] : memref<4x128x8xf32, #tpu.memory_space<vmem>>, vector<1x128x8xf32>
    %70 = vector.shape_cast %69 : vector<1x128x8xf32> to vector<128x8xf32>
    %cst_36 = arith.constant dense<0.000000e+00> : vector<16x8xf32>
    %71 = tpu.matmul %30, %70, %cst_36 {dimension_numbers = #tpu.dot_dimension_numbers<[1], [0], [0], [1], [0, 0, 1, 1], [], []>} : vector<16x128xf32>, vector<128x8xf32>, vector<16x8xf32> -> vector<16x8xf32>
    %cst_37 = arith.constant 0.176776692 : f32
    %72 = vector.broadcast %cst_37 : f32 to vector<16x8xf32>
    %73 = arith.mulf %71, %72 : vector<16x8xf32>
    %c1_38 = arith.constant 1 : index
    %c0_39 = arith.constant 0 : index
    %c0_40 = arith.constant 0 : index
    %74 = vector.load %arg2[%c1_38, %c0_39, %c0_40] : memref<4x128x8xf32, #tpu.memory_space<vmem>>, vector<1x128x8xf32>
    %75 = vector.shape_cast %74 : vector<1x128x8xf32> to vector<128x8xf32>
    %cst_41 = arith.constant dense<0.000000e+00> : vector<16x8xf32>
    %76 = tpu.matmul %30, %75, %cst_41 {dimension_numbers = #tpu.dot_dimension_numbers<[1], [0], [0], [1], [0, 0, 1, 1], [], []>} : vector<16x128xf32>, vector<128x8xf32>, vector<16x8xf32> -> vector<16x8xf32>
    %c1_42 = arith.constant 1 : index
    %c0_43 = arith.constant 0 : index
    %c0_44 = arith.constant 0 : index
    %77 = vector.load %arg3[%c1_42, %c0_43, %c0_44] : memref<4x128x8xf32, #tpu.memory_space<vmem>>, vector<1x128x8xf32>
    %78 = vector.shape_cast %77 : vector<1x128x8xf32> to vector<128x8xf32>
    %cst_45 = arith.constant dense<0.000000e+00> : vector<16x8xf32>
    %79 = tpu.matmul %30, %78, %cst_45 {dimension_numbers = #tpu.dot_dimension_numbers<[1], [0], [0], [1], [0, 0, 1, 1], [], []>} : vector<16x128xf32>, vector<128x8xf32>, vector<16x8xf32> -> vector<16x8xf32>
    %80 = vector.shape_cast %73 : vector<16x8xf32> to vector<2x8x8xf32>
    %81 = vector.shape_cast %76 : vector<16x8xf32> to vector<2x8x8xf32>
    %82 = vector.shape_cast %79 : vector<16x8xf32> to vector<2x8x8xf32>
    "tpu.trace_start"() <{level = 10 : i32, message = "bqd,bkd->bqk"}> : () -> ()
    %cst_46 = arith.constant dense<0.000000e+00> : vector<2x8x8xf32>
    %83 = tpu.matmul %80, %81, %cst_46 {dimension_numbers = #tpu.dot_dimension_numbers<[2], [2], [1], [1], [0, 0, 0, 1, 1, 1], [0], [0]>} : vector<2x8x8xf32>, vector<2x8x8xf32>, vector<2x8x8xf32> -> vector<2x8x8xf32>
    %cst_47 = arith.constant 0xFF800000 : f32
    "tpu.trace_stop"() : () -> ()
    %84 = vector.shape_cast %33 : vector<1x8x8xi1> to vector<1x8x8xi1>
    %85 = vector.broadcast %84 : vector<1x8x8xi1> to vector<2x8x8xi1>
    %86 = vector.broadcast %cst_47 : f32 to vector<2x8x8xf32>
    %87 = arith.select %85, %83, %86 : vector<2x8x8xi1>, vector<2x8x8xf32>
    %cst_48 = arith.constant dense<0xFF800000> : vector<2x8xf32>
    %88 = vector.multi_reduction <maximumf>, %87, %cst_48 [2] : vector<2x8x8xf32> to vector<2x8xf32>
    %89 = vector.shape_cast %88 : vector<2x8xf32> to vector<2x8x1xf32>
    %90 = vector.broadcast %89 : vector<2x8x1xf32> to vector<2x8x8xf32>
    %91 = arith.subf %87, %90 : vector<2x8x8xf32>
    %92 = math.exp %91 : vector<2x8x8xf32>
    %cst_49 = arith.constant dense<0.000000e+00> : vector<2x8xf32>
    %93 = vector.multi_reduction <add>, %92, %cst_49 [2] : vector<2x8x8xf32> to vector<2x8xf32>
    %94 = vector.shape_cast %93 : vector<2x8xf32> to vector<2x8x1xf32>
    %95 = vector.broadcast %94 : vector<2x8x1xf32> to vector<2x8x8xf32>
    %96 = arith.divf %92, %95 : vector<2x8x8xf32>
    "tpu.trace_start"() <{level = 10 : i32, message = "bqk,bkd->bqd"}> : () -> ()
    %cst_50 = arith.constant dense<0.000000e+00> : vector<2x8x8xf32>
    %97 = tpu.matmul %96, %82, %cst_50 {dimension_numbers = #tpu.dot_dimension_numbers<[2], [1], [1], [2], [0, 0, 0, 1, 1, 2], [0], [0]>} : vector<2x8x8xf32>, vector<2x8x8xf32>, vector<2x8x8xf32> -> vector<2x8x8xf32>
    "tpu.trace_stop"() : () -> ()
    %98 = vector.shape_cast %97 : vector<2x8x8xf32> to vector<16x8xf32>
    %c1_51 = arith.constant 1 : index
    %c0_52 = arith.constant 0 : index
    %c0_53 = arith.constant 0 : index
    %99 = vector.load %arg4[%c1_51, %c0_52, %c0_53] : memref<4x8x128xf32, #tpu.memory_space<vmem>>, vector<1x8x128xf32>
    %100 = vector.shape_cast %99 : vector<1x8x128xf32> to vector<8x128xf32>
    %cst_54 = arith.constant dense<0.000000e+00> : vector<16x128xf32>
    %101 = tpu.matmul %98, %100, %cst_54 {dimension_numbers = #tpu.dot_dimension_numbers<[1], [0], [0], [1], [0, 0, 1, 1], [], []>} : vector<16x8xf32>, vector<8x128xf32>, vector<16x128xf32> -> vector<16x128xf32>
    %102 = arith.addf %68, %101 : vector<16x128xf32>
    %c2 = arith.constant 2 : index
    %c0_55 = arith.constant 0 : index
    %c0_56 = arith.constant 0 : index
    %103 = vector.load %arg1[%c2, %c0_55, %c0_56] : memref<4x128x8xf32, #tpu.memory_space<vmem>>, vector<1x128x8xf32>
    %104 = vector.shape_cast %103 : vector<1x128x8xf32> to vector<128x8xf32>
    %cst_57 = arith.constant dense<0.000000e+00> : vector<16x8xf32>
    %105 = tpu.matmul %30, %104, %cst_57 {dimension_numbers = #tpu.dot_dimension_numbers<[1], [0], [0], [1], [0, 0, 1, 1], [], []>} : vector<16x128xf32>, vector<128x8xf32>, vector<16x8xf32> -> vector<16x8xf32>
    %cst_58 = arith.constant 0.176776692 : f32
    %106 = vector.broadcast %cst_58 : f32 to vector<16x8xf32>
    %107 = arith.mulf %105, %106 : vector<16x8xf32>
    %c2_59 = arith.constant 2 : index
    %c0_60 = arith.constant 0 : index
    %c0_61 = arith.constant 0 : index
    %108 = vector.load %arg2[%c2_59, %c0_60, %c0_61] : memref<4x128x8xf32, #tpu.memory_space<vmem>>, vector<1x128x8xf32>
    %109 = vector.shape_cast %108 : vector<1x128x8xf32> to vector<128x8xf32>
    %cst_62 = arith.constant dense<0.000000e+00> : vector<16x8xf32>
    %110 = tpu.matmul %30, %109, %cst_62 {dimension_numbers = #tpu.dot_dimension_numbers<[1], [0], [0], [1], [0, 0, 1, 1], [], []>} : vector<16x128xf32>, vector<128x8xf32>, vector<16x8xf32> -> vector<16x8xf32>
    %c2_63 = arith.constant 2 : index
    %c0_64 = arith.constant 0 : index
    %c0_65 = arith.constant 0 : index
    %111 = vector.load %arg3[%c2_63, %c0_64, %c0_65] : memref<4x128x8xf32, #tpu.memory_space<vmem>>, vector<1x128x8xf32>
    %112 = vector.shape_cast %111 : vector<1x128x8xf32> to vector<128x8xf32>
    %cst_66 = arith.constant dense<0.000000e+00> : vector<16x8xf32>
    %113 = tpu.matmul %30, %112, %cst_66 {dimension_numbers = #tpu.dot_dimension_numbers<[1], [0], [0], [1], [0, 0, 1, 1], [], []>} : vector<16x128xf32>, vector<128x8xf32>, vector<16x8xf32> -> vector<16x8xf32>
    %114 = vector.shape_cast %107 : vector<16x8xf32> to vector<2x8x8xf32>
    %115 = vector.shape_cast %110 : vector<16x8xf32> to vector<2x8x8xf32>
    %116 = vector.shape_cast %113 : vector<16x8xf32> to vector<2x8x8xf32>
    "tpu.trace_start"() <{level = 10 : i32, message = "bqd,bkd->bqk"}> : () -> ()
    %cst_67 = arith.constant dense<0.000000e+00> : vector<2x8x8xf32>
    %117 = tpu.matmul %114, %115, %cst_67 {dimension_numbers = #tpu.dot_dimension_numbers<[2], [2], [1], [1], [0, 0, 0, 1, 1, 1], [0], [0]>} : vector<2x8x8xf32>, vector<2x8x8xf32>, vector<2x8x8xf32> -> vector<2x8x8xf32>
    %cst_68 = arith.constant 0xFF800000 : f32
    "tpu.trace_stop"() : () -> ()
    %118 = vector.shape_cast %33 : vector<1x8x8xi1> to vector<1x8x8xi1>
    %119 = vector.broadcast %118 : vector<1x8x8xi1> to vector<2x8x8xi1>
    %120 = vector.broadcast %cst_68 : f32 to vector<2x8x8xf32>
    %121 = arith.select %119, %117, %120 : vector<2x8x8xi1>, vector<2x8x8xf32>
    %cst_69 = arith.constant dense<0xFF800000> : vector<2x8xf32>
    %122 = vector.multi_reduction <maximumf>, %121, %cst_69 [2] : vector<2x8x8xf32> to vector<2x8xf32>
    %123 = vector.shape_cast %122 : vector<2x8xf32> to vector<2x8x1xf32>
    %124 = vector.broadcast %123 : vector<2x8x1xf32> to vector<2x8x8xf32>
    %125 = arith.subf %121, %124 : vector<2x8x8xf32>
    %126 = math.exp %125 : vector<2x8x8xf32>
    %cst_70 = arith.constant dense<0.000000e+00> : vector<2x8xf32>
    %127 = vector.multi_reduction <add>, %126, %cst_70 [2] : vector<2x8x8xf32> to vector<2x8xf32>
    %128 = vector.shape_cast %127 : vector<2x8xf32> to vector<2x8x1xf32>
    %129 = vector.broadcast %128 : vector<2x8x1xf32> to vector<2x8x8xf32>
    %130 = arith.divf %126, %129 : vector<2x8x8xf32>
    "tpu.trace_start"() <{level = 10 : i32, message = "bqk,bkd->bqd"}> : () -> ()
    %cst_71 = arith.constant dense<0.000000e+00> : vector<2x8x8xf32>
    %131 = tpu.matmul %130, %116, %cst_71 {dimension_numbers = #tpu.dot_dimension_numbers<[2], [1], [1], [2], [0, 0, 0, 1, 1, 2], [0], [0]>} : vector<2x8x8xf32>, vector<2x8x8xf32>, vector<2x8x8xf32> -> vector<2x8x8xf32>
    "tpu.trace_stop"() : () -> ()
    %132 = vector.shape_cast %131 : vector<2x8x8xf32> to vector<16x8xf32>
    %c2_72 = arith.constant 2 : index
    %c0_73 = arith.constant 0 : index
    %c0_74 = arith.constant 0 : index
    %133 = vector.load %arg4[%c2_72, %c0_73, %c0_74] : memref<4x8x128xf32, #tpu.memory_space<vmem>>, vector<1x8x128xf32>
    %134 = vector.shape_cast %133 : vector<1x8x128xf32> to vector<8x128xf32>
    %cst_75 = arith.constant dense<0.000000e+00> : vector<16x128xf32>
    %135 = tpu.matmul %132, %134, %cst_75 {dimension_numbers = #tpu.dot_dimension_numbers<[1], [0], [0], [1], [0, 0, 1, 1], [], []>} : vector<16x8xf32>, vector<8x128xf32>, vector<16x128xf32> -> vector<16x128xf32>
    %136 = arith.addf %102, %135 : vector<16x128xf32>
    %c3 = arith.constant 3 : index
    %c0_76 = arith.constant 0 : index
    %c0_77 = arith.constant 0 : index
    %137 = vector.load %arg1[%c3, %c0_76, %c0_77] : memref<4x128x8xf32, #tpu.memory_space<vmem>>, vector<1x128x8xf32>
    %138 = vector.shape_cast %137 : vector<1x128x8xf32> to vector<128x8xf32>
    %cst_78 = arith.constant dense<0.000000e+00> : vector<16x8xf32>
    %139 = tpu.matmul %30, %138, %cst_78 {dimension_numbers = #tpu.dot_dimension_numbers<[1], [0], [0], [1], [0, 0, 1, 1], [], []>} : vector<16x128xf32>, vector<128x8xf32>, vector<16x8xf32> -> vector<16x8xf32>
    %cst_79 = arith.constant 0.176776692 : f32
    %140 = vector.broadcast %cst_79 : f32 to vector<16x8xf32>
    %141 = arith.mulf %139, %140 : vector<16x8xf32>
    %c3_80 = arith.constant 3 : index
    %c0_81 = arith.constant 0 : index
    %c0_82 = arith.constant 0 : index
    %142 = vector.load %arg2[%c3_80, %c0_81, %c0_82] : memref<4x128x8xf32, #tpu.memory_space<vmem>>, vector<1x128x8xf32>
    %143 = vector.shape_cast %142 : vector<1x128x8xf32> to vector<128x8xf32>
    %cst_83 = arith.constant dense<0.000000e+00> : vector<16x8xf32>
    %144 = tpu.matmul %30, %143, %cst_83 {dimension_numbers = #tpu.dot_dimension_numbers<[1], [0], [0], [1], [0, 0, 1, 1], [], []>} : vector<16x128xf32>, vector<128x8xf32>, vector<16x8xf32> -> vector<16x8xf32>
    %c3_84 = arith.constant 3 : index
    %c0_85 = arith.constant 0 : index
    %c0_86 = arith.constant 0 : index
    %145 = vector.load %arg3[%c3_84, %c0_85, %c0_86] : memref<4x128x8xf32, #tpu.memory_space<vmem>>, vector<1x128x8xf32>
    %146 = vector.shape_cast %145 : vector<1x128x8xf32> to vector<128x8xf32>
    %cst_87 = arith.constant dense<0.000000e+00> : vector<16x8xf32>
    %147 = tpu.matmul %30, %146, %cst_87 {dimension_numbers = #tpu.dot_dimension_numbers<[1], [0], [0], [1], [0, 0, 1, 1], [], []>} : vector<16x128xf32>, vector<128x8xf32>, vector<16x8xf32> -> vector<16x8xf32>
    %148 = vector.shape_cast %141 : vector<16x8xf32> to vector<2x8x8xf32>
    %149 = vector.shape_cast %144 : vector<16x8xf32> to vector<2x8x8xf32>
    %150 = vector.shape_cast %147 : vector<16x8xf32> to vector<2x8x8xf32>
    "tpu.trace_start"() <{level = 10 : i32, message = "bqd,bkd->bqk"}> : () -> ()
    %cst_88 = arith.constant dense<0.000000e+00> : vector<2x8x8xf32>
    %151 = tpu.matmul %148, %149, %cst_88 {dimension_numbers = #tpu.dot_dimension_numbers<[2], [2], [1], [1], [0, 0, 0, 1, 1, 1], [0], [0]>} : vector<2x8x8xf32>, vector<2x8x8xf32>, vector<2x8x8xf32> -> vector<2x8x8xf32>
    %cst_89 = arith.constant 0xFF800000 : f32
    "tpu.trace_stop"() : () -> ()
    %152 = vector.shape_cast %33 : vector<1x8x8xi1> to vector<1x8x8xi1>
    %153 = vector.broadcast %152 : vector<1x8x8xi1> to vector<2x8x8xi1>
    %154 = vector.broadcast %cst_89 : f32 to vector<2x8x8xf32>
    %155 = arith.select %153, %151, %154 : vector<2x8x8xi1>, vector<2x8x8xf32>
    %cst_90 = arith.constant dense<0xFF800000> : vector<2x8xf32>
    %156 = vector.multi_reduction <maximumf>, %155, %cst_90 [2] : vector<2x8x8xf32> to vector<2x8xf32>
    %157 = vector.shape_cast %156 : vector<2x8xf32> to vector<2x8x1xf32>
    %158 = vector.broadcast %157 : vector<2x8x1xf32> to vector<2x8x8xf32>
    %159 = arith.subf %155, %158 : vector<2x8x8xf32>
    %160 = math.exp %159 : vector<2x8x8xf32>
    %cst_91 = arith.constant dense<0.000000e+00> : vector<2x8xf32>
    %161 = vector.multi_reduction <add>, %160, %cst_91 [2] : vector<2x8x8xf32> to vector<2x8xf32>
    %162 = vector.shape_cast %161 : vector<2x8xf32> to vector<2x8x1xf32>
    %163 = vector.broadcast %162 : vector<2x8x1xf32> to vector<2x8x8xf32>
    %164 = arith.divf %160, %163 : vector<2x8x8xf32>
    "tpu.trace_start"() <{level = 10 : i32, message = "bqk,bkd->bqd"}> : () -> ()
    %cst_92 = arith.constant dense<0.000000e+00> : vector<2x8x8xf32>
    %165 = tpu.matmul %164, %150, %cst_92 {dimension_numbers = #tpu.dot_dimension_numbers<[2], [1], [1], [2], [0, 0, 0, 1, 1, 2], [0], [0]>} : vector<2x8x8xf32>, vector<2x8x8xf32>, vector<2x8x8xf32> -> vector<2x8x8xf32>
    "tpu.trace_stop"() : () -> ()
    %166 = vector.shape_cast %165 : vector<2x8x8xf32> to vector<16x8xf32>
    %c3_93 = arith.constant 3 : index
    %c0_94 = arith.constant 0 : index
    %c0_95 = arith.constant 0 : index
    %167 = vector.load %arg4[%c3_93, %c0_94, %c0_95] : memref<4x8x128xf32, #tpu.memory_space<vmem>>, vector<1x8x128xf32>
    %168 = vector.shape_cast %167 : vector<1x8x128xf32> to vector<8x128xf32>
    %cst_96 = arith.constant dense<0.000000e+00> : vector<16x128xf32>
    %169 = tpu.matmul %166, %168, %cst_96 {dimension_numbers = #tpu.dot_dimension_numbers<[1], [0], [0], [1], [0, 0, 1, 1], [], []>} : vector<16x8xf32>, vector<8x128xf32>, vector<16x128xf32> -> vector<16x128xf32>
    %170 = arith.addf %136, %169 : vector<16x128xf32>
    %171 = arith.addf %1, %170 : vector<16x128xf32>
    %c0_97 = arith.constant 0 : index
    %c0_98 = arith.constant 0 : index
    %172 = vector.load %arg5[%c0_97, %c0_98] : memref<1x128xf32, #tpu.memory_space<vmem>>, vector<1x128xf32>
    %173 = vector.broadcast %172 : vector<1x128xf32> to vector<16x128xf32>
    %174 = arith.addf %171, %173 : vector<16x128xf32>
    %c0_99 = arith.constant 0 : index
    %c0_100 = arith.constant 0 : index
    %175 = vector.load %arg8[%c0_99, %c0_100] : memref<1x128xf32, #tpu.memory_space<vmem>>, vector<1x128xf32>
    %c0_101 = arith.constant 0 : index
    %c0_102 = arith.constant 0 : index
    %176 = vector.load %arg9[%c0_101, %c0_102] : memref<1x128xf32, #tpu.memory_space<vmem>>, vector<1x128xf32>
    %cst_103 = arith.constant dense<0.000000e+00> : vector<16xf32>
    %177 = vector.multi_reduction <add>, %174, %cst_103 [1] : vector<16x128xf32> to vector<16xf32>
    %178 = vector.shape_cast %177 : vector<16xf32> to vector<16x1xf32>
    %cst_104 = arith.constant 3.125000e-02 : f32
    %179 = vector.broadcast %cst_104 : f32 to vector<16x1xf32>
    %180 = arith.mulf %178, %179 : vector<16x1xf32>
    %181 = vector.broadcast %180 : vector<16x1xf32> to vector<16x128xf32>
    %182 = arith.subf %174, %181 : vector<16x128xf32>
    %cst_105 = arith.constant 0.000000e+00 : f32
    %183 = vector.shape_cast %4 : vector<1x128xi1> to vector<1x128xi1>
    %184 = vector.broadcast %183 : vector<1x128xi1> to vector<16x128xi1>
    %185 = vector.broadcast %cst_105 : f32 to vector<16x128xf32>
    %186 = arith.select %184, %182, %185 : vector<16x128xi1>, vector<16x128xf32>
    %187 = arith.mulf %186, %186 : vector<16x128xf32>
    %cst_106 = arith.constant dense<0.000000e+00> : vector<16xf32>
    %188 = vector.multi_reduction <add>, %187, %cst_106 [1] : vector<16x128xf32> to vector<16xf32>
    %189 = vector.shape_cast %188 : vector<16xf32> to vector<16x1xf32>
    %cst_107 = arith.constant 3.125000e-02 : f32
    %190 = vector.broadcast %cst_107 : f32 to vector<16x1xf32>
    %191 = arith.mulf %189, %190 : vector<16x1xf32>
    %cst_108 = arith.constant 9.99999974E-6 : f32
    %192 = vector.broadcast %cst_108 : f32 to vector<16x1xf32>
    %193 = arith.addf %191, %192 : vector<16x1xf32>
    %194 = math.rsqrt %193 : vector<16x1xf32>
    %195 = vector.broadcast %194 : vector<16x1xf32> to vector<16x128xf32>
    %196 = arith.mulf %186, %195 : vector<16x128xf32>
    %197 = vector.broadcast %175 : vector<1x128xf32> to vector<16x128xf32>
    %198 = arith.mulf %196, %197 : vector<16x128xf32>
    %199 = vector.broadcast %176 : vector<1x128xf32> to vector<16x128xf32>
    %200 = arith.addf %198, %199 : vector<16x128xf32>
    %c0_109 = arith.constant 0 : index
    %c0_110 = arith.constant 0 : index
    %201 = vector.load %arg10[%c0_109, %c0_110] : memref<128x128xf32, #tpu.memory_space<vmem>>, vector<128x128xf32>
    %cst_111 = arith.constant dense<0.000000e+00> : vector<16x128xf32>
    %202 = tpu.matmul %200, %201, %cst_111 {dimension_numbers = #tpu.dot_dimension_numbers<[1], [0], [0], [1], [0, 0, 1, 1], [], []>} : vector<16x128xf32>, vector<128x128xf32>, vector<16x128xf32> -> vector<16x128xf32>
    %c0_112 = arith.constant 0 : index
    %c0_113 = arith.constant 0 : index
    %203 = vector.load %arg11[%c0_112, %c0_113] : memref<1x128xf32, #tpu.memory_space<vmem>>, vector<1x128xf32>
    %204 = vector.broadcast %203 : vector<1x128xf32> to vector<16x128xf32>
    %205 = arith.addf %202, %204 : vector<16x128xf32>
    %cst_114 = arith.constant 0.000000e+00 : f32
    %206 = vector.broadcast %cst_114 : f32 to vector<16x128xf32>
    %207 = arith.maximumf %205, %206 : vector<16x128xf32>
    %c0_115 = arith.constant 0 : index
    %c0_116 = arith.constant 0 : index
    %208 = vector.load %arg12[%c0_115, %c0_116] : memref<128x128xf32, #tpu.memory_space<vmem>>, vector<128x128xf32>
    %cst_117 = arith.constant dense<0.000000e+00> : vector<16x128xf32>
    %209 = tpu.matmul %207, %208, %cst_117 {dimension_numbers = #tpu.dot_dimension_numbers<[1], [0], [0], [1], [0, 0, 1, 1], [], []>} : vector<16x128xf32>, vector<128x128xf32>, vector<16x128xf32> -> vector<16x128xf32>
    %c0_118 = arith.constant 0 : index
    %c0_119 = arith.constant 0 : index
    %210 = vector.load %arg13[%c0_118, %c0_119] : memref<1x128xf32, #tpu.memory_space<vmem>>, vector<1x128xf32>
    %211 = vector.broadcast %210 : vector<1x128xf32> to vector<16x128xf32>
    %212 = arith.addf %209, %211 : vector<16x128xf32>
    %213 = arith.addf %174, %212 : vector<16x128xf32>
    %214 = vector.shape_cast %213 : vector<16x128xf32> to vector<2x8x128xf32>
    %c0_120 = arith.constant 0 : index
    %c0_121 = arith.constant 0 : index
    %c0_122 = arith.constant 0 : index
    %215 = vector.load %arg14[%c0_120, %c0_121, %c0_122] : memref<2x8x128xf32, #tpu.memory_space<vmem>>, vector<2x8x128xf32>
    tpu.vector_store %arg14[%c0_120, %c0_121, %c0_122], %214 {strides = array<i32>} : memref<2x8x128xf32, #tpu.memory_space<vmem>>, vector<2x8x128xf32>,
    return
  }
}

</mosaic_0001>

<llo_original>
// kernel: tpu_custom_call.1
$region0: #{tpu_custom_call.1}
  #allocation0 [shape = 'u32[]', space=smem, size = 0x4, offset = 0x4, fixed_abs, tag = 'smem constant byte address 0x4 - core index']
  #allocation1 [shape = 'u32[144,128]{1,0:T(1,128)}', space=vmem, size = 0x12000, scoped, tag = 'internal scratch']
  %s0 = inlined_call_operand.vmem [shape: f32[2,8,128], index: 0, kind: input, shape index: {}]
  %s1 = inlined_call_operand.vmem [shape: f32[4,128,8], index: 1, kind: input, shape index: {}]
  %s2 = inlined_call_operand.vmem [shape: f32[4,128,8], index: 2, kind: input, shape index: {}]
  %s3 = inlined_call_operand.vmem [shape: f32[4,128,8], index: 3, kind: input, shape index: {}]
  %s4 = inlined_call_operand.vmem [shape: f32[4,8,128], index: 4, kind: input, shape index: {}]
  %s5 = inlined_call_operand.vmem [shape: f32[1,128], index: 5, kind: input, shape index: {}]
  %s6 = inlined_call_operand.vmem [shape: f32[1,128], index: 6, kind: input, shape index: {}]
  %s7 = inlined_call_operand.vmem [shape: f32[1,128], index: 7, kind: input, shape index: {}]
  %s8 = inlined_call_operand.vmem [shape: f32[1,128], index: 8, kind: input, shape index: {}]
  %s9 = inlined_call_operand.vmem [shape: f32[1,128], index: 9, kind: input, shape index: {}]
  %s10 = inlined_call_operand.vmem [shape: f32[128,128], index: 10, kind: input, shape index: {}]
  %s11 = inlined_call_operand.vmem [shape: f32[1,128], index: 11, kind: input, shape index: {}]
  %s12 = inlined_call_operand.vmem [shape: f32[128,128], index: 12, kind: input, shape index: {}]
  %s13 = inlined_call_operand.vmem [shape: f32[1,128], index: 13, kind: input, shape index: {}]
  %s14 = inlined_call_operand.hbm [shape: f32[2,8,128], index: 14, kind: output, shape index: {}]
  %s15 = sld [smem:[#allocation0]]
  $region66: #{tpu_custom_call.1} parent=0
    _
  %s17 = ssub.s32 1, %s15
  %s18 = scalar_select 0, %s17, %s15
  $region1: #{tpu_custom_call.1} parent=0
    #allocation2 [shape = 'u8[8192]{0}', space=vmem, size = 0x2000, scoped, tag = 'output window, operand 0, single buffered']
    #allocation3 [shape = 's32[1]{0}', space=sflag, size = 0x4, scoped, tag = 'scoped memory for tpu_custom_call.1']
    %19 = vsyncpa [#allocation3], 0
    // Predicated region
    $region2: #{tpu_custom_call.1} parent=1 // pred_check
      _
    $region3: #{tpu_custom_call.1} parent=1 // pred_check_branch
      %21 = sbr.rel (0) target = $region5
    $region4: #{tpu_custom_call.1} parent=1 // pred_region
      _
    $region5: #{tpu_custom_call.1} parent=1 // pred_fallthru
      _
    // Predicated region
    $region6: #{tpu_custom_call.1} parent=1 // pred_check
      _
    $region7: #{tpu_custom_call.1} parent=1 // pred_check_branch
      %23 = sbr.rel (0) target = $region9
    $region8: #{tpu_custom_call.1} parent=1 // pred_region
      _
    $region9: #{tpu_custom_call.1} parent=1 // pred_fallthru
      _
    // Predicated region
    $region10: #{tpu_custom_call.1} parent=1 // pred_check
      _
    $region11: #{tpu_custom_call.1} parent=1 // pred_check_branch
      %25 = sbr.rel (0) target = $region13
    $region12: #{tpu_custom_call.1} parent=1 // pred_region
      _
    $region13: #{tpu_custom_call.1} parent=1 // pred_fallthru
      _
    // Predicated region
    $region14: #{tpu_custom_call.1} parent=1 // pred_check
      _
    $region15: #{tpu_custom_call.1} parent=1 // pred_check_branch
      %27 = sbr.rel (0) target = $region17
    $region16: #{tpu_custom_call.1} parent=1 // pred_region
      _
    $region17: #{tpu_custom_call.1} parent=1 // pred_fallthru
      _
    // Predicated region
    $region18: #{tpu_custom_call.1} parent=1 // pred_check
      _
    $region19: #{tpu_custom_call.1} parent=1 // pred_check_branch
      %29 = sbr.rel (0) target = $region21
    $region20: #{tpu_custom_call.1} parent=1 // pred_region
      _
    $region21: #{tpu_custom_call.1} parent=1 // pred_fallthru
      _
    // Predicated region
    $region22: #{tpu_custom_call.1} parent=1 // pred_check
      _
    $region23: #{tpu_custom_call.1} parent=1 // pred_check_branch
      %31 = sbr.rel (0) target = $region25
    $region24: #{tpu_custom_call.1} parent=1 // pred_region
      _
    $region25: #{tpu_custom_call.1} parent=1 // pred_fallthru
      _
    // Predicated region
    $region26: #{tpu_custom_call.1} parent=1 // pred_check
      _
    $region27: #{tpu_custom_call.1} parent=1 // pred_check_branch
      %33 = sbr.rel (0) target = $region29
    $region28: #{tpu_custom_call.1} parent=1 // pred_region
      _
    $region29: #{tpu_custom_call.1} parent=1 // pred_fallthru
      _
    // Predicated region
    $region30: #{tpu_custom_call.1} parent=1 // pred_check
      _
    $region31: #{tpu_custom_call.1} parent=1 // pred_check_branch
      %35 = sbr.rel (0) target = $region33
    $region32: #{tpu_custom_call.1} parent=1 // pred_region
      _
    $region33: #{tpu_custom_call.1} parent=1 // pred_fallthru
      _
    // Predicated region
    $region34: #{tpu_custom_call.1} parent=1 // pred_check
      _
    $region35: #{tpu_custom_call.1} parent=1 // pred_check_branch
      %37 = sbr.rel (0) target = $region37
    $region36: #{tpu_custom_call.1} parent=1 // pred_region
      _
    $region37: #{tpu_custom_call.1} parent=1 // pred_fallthru
      _
    // Predicated region
    $region38: #{tpu_custom_call.1} parent=1 // pred_check
      _
    $region39: #{tpu_custom_call.1} parent=1 // pred_check_branch
      %39 = sbr.rel (0) target = $region41
    $region40: #{tpu_custom_call.1} parent=1 // pred_region
      _
    $region41: #{tpu_custom_call.1} parent=1 // pred_fallthru
      _
    // Predicated region
    $region42: #{tpu_custom_call.1} parent=1 // pred_check
      _
    $region43: #{tpu_custom_call.1} parent=1 // pred_check_branch
      %41 = sbr.rel (0) target = $region45
    $region44: #{tpu_custom_call.1} parent=1 // pred_region
      _
    $region45: #{tpu_custom_call.1} parent=1 // pred_fallthru
      _
    // Predicated region
    $region46: #{tpu_custom_call.1} parent=1 // pred_check
      _
    $region47: #{tpu_custom_call.1} parent=1 // pred_check_branch
      %43 = sbr.rel (0) target = $region49
    $region48: #{tpu_custom_call.1} parent=1 // pred_region
      _
    $region49: #{tpu_custom_call.1} parent=1 // pred_fallthru
      _
    // Predicated region
    $region50: #{tpu_custom_call.1} parent=1 // pred_check
      _
    $region51: #{tpu_custom_call.1} parent=1 // pred_check_branch
      %45 = sbr.rel (0) target = $region53
    $region52: #{tpu_custom_call.1} parent=1 // pred_region
      _
    $region53: #{tpu_custom_call.1} parent=1 // pred_fallthru
      _
    // Predicated region
    $region54: #{tpu_custom_call.1} parent=1 // pred_check
      _
    $region55: #{tpu_custom_call.1} parent=1 // pred_check_branch
      %47 = sbr.rel (0) target = $region57
    $region56: #{tpu_custom_call.1} parent=1 // pred_region
      _
    $region57: #{tpu_custom_call.1} parent=1 // pred_fallthru
      _
    %v48 = vld [vmem:[%s0] sm:$0xff]
    %v49 = vld [vmem:[%s0 + $0x8] sm:$0xff]
    %v50 = vlaneseq
    %v51 = vand.u32 %v50, 127
    %vm52 = vcmp.lt.s32.totalorder %v51, 32
    %v53 = vld [vmem:[%s6] sm:$0x1]
    %v54 = vld [vmem:[%s7] sm:$0x1]
    %55 = vadd.xlane.f32.xlu0 %v48
    %v56 = vpop.xlane.xlu0 %55
    %57 = vadd.xlane.f32.xlu0 %v49
    %v58 = vpop.xlane.xlu0 %57
    %v59 = vmul.f32 %v56, 0.03125
    %v60 = vmul.f32 %v58, 0.03125
    %v61 = vsub.f32 %v48, %v59
    %v62 = vsub.f32 %v49, %v60
    %v63 = vsel %vm52, 1, 0
    %vm64 = vcmp.eq.s32.totalorder %v63, 1
    %v65 = vsel %vm64, %v61, 0.0
    %v66 = vsel %vm64, %v62, 0.0
    %v67 = vmul.f32 %v65, %v65
    %v68 = vmul.f32 %v66, %v66
    %69 = vadd.xlane.f32.xlu0 %v67
    %v70 = vpop.xlane.xlu0 %69
    %71 = vadd.xlane.f32.xlu0 %v68
    %v72 = vpop.xlane.xlu0 %71
    %v73 = vmul.f32 %v70, 0.03125
    %v74 = vmul.f32 %v72, 0.03125
    %v75 = vadd.f32 %v73, 1e-05
    %v76 = vadd.f32 %v74, 1e-05
    %v77 = vrsqrt.pop %v75
    %v78 = vrsqrt.pop %v76
    %v79 = vmul.f32 %v65, %v77
    %v80 = vmul.f32 %v66, %v78
    %v82 = vlaneseq
    %v83 = vshrl.u32 %v82, 7
    %v84 = vsub.s32 0, %v83
    %v85 = vrot.slane %v53, %v84
    %v87 = vmul.f32 %v79, %v85
    %v88 = vmul.f32 %v80, %v85
    %v90 = vlaneseq
    %v91 = vshrl.u32 %v90, 7
    %v92 = vsub.s32 0, %v91
    %v93 = vrot.slane %v54, %v92
    %v95 = vadd.f32 %v87, %v93
    %v96 = vadd.f32 %v88, %v93
    %v97 = vlaneseq
    %v98 = vshrl.u32 %v97, 7
    %vm99 = vcmp.ge.s32.totalorder %v98, %v51
    %v100 = vld [vmem:[%s1] sm:$0xff]
    %v101 = vld [vmem:[%s1 + $0x8] sm:$0xff]
    %v102 = vld [vmem:[%s1 + $0x10] sm:$0xff]
    %v103 = vld [vmem:[%s1 + $0x18] sm:$0xff]
    %v104 = vld [vmem:[%s1 + $0x20] sm:$0xff]
    %v105 = vld [vmem:[%s1 + $0x28] sm:$0xff]
    %v106 = vld [vmem:[%s1 + $0x30] sm:$0xff]
    %v107 = vld [vmem:[%s1 + $0x38] sm:$0xff]
    %v108 = vld [vmem:[%s1 + $0x40] sm:$0xff]
    %v109 = vld [vmem:[%s1 + $0x48] sm:$0xff]
    %v110 = vld [vmem:[%s1 + $0x50] sm:$0xff]
    %v111 = vld [vmem:[%s1 + $0x58] sm:$0xff]
    %v112 = vld [vmem:[%s1 + $0x60] sm:$0xff]
    %v113 = vld [vmem:[%s1 + $0x68] sm:$0xff]
    %v114 = vld [vmem:[%s1 + $0x70] sm:$0xff]
    %v115 = vld [vmem:[%s1 + $0x78] sm:$0xff]
    %116 = vmatprep.subr.mxu0 0.0
    %117 = vmatpush1.msra.mxu0 %v115
    %118 = vmatprep.subr.mxu0 0.0
    %119 = vmatpush1.msra.mxu0 %v114
    %120 = vmatprep.subr.mxu0 0.0
    %121 = vmatpush1.msra.mxu0 %v113
    %122 = vmatprep.subr.mxu0 0.0
    %123 = vmatpush1.msra.mxu0 %v112
    %124 = vmatprep.subr.mxu0 0.0
    %125 = vmatpush1.msra.mxu0 %v111
    %126 = vmatprep.subr.mxu0 0.0
    %127 = vmatpush1.msra.mxu0 %v110
    %128 = vmatprep.subr.mxu0 0.0
    %129 = vmatpush1.msra.mxu0 %v109
    %130 = vmatprep.subr.mxu0 0.0
    %131 = vmatpush1.msra.mxu0 %v108
    %132 = vmatprep.subr.mxu0 0.0
    %133 = vmatpush1.msra.mxu0 %v107
    %134 = vmatprep.subr.mxu0 0.0
    %135 = vmatpush1.msra.mxu0 %v106
    %136 = vmatprep.subr.mxu0 0.0
    %137 = vmatpush1.msra.mxu0 %v105
    %138 = vmatprep.subr.mxu0 0.0
    %139 = vmatpush1.msra.mxu0 %v104
    %140 = vmatprep.subr.mxu0 0.0
    %141 = vmatpush1.msra.mxu0 %v103
    %142 = vmatprep.subr.mxu0 0.0
    %143 = vmatpush1.msra.mxu0 %v102
    %144 = vmatprep.subr.mxu0 0.0
    %145 = vmatpush1.msra.mxu0 %v101
    %146 = vmatprep.subr.mxu0 0.0
    %147 = vmatpush1.msra.mxu0 %v100
    %148 = vmatprep.subr.mxu0 0.0
    %149 = vmatpush2.msra.mxu0 0.0
    %150 = vmatprep.subr.mxu0 0.0
    %151 = vmatpush2.msra.mxu0 0.0
    %152 = vmatprep.subr.mxu0 0.0
    %153 = vmatpush2.msra.mxu0 0.0
    %154 = vmatprep.subr.mxu0 0.0
    %155 = vmatpush2.msra.mxu0 0.0
    %156 = vmatprep.subr.mxu0 0.0
    %157 = vmatpush2.msra.mxu0 0.0
    %158 = vmatprep.subr.mxu0 0.0
    %159 = vmatpush2.msra.mxu0 0.0
    %160 = vmatprep.subr.mxu0 0.0
    %161 = vmatpush2.msra.mxu0 0.0
    %162 = vmatprep.subr.mxu0 0.0
    %163 = vmatpush2.msra.mxu0 0.0
    %164 = vmatprep.subr.mxu0 0.0
    %165 = vmatpush2.msra.mxu0 0.0
    %166 = vmatprep.subr.mxu0 0.0
    %167 = vmatpush2.msra.mxu0 0.0
    %168 = vmatprep.subr.mxu0 0.0
    %169 = vmatpush2.msra.mxu0 0.0
    %170 = vmatprep.subr.mxu0 0.0
    %171 = vmatpush2.msra.mxu0 0.0
    %172 = vmatprep.subr.mxu0 0.0
    %173 = vmatpush2.msra.mxu0 0.0
    %174 = vmatprep.subr.mxu0 0.0
    %175 = vmatpush2.msra.mxu0 0.0
    %176 = vmatprep.subr.mxu0 0.0
    %177 = vmatpush2.msra.mxu0 0.0
    %178 = vmatprep.subr.mxu0 0.0
    %179 = vmatpush2.msra.mxu0 0.0
    %180 = vmatprep.mubr.f32.mxu0 0.0
    %181 = vmatmul.mubr.f32.gmra.mxu0 %v95
    %v182 = vpop.f32.mrf.mxu0
    %v183 = vadd.f32 0.0, %v182
    %v184 = vpop.f32.mrf.mxu0
    %185 = vmatprep.mubr.f32.mxu0 0.0
    %186 = vmatmul.mubr.f32.gmra.mxu0 %v96
    %v187 = vpop.f32.mrf.mxu0
    %v188 = vadd.f32 0.0, %v187
    %v189 = vpop.f32.mrf.mxu0
    %190 = vdwg.mxu0
    %v191 = vmul.f32 %v183, 0.17677669
    %v192 = vmul.f32 %v188, 0.17677669
    %v193 = vld [vmem:[%s2] sm:$0xff]
    %v194 = vld [vmem:[%s2 + $0x8] sm:$0xff]
    %v195 = vld [vmem:[%s2 + $0x10] sm:$0xff]
    %v196 = vld [vmem:[%s2 + $0x18] sm:$0xff]
    %v197 = vld [vmem:[%s2 + $0x20] sm:$0xff]
    %v198 = vld [vmem:[%s2 + $0x28] sm:$0xff]
    %v199 = vld [vmem:[%s2 + $0x30] sm:$0xff]
    %v200 = vld [vmem:[%s2 + $0x38] sm:$0xff]
    %v201 = vld [vmem:[%s2 + $0x40] sm:$0xff]
    %v202 = vld [vmem:[%s2 + $0x48] sm:$0xff]
    %v203 = vld [vmem:[%s2 + $0x50] sm:$0xff]
    %v204 = vld [vmem:[%s2 + $0x58] sm:$0xff]
    %v205 = vld [vmem:[%s2 + $0x60] sm:$0xff]
    %v206 = vld [vmem:[%s2 + $0x68] sm:$0xff]
    %v207 = vld [vmem:[%s2 + $0x70] sm:$0xff]
    %v208 = vld [vmem:[%s2 + $0x78] sm:$0xff]
    %209 = vmatprep.subr.mxu0 0.0
    %210 = vmatpush1.msra.mxu0 %v208
    %211 = vmatprep.subr.mxu0 0.0
    %212 = vmatpush1.msra.mxu0 %v207
    %213 = vmatprep.subr.mxu0 0.0
    %214 = vmatpush1.msra.mxu0 %v206
    %215 = vmatprep.subr.mxu0 0.0
    %216 = vmatpush1.msra.mxu0 %v205
    %217 = vmatprep.subr.mxu0 0.0
    %218 = vmatpush1.msra.mxu0 %v204
    %219 = vmatprep.subr.mxu0 0.0
    %220 = vmatpush1.msra.mxu0 %v203
    %221 = vmatprep.subr.mxu0 0.0
    %222 = vmatpush1.msra.mxu0 %v202
    %223 = vmatprep.subr.mxu0 0.0
    %224 = vmatpush1.msra.mxu0 %v201
    %225 = vmatprep.subr.mxu0 0.0
    %226 = vmatpush1.msra.mxu0 %v200
    %227 = vmatprep.subr.mxu0 0.0
    %228 = vmatpush1.msra.mxu0 %v199
    %229 = vmatprep.subr.mxu0 0.0
    %230 = vmatpush1.msra.mxu0 %v198
    %231 = vmatprep.subr.mxu0 0.0
    %232 = vmatpush1.msra.mxu0 %v197
    %233 = vmatprep.subr.mxu0 0.0
    %234 = vmatpush1.msra.mxu0 %v196
    %235 = vmatprep.subr.mxu0 0.0
    %236 = vmatpush1.msra.mxu0 %v195
    %237 = vmatprep.subr.mxu0 0.0
    %238 = vmatpush1.msra.mxu0 %v194
    %239 = vmatprep.subr.mxu0 0.0
    %240 = vmatpush1.msra.mxu0 %v193
    %241 = vmatprep.subr.mxu0 0.0
    %242 = vmatpush2.msra.mxu0 0.0
    %243 = vmatprep.subr.mxu0 0.0
    %244 = vmatpush2.msra.mxu0 0.0
    %245 = vmatprep.subr.mxu0 0.0
    %246 = vmatpush2.msra.mxu0 0.0
    %247 = vmatprep.subr.mxu0 0.0
    %248 = vmatpush2.msra.mxu0 0.0
    %249 = vmatprep.subr.mxu0 0.0
    %250 = vmatpush2.msra.mxu0 0.0
    %251 = vmatprep.subr.mxu0 0.0
    %252 = vmatpush2.msra.mxu0 0.0
    %253 = vmatprep.subr.mxu0 0.0
    %254 = vmatpush2.msra.mxu0 0.0
    %255 = vmatprep.subr.mxu0 0.0
    %256 = vmatpush2.msra.mxu0 0.0
    %257 = vmatprep.subr.mxu0 0.0
    %258 = vmatpush2.msra.mxu0 0.0
    %259 = vmatprep.subr.mxu0 0.0
    %260 = vmatpush2.msra.mxu0 0.0
    %261 = vmatprep.subr.mxu0 0.0
    %262 = vmatpush2.msra.mxu0 0.0
    %263 = vmatprep.subr.mxu0 0.0
    %264 = vmatpush2.msra.mxu0 0.0
    %265 = vmatprep.subr.mxu0 0.0
    %266 = vmatpush2.msra.mxu0 0.0
    %267 = vmatprep.subr.mxu0 0.0
    %268 = vmatpush2.msra.mxu0 0.0
    %269 = vmatprep.subr.mxu0 0.0
    %270 = vmatpush2.msra.mxu0 0.0
    %271 = vmatprep.subr.mxu0 0.0
    %272 = vmatpush2.msra.mxu0 0.0
    %273 = vmatprep.mubr.f32.mxu0 0.0
    %274 = vmatmul.mubr.f32.gmra.mxu0 %v95
    %v275 = vpop.f32.mrf.mxu0
    %v276 = vadd.f32 0.0, %v275
    %v277 = vpop.f32.mrf.mxu0
    %278 = vmatprep.mubr.f32.mxu0 0.0
    %279 = vmatmul.mubr.f32.gmra.mxu0 %v96
    %v280 = vpop.f32.mrf.mxu0
    %v281 = vadd.f32 0.0, %v280
    %v282 = vpop.f32.mrf.mxu0
    %283 = vdwg.mxu0
    %v284 = vld [vmem:[%s3] sm:$0xff]
    %v285 = vld [vmem:[%s3 + $0x8] sm:$0xff]
    %v286 = vld [vmem:[%s3 + $0x10] sm:$0xff]
    %v287 = vld [vmem:[%s3 + $0x18] sm:$0xff]
    %v288 = vld [vmem:[%s3 + $0x20] sm:$0xff]
    %v289 = vld [vmem:[%s3 + $0x28] sm:$0xff]
    %v290 = vld [vmem:[%s3 + $0x30] sm:$0xff]
    %v291 = vld [vmem:[%s3 + $0x38] sm:$0xff]
    %v292 = vld [vmem:[%s3 + $0x40] sm:$0xff]
    %v293 = vld [vmem:[%s3 + $0x48] sm:$0xff]
    %v294 = vld [vmem:[%s3 + $0x50] sm:$0xff]
    %v295 = vld [vmem:[%s3 + $0x58] sm:$0xff]
    %v296 = vld [vmem:[%s3 + $0x60] sm:$0xff]
    %v297 = vld [vmem:[%s3 + $0x68] sm:$0xff]
    %v298 = vld [vmem:[%s3 + $0x70] sm:$0xff]
    %v299 = vld [vmem:[%s3 + $0x78] sm:$0xff]
    %300 = vmatprep.subr.mxu0 0.0
    %301 = vmatpush1.msra.mxu0 %v299
    %302 = vmatprep.subr.mxu0 0.0
    %303 = vmatpush1.msra.mxu0 %v298
    %304 = vmatprep.subr.mxu0 0.0
    %305 = vmatpush1.msra.mxu0 %v297
    %306 = vmatprep.subr.mxu0 0.0
    %307 = vmatpush1.msra.mxu0 %v296
    %308 = vmatprep.subr.mxu0 0.0
    %309 = vmatpush1.msra.mxu0 %v295
    %310 = vmatprep.subr.mxu0 0.0
    %311 = vmatpush1.msra.mxu0 %v294
    %312 = vmatprep.subr.mxu0 0.0
    %313 = vmatpush1.msra.mxu0 %v293
    %314 = vmatprep.subr.mxu0 0.0
    %315 = vmatpush1.msra.mxu0 %v292
    %316 = vmatprep.subr.mxu0 0.0
    %317 = vmatpush1.msra.mxu0 %v291
    %318 = vmatprep.subr.mxu0 0.0
    %319 = vmatpush1.msra.mxu0 %v290
    %320 = vmatprep.subr.mxu0 0.0
    %321 = vmatpush1.msra.mxu0 %v289
    %322 = vmatprep.subr.mxu0 0.0
    %323 = vmatpush1.msra.mxu0 %v288
    %324 = vmatprep.subr.mxu0 0.0
    %325 = vmatpush1.msra.mxu0 %v287
    %326 = vmatprep.subr.mxu0 0.0
    %327 = vmatpush1.msra.mxu0 %v286
    %328 = vmatprep.subr.mxu0 0.0
    %329 = vmatpush1.msra.mxu0 %v285
    %330 = vmatprep.subr.mxu0 0.0
    %331 = vmatpush1.msra.mxu0 %v284
    %332 = vmatprep.subr.mxu0 0.0
    %333 = vmatpush2.msra.mxu0 0.0
    %334 = vmatprep.subr.mxu0 0.0
    %335 = vmatpush2.msra.mxu0 0.0
    %336 = vmatprep.subr.mxu0 0.0
    %337 = vmatpush2.msra.mxu0 0.0
    %338 = vmatprep.subr.mxu0 0.0
    %339 = vmatpush2.msra.mxu0 0.0
    %340 = vmatprep.subr.mxu0 0.0
    %341 = vmatpush2.msra.mxu0 0.0
    %342 = vmatprep.subr.mxu0 0.0
    %343 = vmatpush2.msra.mxu0 0.0
    %344 = vmatprep.subr.mxu0 0.0
    %345 = vmatpush2.msra.mxu0 0.0
    %346 = vmatprep.subr.mxu0 0.0
    %347 = vmatpush2.msra.mxu0 0.0
    %348 = vmatprep.subr.mxu0 0.0
    %349 = vmatpush2.msra.mxu0 0.0
    %350 = vmatprep.subr.mxu0 0.0
    %351 = vmatpush2.msra.mxu0 0.0
    %352 = vmatprep.subr.mxu0 0.0
    %353 = vmatpush2.msra.mxu0 0.0
    %354 = vmatprep.subr.mxu0 0.0
    %355 = vmatpush2.msra.mxu0 0.0
    %356 = vmatprep.subr.mxu0 0.0
    %357 = vmatpush2.msra.mxu0 0.0
    %358 = vmatprep.subr.mxu0 0.0
    %359 = vmatpush2.msra.mxu0 0.0
    %360 = vmatprep.subr.mxu0 0.0
    %361 = vmatpush2.msra.mxu0 0.0
    %362 = vmatprep.subr.mxu0 0.0
    %363 = vmatpush2.msra.mxu0 0.0
    %364 = vmatprep.mubr.f32.mxu0 0.0
    %365 = vmatmul.mubr.f32.gmra.mxu0 %v95
    %v366 = vpop.f32.mrf.mxu0
    %v367 = vadd.f32 0.0, %v366
    %v368 = vpop.f32.mrf.mxu0
    %369 = vmatprep.mubr.f32.mxu0 0.0
    %370 = vmatmul.mubr.f32.gmra.mxu0 %v96
    %v371 = vpop.f32.mrf.mxu0
    %v372 = vadd.f32 0.0, %v371
    %v373 = vpop.f32.mrf.mxu0
    %374 = vdwg.mxu0
    %vm375 = vcmask 64512
    %v377 = vsel %vm375, %v191, 0
    %v380 = vsel %vm375, %v276, 0
    %382 = vmatprep.subr.mxu0 0.0
    %383 = vmatpush1.xpose.msra.mxu0 0.0
    %384 = vmatprep.subr.mxu0 0.0
    %385 = vmatpush1.xpose.msra.mxu0 0.0
    %386 = vmatprep.subr.mxu0 0.0
    %387 = vmatpush1.xpose.msra.mxu0 0.0
    %388 = vmatprep.subr.mxu0 0.0
    %389 = vmatpush1.xpose.msra.mxu0 0.0
    %390 = vmatprep.subr.mxu0 0.0
    %391 = vmatpush1.xpose.msra.mxu0 0.0
    %392 = vmatprep.subr.mxu0 0.0
    %393 = vmatpush1.xpose.msra.mxu0 0.0
    %394 = vmatprep.subr.mxu0 0.0
    %395 = vmatpush1.xpose.msra.mxu0 0.0
    %396 = vmatprep.subr.mxu0 0.0
    %397 = vmatpush1.xpose.msra.mxu0 0.0
    %398 = vmatprep.subr.mxu0 0.0
    %399 = vmatpush1.xpose.msra.mxu0 0.0
    %400 = vmatprep.subr.mxu0 0.0
    %401 = vmatpush1.xpose.msra.mxu0 0.0
    %402 = vmatprep.subr.mxu0 0.0
    %403 = vmatpush1.xpose.msra.mxu0 0.0
    %404 = vmatprep.subr.mxu0 0.0
    %405 = vmatpush1.xpose.msra.mxu0 0.0
    %406 = vmatprep.subr.mxu0 0.0
    %407 = vmatpush1.xpose.msra.mxu0 0.0
    %408 = vmatprep.subr.mxu0 0.0
    %409 = vmatpush1.xpose.msra.mxu0 0.0
    %410 = vmatprep.subr.mxu0 0.0
    %411 = vmatpush1.xpose.msra.mxu0 0.0
    %412 = vmatprep.subr.mxu0 0.0
    %413 = vmatpush1.xpose.msra.mxu0 %v380
    %414 = vmatprep.subr.mxu0 0.0
    %415 = vmatpush2.xpose.msra.mxu0 0.0
    %416 = vmatprep.subr.mxu0 0.0
    %417 = vmatpush2.xpose.msra.mxu0 0.0
    %418 = vmatprep.subr.mxu0 0.0
    %419 = vmatpush2.xpose.msra.mxu0 0.0
    %420 = vmatprep.subr.mxu0 0.0
    %421 = vmatpush2.xpose.msra.mxu0 0.0
    %422 = vmatprep.subr.mxu0 0.0
    %423 = vmatpush2.xpose.msra.mxu0 0.0
    %424 = vmatprep.subr.mxu0 0.0
    %425 = vmatpush2.xpose.msra.mxu0 0.0
    %426 = vmatprep.subr.mxu0 0.0
    %427 = vmatpush2.xpose.msra.mxu0 0.0
    %428 = vmatprep.subr.mxu0 0.0
    %429 = vmatpush2.xpose.msra.mxu0 0.0
    %430 = vmatprep.subr.mxu0 0.0
    %431 = vmatpush2.xpose.msra.mxu0 0.0
    %432 = vmatprep.subr.mxu0 0.0
    %433 = vmatpush2.xpose.msra.mxu0 0.0
    %434 = vmatprep.subr.mxu0 0.0
    %435 = vmatpush2.xpose.msra.mxu0 0.0
    %436 = vmatprep.subr.mxu0 0.0
    %437 = vmatpush2.xpose.msra.mxu0 0.0
    %438 = vmatprep.subr.mxu0 0.0
    %439 = vmatpush2.xpose.msra.mxu0 0.0
    %440 = vmatprep.subr.mxu0 0.0
    %441 = vmatpush2.xpose.msra.mxu0 0.0
    %442 = vmatprep.subr.mxu0 0.0
    %443 = vmatpush2.xpose.msra.mxu0 0.0
    %444 = vmatprep.subr.mxu0 0.0
    %445 = vmatpush2.xpose.msra.mxu0 0.0
    %446 = vmatprep.mubr.f32.mxu0 0.0
    %447 = vmatmul.mubr.f32.gmra.mxu0 %v377
    %v448 = vpop.f32.mrf.mxu0
    %v449 = vadd.f32 0.0, %v448
    %v450 = vpop.f32.mrf.mxu0
    %451 = vdwg.mxu0
    %v453 = vsel %vm375, %v192, 0
    %v456 = vsel %vm375, %v281, 0
    %458 = vmatprep.subr.mxu0 0.0
    %459 = vmatpush1.xpose.msra.mxu0 0.0
    %460 = vmatprep.subr.mxu0 0.0
    %461 = vmatpush1.xpose.msra.mxu0 0.0
    %462 = vmatprep.subr.mxu0 0.0
    %463 = vmatpush1.xpose.msra.mxu0 0.0
    %464 = vmatprep.subr.mxu0 0.0
    %465 = vmatpush1.xpose.msra.mxu0 0.0
    %466 = vmatprep.subr.mxu0 0.0
    %467 = vmatpush1.xpose.msra.mxu0 0.0
    %468 = vmatprep.subr.mxu0 0.0
    %469 = vmatpush1.xpose.msra.mxu0 0.0
    %470 = vmatprep.subr.mxu0 0.0
    %471 = vmatpush1.xpose.msra.mxu0 0.0
    %472 = vmatprep.subr.mxu0 0.0
    %473 = vmatpush1.xpose.msra.mxu0 0.0
    %474 = vmatprep.subr.mxu0 0.0
    %475 = vmatpush1.xpose.msra.mxu0 0.0
    %476 = vmatprep.subr.mxu0 0.0
    %477 = vmatpush1.xpose.msra.mxu0 0.0
    %478 = vmatprep.subr.mxu0 0.0
    %479 = vmatpush1.xpose.msra.mxu0 0.0
    %480 = vmatprep.subr.mxu0 0.0
    %481 = vmatpush1.xpose.msra.mxu0 0.0
    %482 = vmatprep.subr.mxu0 0.0
    %483 = vmatpush1.xpose.msra.mxu0 0.0
    %484 = vmatprep.subr.mxu0 0.0
    %485 = vmatpush1.xpose.msra.mxu0 0.0
    %486 = vmatprep.subr.mxu0 0.0
    %487 = vmatpush1.xpose.msra.mxu0 0.0
    %488 = vmatprep.subr.mxu0 0.0
    %489 = vmatpush1.xpose.msra.mxu0 %v456
    %490 = vmatprep.subr.mxu0 0.0
    %491 = vmatpush2.xpose.msra.mxu0 0.0
    %492 = vmatprep.subr.mxu0 0.0
    %493 = vmatpush2.xpose.msra.mxu0 0.0
    %494 = vmatprep.subr.mxu0 0.0
    %495 = vmatpush2.xpose.msra.mxu0 0.0
    %496 = vmatprep.subr.mxu0 0.0
    %497 = vmatpush2.xpose.msra.mxu0 0.0
    %498 = vmatprep.subr.mxu0 0.0
    %499 = vmatpush2.xpose.msra.mxu0 0.0
    %500 = vmatprep.subr.mxu0 0.0
    %501 = vmatpush2.xpose.msra.mxu0 0.0
    %502 = vmatprep.subr.mxu0 0.0
    %503 = vmatpush2.xpose.msra.mxu0 0.0
    %504 = vmatprep.subr.mxu0 0.0
    %505 = vmatpush2.xpose.msra.mxu0 0.0
    %506 = vmatprep.subr.mxu0 0.0
    %507 = vmatpush2.xpose.msra.mxu0 0.0
    %508 = vmatprep.subr.mxu0 0.0
    %509 = vmatpush2.xpose.msra.mxu0 0.0
    %510 = vmatprep.subr.mxu0 0.0
    %511 = vmatpush2.xpose.msra.mxu0 0.0
    %512 = vmatprep.subr.mxu0 0.0
    %513 = vmatpush2.xpose.msra.mxu0 0.0
    %514 = vmatprep.subr.mxu0 0.0
    %515 = vmatpush2.xpose.msra.mxu0 0.0
    %516 = vmatprep.subr.mxu0 0.0
    %517 = vmatpush2.xpose.msra.mxu0 0.0
    %518 = vmatprep.subr.mxu0 0.0
    %519 = vmatpush2.xpose.msra.mxu0 0.0
    %520 = vmatprep.subr.mxu0 0.0
    %521 = vmatpush2.xpose.msra.mxu0 0.0
    %522 = vmatprep.mubr.f32.mxu0 0.0
    %523 = vmatmul.mubr.f32.gmra.mxu0 %v453
    %v524 = vpop.f32.mrf.mxu0
    %v525 = vadd.f32 0.0, %v524
    %v526 = vpop.f32.mrf.mxu0
    %527 = vdwg.mxu0
    %v528 = vsel %vm99, 1, 0
    %vm529 = vcmp.eq.s32.totalorder %v528, 1
    %v530 = vsel %vm529, %v449, -inf
    %v531 = vsel %vm529, %v525, -inf
    %v532 = vsel %vm375, %v530, -inf
    %533 = vmax.xlane.f32.xlu0 %v532
    %v534 = vpop.xlane.xlu0 %533
    %v535 = vsel %vm375, %v531, -inf
    %536 = vmax.xlane.f32.xlu0 %v535
    %v537 = vpop.xlane.xlu0 %536
    %v538 = vsub.f32 %v530, %v534
    %v539 = vsub.f32 %v531, %v537
    %v540 = vmul.f32 %v538, 1.442695
    %v541 = vpow.pop %v540
    %v542 = vmul.f32 %v539, 1.442695
    %v543 = vpow.pop %v542
    %v544 = vsel %vm375, %v541, 0.0
    %545 = vadd.xlane.f32.xlu0 %v544
    %v546 = vpop.xlane.xlu0 %545
    %v547 = vsel %vm375, %v543, 0.0
    %548 = vadd.xlane.f32.xlu0 %v547
    %v549 = vpop.xlane.xlu0 %548
    %v550 = vrcp.pop %v546
    %v551 = vmul.f32 %v541, %v550
    %v552 = vrcp.pop %v549
    %v553 = vmul.f32 %v543, %v552
    %v555 = vsel %vm375, %v551, 0
    %557 = vmatprep.subr.mxu0 0.0
    %558 = vmatpush1.msra.mxu0 0.0
    %559 = vmatprep.subr.mxu0 0.0
    %560 = vmatpush1.msra.mxu0 0.0
    %561 = vmatprep.subr.mxu0 0.0
    %562 = vmatpush1.msra.mxu0 0.0
    %563 = vmatprep.subr.mxu0 0.0
    %564 = vmatpush1.msra.mxu0 0.0
    %565 = vmatprep.subr.mxu0 0.0
    %566 = vmatpush1.msra.mxu0 0.0
    %567 = vmatprep.subr.mxu0 0.0
    %568 = vmatpush1.msra.mxu0 0.0
    %569 = vmatprep.subr.mxu0 0.0
    %570 = vmatpush1.msra.mxu0 0.0
    %571 = vmatprep.subr.mxu0 0.0
    %572 = vmatpush1.msra.mxu0 0.0
    %573 = vmatprep.subr.mxu0 0.0
    %574 = vmatpush1.msra.mxu0 0.0
    %575 = vmatprep.subr.mxu0 0.0
    %576 = vmatpush1.msra.mxu0 0.0
    %577 = vmatprep.subr.mxu0 0.0
    %578 = vmatpush1.msra.mxu0 0.0
    %579 = vmatprep.subr.mxu0 0.0
    %580 = vmatpush1.msra.mxu0 0.0
    %581 = vmatprep.subr.mxu0 0.0
    %582 = vmatpush1.msra.mxu0 0.0
    %583 = vmatprep.subr.mxu0 0.0
    %584 = vmatpush1.msra.mxu0 0.0
    %585 = vmatprep.subr.mxu0 0.0
    %586 = vmatpush1.msra.mxu0 0.0
    %587 = vmatprep.subr.mxu0 0.0
    %588 = vmatpush1.msra.mxu0 %v367
    %589 = vmatprep.subr.mxu0 0.0
    %590 = vmatpush2.msra.mxu0 0.0
    %591 = vmatprep.subr.mxu0 0.0
    %592 = vmatpush2.msra.mxu0 0.0
    %593 = vmatprep.subr.mxu0 0.0
    %594 = vmatpush2.msra.mxu0 0.0
    %595 = vmatprep.subr.mxu0 0.0
    %596 = vmatpush2.msra.mxu0 0.0
    %597 = vmatprep.subr.mxu0 0.0
    %598 = vmatpush2.msra.mxu0 0.0
    %599 = vmatprep.subr.mxu0 0.0
    %600 = vmatpush2.msra.mxu0 0.0
    %601 = vmatprep.subr.mxu0 0.0
    %602 = vmatpush2.msra.mxu0 0.0
    %603 = vmatprep.subr.mxu0 0.0
    %604 = vmatpush2.msra.mxu0 0.0
    %605 = vmatprep.subr.mxu0 0.0
    %606 = vmatpush2.msra.mxu0 0.0
    %607 = vmatprep.subr.mxu0 0.0
    %608 = vmatpush2.msra.mxu0 0.0
    %609 = vmatprep.subr.mxu0 0.0
    %610 = vmatpush2.msra.mxu0 0.0
    %611 = vmatprep.subr.mxu0 0.0
    %612 = vmatpush2.msra.mxu0 0.0
    %613 = vmatprep.subr.mxu0 0.0
    %614 = vmatpush2.msra.mxu0 0.0
    %615 = vmatprep.subr.mxu0 0.0
    %616 = vmatpush2.msra.mxu0 0.0
    %617 = vmatprep.subr.mxu0 0.0
    %618 = vmatpush2.msra.mxu0 0.0
    %619 = vmatprep.subr.mxu0 0.0
    %620 = vmatpush2.msra.mxu0 0.0
    %621 = vmatprep.mubr.f32.mxu0 0.0
    %622 = vmatmul.mubr.f32.gmra.mxu0 %v555
    %v623 = vpop.f32.mrf.mxu0
    %v624 = vadd.f32 0.0, %v623
    %v625 = vpop.f32.mrf.mxu0
    %626 = vdwg.mxu0
    %v628 = vsel %vm375, %v553, 0
    %630 = vmatprep.subr.mxu0 0.0
    %631 = vmatpush1.msra.mxu0 0.0
    %632 = vmatprep.subr.mxu0 0.0
    %633 = vmatpush1.msra.mxu0 0.0
    %634 = vmatprep.subr.mxu0 0.0
    %635 = vmatpush1.msra.mxu0 0.0
    %636 = vmatprep.subr.mxu0 0.0
    %637 = vmatpush1.msra.mxu0 0.0
    %638 = vmatprep.subr.mxu0 0.0
    %639 = vmatpush1.msra.mxu0 0.0
    %640 = vmatprep.subr.mxu0 0.0
    %641 = vmatpush1.msra.mxu0 0.0
    %642 = vmatprep.subr.mxu0 0.0
    %643 = vmatpush1.msra.mxu0 0.0
    %644 = vmatprep.subr.mxu0 0.0
    %645 = vmatpush1.msra.mxu0 0.0
    %646 = vmatprep.subr.mxu0 0.0
    %647 = vmatpush1.msra.mxu0 0.0
    %648 = vmatprep.subr.mxu0 0.0
    %649 = vmatpush1.msra.mxu0 0.0
    %650 = vmatprep.subr.mxu0 0.0
    %651 = vmatpush1.msra.mxu0 0.0
    %652 = vmatprep.subr.mxu0 0.0
    %653 = vmatpush1.msra.mxu0 0.0
    %654 = vmatprep.subr.mxu0 0.0
    %655 = vmatpush1.msra.mxu0 0.0
    %656 = vmatprep.subr.mxu0 0.0
    %657 = vmatpush1.msra.mxu0 0.0
    %658 = vmatprep.subr.mxu0 0.0
    %659 = vmatpush1.msra.mxu0 0.0
    %660 = vmatprep.subr.mxu0 0.0
    %661 = vmatpush1.msra.mxu0 %v372
    %662 = vmatprep.subr.mxu0 0.0
    %663 = vmatpush2.msra.mxu0 0.0
    %664 = vmatprep.subr.mxu0 0.0
    %665 = vmatpush2.msra.mxu0 0.0
    %666 = vmatprep.subr.mxu0 0.0
    %667 = vmatpush2.msra.mxu0 0.0
    %668 = vmatprep.subr.mxu0 0.0
    %669 = vmatpush2.msra.mxu0 0.0
    %670 = vmatprep.subr.mxu0 0.0
    %671 = vmatpush2.msra.mxu0 0.0
    %672 = vmatprep.subr.mxu0 0.0
    %673 = vmatpush2.msra.mxu0 0.0
    %674 = vmatprep.subr.mxu0 0.0
    %675 = vmatpush2.msra.mxu0 0.0
    %676 = vmatprep.subr.mxu0 0.0
    %677 = vmatpush2.msra.mxu0 0.0
    %678 = vmatprep.subr.mxu0 0.0
    %679 = vmatpush2.msra.mxu0 0.0
    %680 = vmatprep.subr.mxu0 0.0
    %681 = vmatpush2.msra.mxu0 0.0
    %682 = vmatprep.subr.mxu0 0.0
    %683 = vmatpush2.msra.mxu0 0.0
    %684 = vmatprep.subr.mxu0 0.0
    %685 = vmatpush2.msra.mxu0 0.0
    %686 = vmatprep.subr.mxu0 0.0
    %687 = vmatpush2.msra.mxu0 0.0
    %688 = vmatprep.subr.mxu0 0.0
    %689 = vmatpush2.msra.mxu0 0.0
    %690 = vmatprep.subr.mxu0 0.0
    %691 = vmatpush2.msra.mxu0 0.0
    %692 = vmatprep.subr.mxu0 0.0
    %693 = vmatpush2.msra.mxu0 0.0
    %694 = vmatprep.mubr.f32.mxu0 0.0
    %695 = vmatmul.mubr.f32.gmra.mxu0 %v628
    %v696 = vpop.f32.mrf.mxu0
    %v697 = vadd.f32 0.0, %v696
    %v698 = vpop.f32.mrf.mxu0
    %699 = vdwg.mxu0
    %v700 = vld [vmem:[%s4] sm:$0xff]
    %s701 = scalar_lea.vmem %s1, 128
    %v702 = vld [vmem:[%s701] sm:$0xff]
    %v703 = vld [vmem:[%s701 + $0x8] sm:$0xff]
    %v704 = vld [vmem:[%s701 + $0x10] sm:$0xff]
    %v705 = vld [vmem:[%s701 + $0x18] sm:$0xff]
    %v706 = vld [vmem:[%s701 + $0x20] sm:$0xff]
    %v707 = vld [vmem:[%s701 + $0x28] sm:$0xff]
    %v708 = vld [vmem:[%s701 + $0x30] sm:$0xff]
    %v709 = vld [vmem:[%s701 + $0x38] sm:$0xff]
    %v710 = vld [vmem:[%s701 + $0x40] sm:$0xff]
    %v711 = vld [vmem:[%s701 + $0x48] sm:$0xff]
    %v712 = vld [vmem:[%s701 + $0x50] sm:$0xff]
    %v713 = vld [vmem:[%s701 + $0x58] sm:$0xff]
    %v714 = vld [vmem:[%s701 + $0x60] sm:$0xff]
    %v715 = vld [vmem:[%s701 + $0x68] sm:$0xff]
    %v716 = vld [vmem:[%s701 + $0x70] sm:$0xff]
    %v717 = vld [vmem:[%s701 + $0x78] sm:$0xff]
    %718 = vmatprep.subr.mxu0 0.0
    %719 = vmatpush1.msra.mxu0 %v717
    %720 = vmatprep.subr.mxu0 0.0
    %721 = vmatpush1.msra.mxu0 %v716
    %722 = vmatprep.subr.mxu0 0.0
    %723 = vmatpush1.msra.mxu0 %v715
    %724 = vmatprep.subr.mxu0 0.0
    %725 = vmatpush1.msra.mxu0 %v714
    %726 = vmatprep.subr.mxu0 0.0
    %727 = vmatpush1.msra.mxu0 %v713
    %728 = vmatprep.subr.mxu0 0.0
    %729 = vmatpush1.msra.mxu0 %v712
    %730 = vmatprep.subr.mxu0 0.0
    %731 = vmatpush1.msra.mxu0 %v711
    %732 = vmatprep.subr.mxu0 0.0
    %733 = vmatpush1.msra.mxu0 %v710
    %734 = vmatprep.subr.mxu0 0.0
    %735 = vmatpush1.msra.mxu0 %v709
    %736 = vmatprep.subr.mxu0 0.0
    %737 = vmatpush1.msra.mxu0 %v708
    %738 = vmatprep.subr.mxu0 0.0
    %739 = vmatpush1.msra.mxu0 %v707
    %740 = vmatprep.subr.mxu0 0.0
    %741 = vmatpush1.msra.mxu0 %v706
    %742 = vmatprep.subr.mxu0 0.0
    %743 = vmatpush1.msra.mxu0 %v705
    %744 = vmatprep.subr.mxu0 0.0
    %745 = vmatpush1.msra.mxu0 %v704
    %746 = vmatprep.subr.mxu0 0.0
    %747 = vmatpush1.msra.mxu0 %v703
    %748 = vmatprep.subr.mxu0 0.0
    %749 = vmatpush1.msra.mxu0 %v702
    %750 = vmatprep.subr.mxu0 0.0
    %751 = vmatpush2.msra.mxu0 0.0
    %752 = vmatprep.subr.mxu0 0.0
    %753 = vmatpush2.msra.mxu0 0.0
    %754 = vmatprep.subr.mxu0 0.0
    %755 = vmatpush2.msra.mxu0 0.0
    %756 = vmatprep.subr.mxu0 0.0
    %757 = vmatpush2.msra.mxu0 0.0
    %758 = vmatprep.subr.mxu0 0.0
    %759 = vmatpush2.msra.mxu0 0.0
    %760 = vmatprep.subr.mxu0 0.0
    %761 = vmatpush2.msra.mxu0 0.0
    %762 = vmatprep.subr.mxu0 0.0
    %763 = vmatpush2.msra.mxu0 0.0
    %764 = vmatprep.subr.mxu0 0.0
    %765 = vmatpush2.msra.mxu0 0.0
    %766 = vmatprep.subr.mxu0 0.0
    %767 = vmatpush2.msra.mxu0 0.0
    %768 = vmatprep.subr.mxu0 0.0
    %769 = vmatpush2.msra.mxu0 0.0
    %770 = vmatprep.subr.mxu0 0.0
    %771 = vmatpush2.msra.mxu0 0.0
    %772 = vmatprep.subr.mxu0 0.0
    %773 = vmatpush2.msra.mxu0 0.0
    %774 = vmatprep.subr.mxu0 0.0
    %775 = vmatpush2.msra.mxu0 0.0
    %776 = vmatprep.subr.mxu0 0.0
    %777 = vmatpush2.msra.mxu0 0.0
    %778 = vmatprep.subr.mxu0 0.0
    %779 = vmatpush2.msra.mxu0 0.0
    %780 = vmatprep.subr.mxu0 0.0
    %781 = vmatpush2.msra.mxu0 0.0
    %782 = vmatprep.mubr.f32.mxu0 0.0
    %783 = vmatmul.mubr.f32.gmra.mxu0 %v95
    %v784 = vpop.f32.mrf.mxu0
    %v785 = vadd.f32 0.0, %v784
    %v786 = vpop.f32.mrf.mxu0
    %787 = vmatprep.mubr.f32.mxu0 0.0
    %788 = vmatmul.mubr.f32.gmra.mxu0 %v96
    %v789 = vpop.f32.mrf.mxu0
    %v790 = vadd.f32 0.0, %v789
    %v791 = vpop.f32.mrf.mxu0
    %792 = vdwg.mxu0
    %v793 = vmul.f32 %v785, 0.17677669
    %v794 = vmul.f32 %v790, 0.17677669
    %s795 = scalar_lea.vmem %s2, 128
    %v796 = vld [vmem:[%s795] sm:$0xff]
    %v797 = vld [vmem:[%s795 + $0x8] sm:$0xff]
    %v798 = vld [vmem:[%s795 + $0x10] sm:$0xff]
    %v799 = vld [vmem:[%s795 + $0x18] sm:$0xff]
    %v800 = vld [vmem:[%s795 + $0x20] sm:$0xff]
    %v801 = vld [vmem:[%s795 + $0x28] sm:$0xff]
    %v802 = vld [vmem:[%s795 + $0x30] sm:$0xff]
    %v803 = vld [vmem:[%s795 + $0x38] sm:$0xff]
    %v804 = vld [vmem:[%s795 + $0x40] sm:$0xff]
    %v805 = vld [vmem:[%s795 + $0x48] sm:$0xff]
    %v806 = vld [vmem:[%s795 + $0x50] sm:$0xff]
    %v807 = vld [vmem:[%s795 + $0x58] sm:$0xff]
    %v808 = vld [vmem:[%s795 + $0x60] sm:$0xff]
    %v809 = vld [vmem:[%s795 + $0x68] sm:$0xff]
    %v810 = vld [vmem:[%s795 + $0x70] sm:$0xff]
    %v811 = vld [vmem:[%s795 + $0x78] sm:$0xff]
    %812 = vmatprep.subr.mxu0 0.0
    %813 = vmatpush1.msra.mxu0 %v811
    %814 = vmatprep.subr.mxu0 0.0
    %815 = vmatpush1.msra.mxu0 %v810
    %816 = vmatprep.subr.mxu0 0.0
    %817 = vmatpush1.msra.mxu0 %v809
    %818 = vmatprep.subr.mxu0 0.0
    %819 = vmatpush1.msra.mxu0 %v808
    %820 = vmatprep.subr.mxu0 0.0
    %821 = vmatpush1.msra.mxu0 %v807
    %822 = vmatprep.subr.mxu0 0.0
    %823 = vmatpush1.msra.mxu0 %v806
    %824 = vmatprep.subr.mxu0 0.0
    %825 = vmatpush1.msra.mxu0 %v805
    %826 = vmatprep.subr.mxu0 0.0
    %827 = vmatpush1.msra.mxu0 %v804
    %828 = vmatprep.subr.mxu0 0.0
    %829 = vmatpush1.msra.mxu0 %v803
    %830 = vmatprep.subr.mxu0 0.0
    %831 = vmatpush1.msra.mxu0 %v802
    %832 = vmatprep.subr.mxu0 0.0
    %833 = vmatpush1.msra.mxu0 %v801
    %834 = vmatprep.subr.mxu0 0.0
    %835 = vmatpush1.msra.mxu0 %v800
    %836 = vmatprep.subr.mxu0 0.0
    %837 = vmatpush1.msra.mxu0 %v799
    %838 = vmatprep.subr.mxu0 0.0
    %839 = vmatpush1.msra.mxu0 %v798
    %840 = vmatprep.subr.mxu0 0.0
    %841 = vmatpush1.msra.mxu0 %v797
    %842 = vmatprep.subr.mxu0 0.0
    %843 = vmatpush1.msra.mxu0 %v796
    %844 = vmatprep.subr.mxu0 0.0
    %845 = vmatpush2.msra.mxu0 0.0
    %846 = vmatprep.subr.mxu0 0.0
    %847 = vmatpush2.msra.mxu0 0.0
    %848 = vmatprep.subr.mxu0 0.0
    %849 = vmatpush2.msra.mxu0 0.0
    %850 = vmatprep.subr.mxu0 0.0
    %851 = vmatpush2.msra.mxu0 0.0
    %852 = vmatprep.subr.mxu0 0.0
    %853 = vmatpush2.msra.mxu0 0.0
    %854 = vmatprep.subr.mxu0 0.0
    %855 = vmatpush2.msra.mxu0 0.0
    %856 = vmatprep.subr.mxu0 0.0
    %857 = vmatpush2.msra.mxu0 0.0
    %858 = vmatprep.subr.mxu0 0.0
    %859 = vmatpush2.msra.mxu0 0.0
    %860 = vmatprep.subr.mxu0 0.0
    %861 = vmatpush2.msra.mxu0 0.0
    %862 = vmatprep.subr.mxu0 0.0
    %863 = vmatpush2.msra.mxu0 0.0
    %864 = vmatprep.subr.mxu0 0.0
    %865 = vmatpush2.msra.mxu0 0.0
    %866 = vmatprep.subr.mxu0 0.0
    %867 = vmatpush2.msra.mxu0 0.0
    %868 = vmatprep.subr.mxu0 0.0
    %869 = vmatpush2.msra.mxu0 0.0
    %870 = vmatprep.subr.mxu0 0.0
    %871 = vmatpush2.msra.mxu0 0.0
    %872 = vmatprep.subr.mxu0 0.0
    %873 = vmatpush2.msra.mxu0 0.0
    %874 = vmatprep.subr.mxu0 0.0
    %875 = vmatpush2.msra.mxu0 0.0
    %876 = vmatprep.mubr.f32.mxu0 0.0
    %877 = vmatmul.mubr.f32.gmra.mxu0 %v95
    %v878 = vpop.f32.mrf.mxu0
    %v879 = vadd.f32 0.0, %v878
    %v880 = vpop.f32.mrf.mxu0
    %881 = vmatprep.mubr.f32.mxu0 0.0
    %882 = vmatmul.mubr.f32.gmra.mxu0 %v96
    %v883 = vpop.f32.mrf.mxu0
    %v884 = vadd.f32 0.0, %v883
    %v885 = vpop.f32.mrf.mxu0
    %886 = vdwg.mxu0
    %s887 = scalar_lea.vmem %s3, 128
    %v888 = vld [vmem:[%s887] sm:$0xff]
    %v889 = vld [vmem:[%s887 + $0x8] sm:$0xff]
    %v890 = vld [vmem:[%s887 + $0x10] sm:$0xff]
    %v891 = vld [vmem:[%s887 + $0x18] sm:$0xff]
    %v892 = vld [vmem:[%s887 + $0x20] sm:$0xff]
    %v893 = vld [vmem:[%s887 + $0x28] sm:$0xff]
    %v894 = vld [vmem:[%s887 + $0x30] sm:$0xff]
    %v895 = vld [vmem:[%s887 + $0x38] sm:$0xff]
    %v896 = vld [vmem:[%s887 + $0x40] sm:$0xff]
    %v897 = vld [vmem:[%s887 + $0x48] sm:$0xff]
    %v898 = vld [vmem:[%s887 + $0x50] sm:$0xff]
    %v899 = vld [vmem:[%s887 + $0x58] sm:$0xff]
    %v900 = vld [vmem:[%s887 + $0x60] sm:$0xff]
    %v901 = vld [vmem:[%s887 + $0x68] sm:$0xff]
    %v902 = vld [vmem:[%s887 + $0x70] sm:$0xff]
    %v903 = vld [vmem:[%s887 + $0x78] sm:$0xff]
    %904 = vmatprep.subr.mxu0 0.0
    %905 = vmatpush1.msra.mxu0 %v903
    %906 = vmatprep.subr.mxu0 0.0
    %907 = vmatpush1.msra.mxu0 %v902
    %908 = vmatprep.subr.mxu0 0.0
    %909 = vmatpush1.msra.mxu0 %v901
    %910 = vmatprep.subr.mxu0 0.0
    %911 = vmatpush1.msra.mxu0 %v900
    %912 = vmatprep.subr.mxu0 0.0
    %913 = vmatpush1.msra.mxu0 %v899
    %914 = vmatprep.subr.mxu0 0.0
    %915 = vmatpush1.msra.mxu0 %v898
    %916 = vmatprep.subr.mxu0 0.0
    %917 = vmatpush1.msra.mxu0 %v897
    %918 = vmatprep.subr.mxu0 0.0
    %919 = vmatpush1.msra.mxu0 %v896
    %920 = vmatprep.subr.mxu0 0.0
    %921 = vmatpush1.msra.mxu0 %v895
    %922 = vmatprep.subr.mxu0 0.0
    %923 = vmatpush1.msra.mxu0 %v894
    %924 = vmatprep.subr.mxu0 0.0
    %925 = vmatpush1.msra.mxu0 %v893
    %926 = vmatprep.subr.mxu0 0.0
    %927 = vmatpush1.msra.mxu0 %v892
    %928 = vmatprep.subr.mxu0 0.0
    %929 = vmatpush1.msra.mxu0 %v891
    %930 = vmatprep.subr.mxu0 0.0
    %931 = vmatpush1.msra.mxu0 %v890
    %932 = vmatprep.subr.mxu0 0.0
    %933 = vmatpush1.msra.mxu0 %v889
    %934 = vmatprep.subr.mxu0 0.0
    %935 = vmatpush1.msra.mxu0 %v888
    %936 = vmatprep.subr.mxu0 0.0
    %937 = vmatpush2.msra.mxu0 0.0
    %938 = vmatprep.subr.mxu0 0.0
    %939 = vmatpush2.msra.mxu0 0.0
    %940 = vmatprep.subr.mxu0 0.0
    %941 = vmatpush2.msra.mxu0 0.0
    %942 = vmatprep.subr.mxu0 0.0
    %943 = vmatpush2.msra.mxu0 0.0
    %944 = vmatprep.subr.mxu0 0.0
    %945 = vmatpush2.msra.mxu0 0.0
    %946 = vmatprep.subr.mxu0 0.0
    %947 = vmatpush2.msra.mxu0 0.0
    %948 = vmatprep.subr.mxu0 0.0
    %949 = vmatpush2.msra.mxu0 0.0
    %950 = vmatprep.subr.mxu0 0.0
    %951 = vmatpush2.msra.mxu0 0.0
    %952 = vmatprep.subr.mxu0 0.0
    %953 = vmatpush2.msra.mxu0 0.0
    %954 = vmatprep.subr.mxu0 0.0
    %955 = vmatpush2.msra.mxu0 0.0
    %956 = vmatprep.subr.mxu0 0.0
    %957 = vmatpush2.msra.mxu0 0.0
    %958 = vmatprep.subr.mxu0 0.0
    %959 = vmatpush2.msra.mxu0 0.0
    %960 = vmatprep.subr.mxu0 0.0
    %961 = vmatpush2.msra.mxu0 0.0
    %962 = vmatprep.subr.mxu0 0.0
    %963 = vmatpush2.msra.mxu0 0.0
    %964 = vmatprep.subr.mxu0 0.0
    %965 = vmatpush2.msra.mxu0 0.0
    %966 = vmatprep.subr.mxu0 0.0
    %967 = vmatpush2.msra.mxu0 0.0
    %968 = vmatprep.mubr.f32.mxu0 0.0
    %969 = vmatmul.mubr.f32.gmra.mxu0 %v95
    %v970 = vpop.f32.mrf.mxu0
    %v971 = vadd.f32 0.0, %v970
    %v972 = vpop.f32.mrf.mxu0
    %973 = vmatprep.mubr.f32.mxu0 0.0
    %974 = vmatmul.mubr.f32.gmra.mxu0 %v96
    %v975 = vpop.f32.mrf.mxu0
    %v976 = vadd.f32 0.0, %v975
    %v977 = vpop.f32.mrf.mxu0
    %978 = vdwg.mxu0
    %v980 = vsel %vm375, %v793, 0
    %v983 = vsel %vm375, %v879, 0
    %985 = vmatprep.subr.mxu0 0.0
    %986 = vmatpush1.xpose.msra.mxu0 0.0
    %987 = vmatprep.subr.mxu0 0.0
    %988 = vmatpush1.xpose.msra.mxu0 0.0
    %989 = vmatprep.subr.mxu0 0.0
    %990 = vmatpush1.xpose.msra.mxu0 0.0
    %991 = vmatprep.subr.mxu0 0.0
    %992 = vmatpush1.xpose.msra.mxu0 0.0
    %993 = vmatprep.subr.mxu0 0.0
    %994 = vmatpush1.xpose.msra.mxu0 0.0
    %995 = vmatprep.subr.mxu0 0.0
    %996 = vmatpush1.xpose.msra.mxu0 0.0
    %997 = vmatprep.subr.mxu0 0.0
    %998 = vmatpush1.xpose.msra.mxu0 0.0
    %999 = vmatprep.subr.mxu0 0.0
    %1000 = vmatpush1.xpose.msra.mxu0 0.0
    %1001 = vmatprep.subr.mxu0 0.0
    %1002 = vmatpush1.xpose.msra.mxu0 0.0
    %1003 = vmatprep.subr.mxu0 0.0
    %1004 = vmatpush1.xpose.msra.mxu0 0.0
    %1005 = vmatprep.subr.mxu0 0.0
    %1006 = vmatpush1.xpose.msra.mxu0 0.0
    %1007 = vmatprep.subr.mxu0 0.0
    %1008 = vmatpush1.xpose.msra.mxu0 0.0
    %1009 = vmatprep.subr.mxu0 0.0
    %1010 = vmatpush1.xpose.msra.mxu0 0.0
    %1011 = vmatprep.subr.mxu0 0.0
    %1012 = vmatpush1.xpose.msra.mxu0 0.0
    %1013 = vmatprep.subr.mxu0 0.0
    %1014 = vmatpush1.xpose.msra.mxu0 0.0
    %1015 = vmatprep.subr.mxu0 0.0
    %1016 = vmatpush1.xpose.msra.mxu0 %v983
    %1017 = vmatprep.subr.mxu0 0.0
    %1018 = vmatpush2.xpose.msra.mxu0 0.0
    %1019 = vmatprep.subr.mxu0 0.0
    %1020 = vmatpush2.xpose.msra.mxu0 0.0
    %1021 = vmatprep.subr.mxu0 0.0
    %1022 = vmatpush2.xpose.msra.mxu0 0.0
    %1023 = vmatprep.subr.mxu0 0.0
    %1024 = vmatpush2.xpose.msra.mxu0 0.0
    %1025 = vmatprep.subr.mxu0 0.0
    %1026 = vmatpush2.xpose.msra.mxu0 0.0
    %1027 = vmatprep.subr.mxu0 0.0
    %1028 = vmatpush2.xpose.msra.mxu0 0.0
    %1029 = vmatprep.subr.mxu0 0.0
    %1030 = vmatpush2.xpose.msra.mxu0 0.0
    %1031 = vmatprep.subr.mxu0 0.0
    %1032 = vmatpush2.xpose.msra.mxu0 0.0
    %1033 = vmatprep.subr.mxu0 0.0
    %1034 = vmatpush2.xpose.msra.mxu0 0.0
    %1035 = vmatprep.subr.mxu0 0.0
    %1036 = vmatpush2.xpose.msra.mxu0 0.0
    %1037 = vmatprep.subr.mxu0 0.0
    %1038 = vmatpush2.xpose.msra.mxu0 0.0
    %1039 = vmatprep.subr.mxu0 0.0
    %1040 = vmatpush2.xpose.msra.mxu0 0.0
    %1041 = vmatprep.subr.mxu0 0.0
    %1042 = vmatpush2.xpose.msra.mxu0 0.0
    %1043 = vmatprep.subr.mxu0 0.0
    %1044 = vmatpush2.xpose.msra.mxu0 0.0
    %1045 = vmatprep.subr.mxu0 0.0
    %1046 = vmatpush2.xpose.msra.mxu0 0.0
    %1047 = vmatprep.subr.mxu0 0.0
    %1048 = vmatpush2.xpose.msra.mxu0 0.0
    %1049 = vmatprep.mubr.f32.mxu0 0.0
    %1050 = vmatmul.mubr.f32.gmra.mxu0 %v980
    %v1051 = vpop.f32.mrf.mxu0
    %v1052 = vadd.f32 0.0, %v1051
    %v1053 = vpop.f32.mrf.mxu0
    %1054 = vdwg.mxu0
    %v1056 = vsel %vm375, %v794, 0
    %v1059 = vsel %vm375, %v884, 0
    %1061 = vmatprep.subr.mxu0 0.0
    %1062 = vmatpush1.xpose.msra.mxu0 0.0
    %1063 = vmatprep.subr.mxu0 0.0
    %1064 = vmatpush1.xpose.msra.mxu0 0.0
    %1065 = vmatprep.subr.mxu0 0.0
    %1066 = vmatpush1.xpose.msra.mxu0 0.0
    %1067 = vmatprep.subr.mxu0 0.0
    %1068 = vmatpush1.xpose.msra.mxu0 0.0
    %1069 = vmatprep.subr.mxu0 0.0
    %1070 = vmatpush1.xpose.msra.mxu0 0.0
    %1071 = vmatprep.subr.mxu0 0.0
    %1072 = vmatpush1.xpose.msra.mxu0 0.0
    %1073 = vmatprep.subr.mxu0 0.0
    %1074 = vmatpush1.xpose.msra.mxu0 0.0
    %1075 = vmatprep.subr.mxu0 0.0
    %1076 = vmatpush1.xpose.msra.mxu0 0.0
    %1077 = vmatprep.subr.mxu0 0.0
    %1078 = vmatpush1.xpose.msra.mxu0 0.0
    %1079 = vmatprep.subr.mxu0 0.0
    %1080 = vmatpush1.xpose.msra.mxu0 0.0
    %1081 = vmatprep.subr.mxu0 0.0
    %1082 = vmatpush1.xpose.msra.mxu0 0.0
    %1083 = vmatprep.subr.mxu0 0.0
    %1084 = vmatpush1.xpose.msra.mxu0 0.0
    %1085 = vmatprep.subr.mxu0 0.0
    %1086 = vmatpush1.xpose.msra.mxu0 0.0
    %1087 = vmatprep.subr.mxu0 0.0
    %1088 = vmatpush1.xpose.msra.mxu0 0.0
    %1089 = vmatprep.subr.mxu0 0.0
    %1090 = vmatpush1.xpose.msra.mxu0 0.0
    %1091 = vmatprep.subr.mxu0 0.0
    %1092 = vmatpush1.xpose.msra.mxu0 %v1059
    %1093 = vmatprep.subr.mxu0 0.0
    %1094 = vmatpush2.xpose.msra.mxu0 0.0
    %1095 = vmatprep.subr.mxu0 0.0
    %1096 = vmatpush2.xpose.msra.mxu0 0.0
    %1097 = vmatprep.subr.mxu0 0.0
    %1098 = vmatpush2.xpose.msra.mxu0 0.0
    %1099 = vmatprep.subr.mxu0 0.0
    %1100 = vmatpush2.xpose.msra.mxu0 0.0
    %1101 = vmatprep.subr.mxu0 0.0
    %1102 = vmatpush2.xpose.msra.mxu0 0.0
    %1103 = vmatprep.subr.mxu0 0.0
    %1104 = vmatpush2.xpose.msra.mxu0 0.0
    %1105 = vmatprep.subr.mxu0 0.0
    %1106 = vmatpush2.xpose.msra.mxu0 0.0
    %1107 = vmatprep.subr.mxu0 0.0
    %1108 = vmatpush2.xpose.msra.mxu0 0.0
    %1109 = vmatprep.subr.mxu0 0.0
    %1110 = vmatpush2.xpose.msra.mxu0 0.0
    %1111 = vmatprep.subr.mxu0 0.0
    %1112 = vmatpush2.xpose.msra.mxu0 0.0
    %1113 = vmatprep.subr.mxu0 0.0
    %1114 = vmatpush2.xpose.msra.mxu0 0.0
    %1115 = vmatprep.subr.mxu0 0.0
    %1116 = vmatpush2.xpose.msra.mxu0 0.0
    %1117 = vmatprep.subr.mxu0 0.0
    %1118 = vmatpush2.xpose.msra.mxu0 0.0
    %1119 = vmatprep.subr.mxu0 0.0
    %1120 = vmatpush2.xpose.msra.mxu0 0.0
    %1121 = vmatprep.subr.mxu0 0.0
    %1122 = vmatpush2.xpose.msra.mxu0 0.0
    %1123 = vmatprep.subr.mxu0 0.0
    %1124 = vmatpush2.xpose.msra.mxu0 0.0
    %1125 = vmatprep.mubr.f32.mxu0 0.0
    %1126 = vmatmul.mubr.f32.gmra.mxu0 %v1056
    %v1127 = vpop.f32.mrf.mxu0
    %v1128 = vadd.f32 0.0, %v1127
    %v1129 = vpop.f32.mrf.mxu0
    %1130 = vdwg.mxu0
    %v1131 = vsel %vm529, %v1052, -inf
    %v1132 = vsel %vm529, %v1128, -inf
    %v1133 = vsel %vm375, %v1131, -inf
    %1134 = vmax.xlane.f32.xlu0 %v1133
    %v1135 = vpop.xlane.xlu0 %1134
    %v1136 = vsel %vm375, %v1132, -inf
    %1137 = vmax.xlane.f32.xlu0 %v1136
    %v1138 = vpop.xlane.xlu0 %1137
    %v1139 = vsub.f32 %v1131, %v1135
    %v1140 = vsub.f32 %v1132, %v1138
    %v1141 = vmul.f32 %v1139, 1.442695
    %v1142 = vpow.pop %v1141
    %v1143 = vmul.f32 %v1140, 1.442695
    %v1144 = vpow.pop %v1143
    %v1145 = vsel %vm375, %v1142, 0.0
    %1146 = vadd.xlane.f32.xlu0 %v1145
    %v1147 = vpop.xlane.xlu0 %1146
    %v1148 = vsel %vm375, %v1144, 0.0
    %1149 = vadd.xlane.f32.xlu0 %v1148
    %v1150 = vpop.xlane.xlu0 %1149
    %v1151 = vrcp.pop %v1147
    %v1152 = vmul.f32 %v1142, %v1151
    %v1153 = vrcp.pop %v1150
    %v1154 = vmul.f32 %v1144, %v1153
    %v1156 = vsel %vm375, %v1152, 0
    %1158 = vmatprep.subr.mxu0 0.0
    %1159 = vmatpush1.msra.mxu0 0.0
    %1160 = vmatprep.subr.mxu0 0.0
    %1161 = vmatpush1.msra.mxu0 0.0
    %1162 = vmatprep.subr.mxu0 0.0
    %1163 = vmatpush1.msra.mxu0 0.0
    %1164 = vmatprep.subr.mxu0 0.0
    %1165 = vmatpush1.msra.mxu0 0.0
    %1166 = vmatprep.subr.mxu0 0.0
    %1167 = vmatpush1.msra.mxu0 0.0
    %1168 = vmatprep.subr.mxu0 0.0
    %1169 = vmatpush1.msra.mxu0 0.0
    %1170 = vmatprep.subr.mxu0 0.0
    %1171 = vmatpush1.msra.mxu0 0.0
    %1172 = vmatprep.subr.mxu0 0.0
    %1173 = vmatpush1.msra.mxu0 0.0
    %1174 = vmatprep.subr.mxu0 0.0
    %1175 = vmatpush1.msra.mxu0 0.0
    %1176 = vmatprep.subr.mxu0 0.0
    %1177 = vmatpush1.msra.mxu0 0.0
    %1178 = vmatprep.subr.mxu0 0.0
    %1179 = vmatpush1.msra.mxu0 0.0
    %1180 = vmatprep.subr.mxu0 0.0
    %1181 = vmatpush1.msra.mxu0 0.0
    %1182 = vmatprep.subr.mxu0 0.0
    %1183 = vmatpush1.msra.mxu0 0.0
    %1184 = vmatprep.subr.mxu0 0.0
    %1185 = vmatpush1.msra.mxu0 0.0
    %1186 = vmatprep.subr.mxu0 0.0
    %1187 = vmatpush1.msra.mxu0 0.0
    %1188 = vmatprep.subr.mxu0 0.0
    %1189 = vmatpush1.msra.mxu0 %v971
    %1190 = vmatprep.subr.mxu0 0.0
    %1191 = vmatpush2.msra.mxu0 0.0
    %1192 = vmatprep.subr.mxu0 0.0
    %1193 = vmatpush2.msra.mxu0 0.0
    %1194 = vmatprep.subr.mxu0 0.0
    %1195 = vmatpush2.msra.mxu0 0.0
    %1196 = vmatprep.subr.mxu0 0.0
    %1197 = vmatpush2.msra.mxu0 0.0
    %1198 = vmatprep.subr.mxu0 0.0
    %1199 = vmatpush2.msra.mxu0 0.0
    %1200 = vmatprep.subr.mxu0 0.0
    %1201 = vmatpush2.msra.mxu0 0.0
    %1202 = vmatprep.subr.mxu0 0.0
    %1203 = vmatpush2.msra.mxu0 0.0
    %1204 = vmatprep.subr.mxu0 0.0
    %1205 = vmatpush2.msra.mxu0 0.0
    %1206 = vmatprep.subr.mxu0 0.0
    %1207 = vmatpush2.msra.mxu0 0.0
    %1208 = vmatprep.subr.mxu0 0.0
    %1209 = vmatpush2.msra.mxu0 0.0
    %1210 = vmatprep.subr.mxu0 0.0
    %1211 = vmatpush2.msra.mxu0 0.0
    %1212 = vmatprep.subr.mxu0 0.0
    %1213 = vmatpush2.msra.mxu0 0.0
    %1214 = vmatprep.subr.mxu0 0.0
    %1215 = vmatpush2.msra.mxu0 0.0
    %1216 = vmatprep.subr.mxu0 0.0
    %1217 = vmatpush2.msra.mxu0 0.0
    %1218 = vmatprep.subr.mxu0 0.0
    %1219 = vmatpush2.msra.mxu0 0.0
    %1220 = vmatprep.subr.mxu0 0.0
    %1221 = vmatpush2.msra.mxu0 0.0
    %1222 = vmatprep.mubr.f32.mxu0 0.0
    %1223 = vmatmul.mubr.f32.gmra.mxu0 %v1156
    %v1224 = vpop.f32.mrf.mxu0
    %v1225 = vadd.f32 0.0, %v1224
    %v1226 = vpop.f32.mrf.mxu0
    %1227 = vdwg.mxu0
    %v1229 = vsel %vm375, %v1154, 0
    %1231 = vmatprep.subr.mxu0 0.0
    %1232 = vmatpush1.msra.mxu0 0.0
    %1233 = vmatprep.subr.mxu0 0.0
    %1234 = vmatpush1.msra.mxu0 0.0
    %1235 = vmatprep.subr.mxu0 0.0
    %1236 = vmatpush1.msra.mxu0 0.0
    %1237 = vmatprep.subr.mxu0 0.0
    %1238 = vmatpush1.msra.mxu0 0.0
    %1239 = vmatprep.subr.mxu0 0.0
    %1240 = vmatpush1.msra.mxu0 0.0
    %1241 = vmatprep.subr.mxu0 0.0
    %1242 = vmatpush1.msra.mxu0 0.0
    %1243 = vmatprep.subr.mxu0 0.0
    %1244 = vmatpush1.msra.mxu0 0.0
    %1245 = vmatprep.subr.mxu0 0.0
    %1246 = vmatpush1.msra.mxu0 0.0
    %1247 = vmatprep.subr.mxu0 0.0
    %1248 = vmatpush1.msra.mxu0 0.0
    %1249 = vmatprep.subr.mxu0 0.0
    %1250 = vmatpush1.msra.mxu0 0.0
    %1251 = vmatprep.subr.mxu0 0.0
    %1252 = vmatpush1.msra.mxu0 0.0
    %1253 = vmatprep.subr.mxu0 0.0
    %1254 = vmatpush1.msra.mxu0 0.0
    %1255 = vmatprep.subr.mxu0 0.0
    %1256 = vmatpush1.msra.mxu0 0.0
    %1257 = vmatprep.subr.mxu0 0.0
    %1258 = vmatpush1.msra.mxu0 0.0
    %1259 = vmatprep.subr.mxu0 0.0
    %1260 = vmatpush1.msra.mxu0 0.0
    %1261 = vmatprep.subr.mxu0 0.0
    %1262 = vmatpush1.msra.mxu0 %v976
    %1263 = vmatprep.subr.mxu0 0.0
    %1264 = vmatpush2.msra.mxu0 0.0
    %1265 = vmatprep.subr.mxu0 0.0
    %1266 = vmatpush2.msra.mxu0 0.0
    %1267 = vmatprep.subr.mxu0 0.0
    %1268 = vmatpush2.msra.mxu0 0.0
    %1269 = vmatprep.subr.mxu0 0.0
    %1270 = vmatpush2.msra.mxu0 0.0
    %1271 = vmatprep.subr.mxu0 0.0
    %1272 = vmatpush2.msra.mxu0 0.0
    %1273 = vmatprep.subr.mxu0 0.0
    %1274 = vmatpush2.msra.mxu0 0.0
    %1275 = vmatprep.subr.mxu0 0.0
    %1276 = vmatpush2.msra.mxu0 0.0
    %1277 = vmatprep.subr.mxu0 0.0
    %1278 = vmatpush2.msra.mxu0 0.0
    %1279 = vmatprep.subr.mxu0 0.0
    %1280 = vmatpush2.msra.mxu0 0.0
    %1281 = vmatprep.subr.mxu0 0.0
    %1282 = vmatpush2.msra.mxu0 0.0
    %1283 = vmatprep.subr.mxu0 0.0
    %1284 = vmatpush2.msra.mxu0 0.0
    %1285 = vmatprep.subr.mxu0 0.0
    %1286 = vmatpush2.msra.mxu0 0.0
    %1287 = vmatprep.subr.mxu0 0.0
    %1288 = vmatpush2.msra.mxu0 0.0
    %1289 = vmatprep.subr.mxu0 0.0
    %1290 = vmatpush2.msra.mxu0 0.0
    %1291 = vmatprep.subr.mxu0 0.0
    %1292 = vmatpush2.msra.mxu0 0.0
    %1293 = vmatprep.subr.mxu0 0.0
    %1294 = vmatpush2.msra.mxu0 0.0
    %1295 = vmatprep.mubr.f32.mxu0 0.0
    %1296 = vmatmul.mubr.f32.gmra.mxu0 %v1229
    %v1297 = vpop.f32.mrf.mxu0
    %v1298 = vadd.f32 0.0, %v1297
    %v1299 = vpop.f32.mrf.mxu0
    %1300 = vdwg.mxu0
    %s1301 = scalar_lea.vmem %s4, 8
    %v1302 = vld [vmem:[%s1301] sm:$0xff]
    %v1304 = vsel %vm375, %v1225, 0
    %v1307 = vsel %vm375, %v1298, 0
    %1309 = vmatprep.subr.mxu0 0.0
    %1310 = vmatpush1.msra.mxu0 0.0
    %1311 = vmatprep.subr.mxu0 0.0
    %1312 = vmatpush1.msra.mxu0 0.0
    %1313 = vmatprep.subr.mxu0 0.0
    %1314 = vmatpush1.msra.mxu0 0.0
    %1315 = vmatprep.subr.mxu0 0.0
    %1316 = vmatpush1.msra.mxu0 0.0
    %1317 = vmatprep.subr.mxu0 0.0
    %1318 = vmatpush1.msra.mxu0 0.0
    %1319 = vmatprep.subr.mxu0 0.0
    %1320 = vmatpush1.msra.mxu0 0.0
    %1321 = vmatprep.subr.mxu0 0.0
    %1322 = vmatpush1.msra.mxu0 0.0
    %1323 = vmatprep.subr.mxu0 0.0
    %1324 = vmatpush1.msra.mxu0 0.0
    %1325 = vmatprep.subr.mxu0 0.0
    %1326 = vmatpush1.msra.mxu0 0.0
    %1327 = vmatprep.subr.mxu0 0.0
    %1328 = vmatpush1.msra.mxu0 0.0
    %1329 = vmatprep.subr.mxu0 0.0
    %1330 = vmatpush1.msra.mxu0 0.0
    %1331 = vmatprep.subr.mxu0 0.0
    %1332 = vmatpush1.msra.mxu0 0.0
    %1333 = vmatprep.subr.mxu0 0.0
    %1334 = vmatpush1.msra.mxu0 0.0
    %1335 = vmatprep.subr.mxu0 0.0
    %1336 = vmatpush1.msra.mxu0 0.0
    %1337 = vmatprep.subr.mxu0 0.0
    %1338 = vmatpush1.msra.mxu0 0.0
    %1339 = vmatprep.subr.mxu0 0.0
    %1340 = vmatpush1.msra.mxu0 %v1302
    %1341 = vmatprep.subr.mxu0 0.0
    %1342 = vmatpush2.msra.mxu0 0.0
    %1343 = vmatprep.subr.mxu0 0.0
    %1344 = vmatpush2.msra.mxu0 0.0
    %1345 = vmatprep.subr.mxu0 0.0
    %1346 = vmatpush2.msra.mxu0 0.0
    %1347 = vmatprep.subr.mxu0 0.0
    %1348 = vmatpush2.msra.mxu0 0.0
    %1349 = vmatprep.subr.mxu0 0.0
    %1350 = vmatpush2.msra.mxu0 0.0
    %1351 = vmatprep.subr.mxu0 0.0
    %1352 = vmatpush2.msra.mxu0 0.0
    %1353 = vmatprep.subr.mxu0 0.0
    %1354 = vmatpush2.msra.mxu0 0.0
    %1355 = vmatprep.subr.mxu0 0.0
    %1356 = vmatpush2.msra.mxu0 0.0
    %1357 = vmatprep.subr.mxu0 0.0
    %1358 = vmatpush2.msra.mxu0 0.0
    %1359 = vmatprep.subr.mxu0 0.0
    %1360 = vmatpush2.msra.mxu0 0.0
    %1361 = vmatprep.subr.mxu0 0.0
    %1362 = vmatpush2.msra.mxu0 0.0
    %1363 = vmatprep.subr.mxu0 0.0
    %1364 = vmatpush2.msra.mxu0 0.0
    %1365 = vmatprep.subr.mxu0 0.0
    %1366 = vmatpush2.msra.mxu0 0.0
    %1367 = vmatprep.subr.mxu0 0.0
    %1368 = vmatpush2.msra.mxu0 0.0
    %1369 = vmatprep.subr.mxu0 0.0
    %1370 = vmatpush2.msra.mxu0 0.0
    %1371 = vmatprep.subr.mxu0 0.0
    %1372 = vmatpush2.msra.mxu0 0.0
    %1373 = vmatprep.mubr.f32.mxu0 0.0
    %1374 = vmatmul.mubr.f32.gmra.mxu0 %v1304
    %v1375 = vpop.f32.mrf.mxu0
    %v1376 = vadd.f32 0.0, %v1375
    %v1377 = vpop.f32.mrf.mxu0
    %1378 = vmatprep.mubr.f32.mxu0 0.0
    %1379 = vmatmul.mubr.f32.gmra.mxu0 %v1307
    %v1380 = vpop.f32.mrf.mxu0
    %v1381 = vadd.f32 0.0, %v1380
    %v1382 = vpop.f32.mrf.mxu0
    %1383 = vdwg.mxu0
    %v1385 = vsel %vm375, %v624, 0
    %v1388 = vsel %vm375, %v697, 0
    %1390 = vmatprep.subr.mxu0 0.0
    %1391 = vmatpush1.msra.mxu0 0.0
    %1392 = vmatprep.subr.mxu0 0.0
    %1393 = vmatpush1.msra.mxu0 0.0
    %1394 = vmatprep.subr.mxu0 0.0
    %1395 = vmatpush1.msra.mxu0 0.0
    %1396 = vmatprep.subr.mxu0 0.0
    %1397 = vmatpush1.msra.mxu0 0.0
    %1398 = vmatprep.subr.mxu0 0.0
    %1399 = vmatpush1.msra.mxu0 0.0
    %1400 = vmatprep.subr.mxu0 0.0
    %1401 = vmatpush1.msra.mxu0 0.0
    %1402 = vmatprep.subr.mxu0 0.0
    %1403 = vmatpush1.msra.mxu0 0.0
    %1404 = vmatprep.subr.mxu0 0.0
    %1405 = vmatpush1.msra.mxu0 0.0
    %1406 = vmatprep.subr.mxu0 0.0
    %1407 = vmatpush1.msra.mxu0 0.0
    %1408 = vmatprep.subr.mxu0 0.0
    %1409 = vmatpush1.msra.mxu0 0.0
    %1410 = vmatprep.subr.mxu0 0.0
    %1411 = vmatpush1.msra.mxu0 0.0
    %1412 = vmatprep.subr.mxu0 0.0
    %1413 = vmatpush1.msra.mxu0 0.0
    %1414 = vmatprep.subr.mxu0 0.0
    %1415 = vmatpush1.msra.mxu0 0.0
    %1416 = vmatprep.subr.mxu0 0.0
    %1417 = vmatpush1.msra.mxu0 0.0
    %1418 = vmatprep.subr.mxu0 0.0
    %1419 = vmatpush1.msra.mxu0 0.0
    %1420 = vmatprep.subr.mxu0 0.0
    %1421 = vmatpush1.msra.mxu0 %v700
    %1422 = vmatprep.subr.mxu0 0.0
    %1423 = vmatpush2.msra.mxu0 0.0
    %1424 = vmatprep.subr.mxu0 0.0
    %1425 = vmatpush2.msra.mxu0 0.0
    %1426 = vmatprep.subr.mxu0 0.0
    %1427 = vmatpush2.msra.mxu0 0.0
    %1428 = vmatprep.subr.mxu0 0.0
    %1429 = vmatpush2.msra.mxu0 0.0
    %1430 = vmatprep.subr.mxu0 0.0
    %1431 = vmatpush2.msra.mxu0 0.0
    %1432 = vmatprep.subr.mxu0 0.0
    %1433 = vmatpush2.msra.mxu0 0.0
    %1434 = vmatprep.subr.mxu0 0.0
    %1435 = vmatpush2.msra.mxu0 0.0
    %1436 = vmatprep.subr.mxu0 0.0
    %1437 = vmatpush2.msra.mxu0 0.0
    %1438 = vmatprep.subr.mxu0 0.0
    %1439 = vmatpush2.msra.mxu0 0.0
    %1440 = vmatprep.subr.mxu0 0.0
    %1441 = vmatpush2.msra.mxu0 0.0
    %1442 = vmatprep.subr.mxu0 0.0
    %1443 = vmatpush2.msra.mxu0 0.0
    %1444 = vmatprep.subr.mxu0 0.0
    %1445 = vmatpush2.msra.mxu0 0.0
    %1446 = vmatprep.subr.mxu0 0.0
    %1447 = vmatpush2.msra.mxu0 0.0
    %1448 = vmatprep.subr.mxu0 0.0
    %1449 = vmatpush2.msra.mxu0 0.0
    %1450 = vmatprep.subr.mxu0 0.0
    %1451 = vmatpush2.msra.mxu0 0.0
    %1452 = vmatprep.subr.mxu0 0.0
    %1453 = vmatpush2.msra.mxu0 0.0
    %1454 = vmatprep.mubr.f32.mxu0 0.0
    %1455 = vmatmul.mubr.f32.gmra.mxu0 %v1385
    %v1456 = vpop.f32.mrf.mxu0
    %v1457 = vadd.f32 %v1376, %v1456
    %v1458 = vpop.f32.mrf.mxu0
    %1459 = vmatprep.mubr.f32.mxu0 0.0
    %1460 = vmatmul.mubr.f32.gmra.mxu0 %v1388
    %v1461 = vpop.f32.mrf.mxu0
    %v1462 = vadd.f32 %v1381, %v1461
    %v1463 = vpop.f32.mrf.mxu0
    %1464 = vdwg.mxu0
    %s1465 = scalar_lea.vmem %s1, 256
    %v1466 = vld [vmem:[%s1465] sm:$0xff]
    %v1467 = vld [vmem:[%s1465 + $0x8] sm:$0xff]
    %v1468 = vld [vmem:[%s1465 + $0x10] sm:$0xff]
    %v1469 = vld [vmem:[%s1465 + $0x18] sm:$0xff]
    %v1470 = vld [vmem:[%s1465 + $0x20] sm:$0xff]
    %v1471 = vld [vmem:[%s1465 + $0x28] sm:$0xff]
    %v1472 = vld [vmem:[%s1465 + $0x30] sm:$0xff]
    %v1473 = vld [vmem:[%s1465 + $0x38] sm:$0xff]
    %v1474 = vld [vmem:[%s1465 + $0x40] sm:$0xff]
    %v1475 = vld [vmem:[%s1465 + $0x48] sm:$0xff]
    %v1476 = vld [vmem:[%s1465 + $0x50] sm:$0xff]
    %v1477 = vld [vmem:[%s1465 + $0x58] sm:$0xff]
    %v1478 = vld [vmem:[%s1465 + $0x60] sm:$0xff]
    %v1479 = vld [vmem:[%s1465 + $0x68] sm:$0xff]
    %v1480 = vld [vmem:[%s1465 + $0x70] sm:$0xff]
    %v1481 = vld [vmem:[%s1465 + $0x78] sm:$0xff]
    %1482 = vmatprep.subr.mxu0 0.0
    %1483 = vmatpush1.msra.mxu0 %v1481
    %1484 = vmatprep.subr.mxu0 0.0
    %1485 = vmatpush1.msra.mxu0 %v1480
    %1486 = vmatprep.subr.mxu0 0.0
    %1487 = vmatpush1.msra.mxu0 %v1479
    %1488 = vmatprep.subr.mxu0 0.0
    %1489 = vmatpush1.msra.mxu0 %v1478
    %1490 = vmatprep.subr.mxu0 0.0
    %1491 = vmatpush1.msra.mxu0 %v1477
    %1492 = vmatprep.subr.mxu0 0.0
    %1493 = vmatpush1.msra.mxu0 %v1476
    %1494 = vmatprep.subr.mxu0 0.0
    %1495 = vmatpush1.msra.mxu0 %v1475
    %1496 = vmatprep.subr.mxu0 0.0
    %1497 = vmatpush1.msra.mxu0 %v1474
    %1498 = vmatprep.subr.mxu0 0.0
    %1499 = vmatpush1.msra.mxu0 %v1473
    %1500 = vmatprep.subr.mxu0 0.0
    %1501 = vmatpush1.msra.mxu0 %v1472
    %1502 = vmatprep.subr.mxu0 0.0
    %1503 = vmatpush1.msra.mxu0 %v1471
    %1504 = vmatprep.subr.mxu0 0.0
    %1505 = vmatpush1.msra.mxu0 %v1470
    %1506 = vmatprep.subr.mxu0 0.0
    %1507 = vmatpush1.msra.mxu0 %v1469
    %1508 = vmatprep.subr.mxu0 0.0
    %1509 = vmatpush1.msra.mxu0 %v1468
    %1510 = vmatprep.subr.mxu0 0.0
    %1511 = vmatpush1.msra.mxu0 %v1467
    %1512 = vmatprep.subr.mxu0 0.0
    %1513 = vmatpush1.msra.mxu0 %v1466
    %1514 = vmatprep.subr.mxu0 0.0
    %1515 = vmatpush2.msra.mxu0 0.0
    %1516 = vmatprep.subr.mxu0 0.0
    %1517 = vmatpush2.msra.mxu0 0.0
    %1518 = vmatprep.subr.mxu0 0.0
    %1519 = vmatpush2.msra.mxu0 0.0
    %1520 = vmatprep.subr.mxu0 0.0
    %1521 = vmatpush2.msra.mxu0 0.0
    %1522 = vmatprep.subr.mxu0 0.0
    %1523 = vmatpush2.msra.mxu0 0.0
    %1524 = vmatprep.subr.mxu0 0.0
    %1525 = vmatpush2.msra.mxu0 0.0
    %1526 = vmatprep.subr.mxu0 0.0
    %1527 = vmatpush2.msra.mxu0 0.0
    %1528 = vmatprep.subr.mxu0 0.0
    %1529 = vmatpush2.msra.mxu0 0.0
    %1530 = vmatprep.subr.mxu0 0.0
    %1531 = vmatpush2.msra.mxu0 0.0
    %1532 = vmatprep.subr.mxu0 0.0
    %1533 = vmatpush2.msra.mxu0 0.0
    %1534 = vmatprep.subr.mxu0 0.0
    %1535 = vmatpush2.msra.mxu0 0.0
    %1536 = vmatprep.subr.mxu0 0.0
    %1537 = vmatpush2.msra.mxu0 0.0
    %1538 = vmatprep.subr.mxu0 0.0
    %1539 = vmatpush2.msra.mxu0 0.0
    %1540 = vmatprep.subr.mxu0 0.0
    %1541 = vmatpush2.msra.mxu0 0.0
    %1542 = vmatprep.subr.mxu0 0.0
    %1543 = vmatpush2.msra.mxu0 0.0
    %1544 = vmatprep.subr.mxu0 0.0
    %1545 = vmatpush2.msra.mxu0 0.0
    %1546 = vmatprep.mubr.f32.mxu0 0.0
    %1547 = vmatmul.mubr.f32.gmra.mxu0 %v95
    %v1548 = vpop.f32.mrf.mxu0
    %v1549 = vadd.f32 0.0, %v1548
    %v1550 = vpop.f32.mrf.mxu0
    %1551 = vmatprep.mubr.f32.mxu0 0.0
    %1552 = vmatmul.mubr.f32.gmra.mxu0 %v96
    %v1553 = vpop.f32.mrf.mxu0
    %v1554 = vadd.f32 0.0, %v1553
    %v1555 = vpop.f32.mrf.mxu0
    %1556 = vdwg.mxu0
    %v1557 = vmul.f32 %v1549, 0.17677669
    %v1558 = vmul.f32 %v1554, 0.17677669
    %s1559 = scalar_lea.vmem %s2, 256
    %v1560 = vld [vmem:[%s1559] sm:$0xff]
    %v1561 = vld [vmem:[%s1559 + $0x8] sm:$0xff]
    %v1562 = vld [vmem:[%s1559 + $0x10] sm:$0xff]
    %v1563 = vld [vmem:[%s1559 + $0x18] sm:$0xff]
    %v1564 = vld [vmem:[%s1559 + $0x20] sm:$0xff]
    %v1565 = vld [vmem:[%s1559 + $0x28] sm:$0xff]
    %v1566 = vld [vmem:[%s1559 + $0x30] sm:$0xff]
    %v1567 = vld [vmem:[%s1559 + $0x38] sm:$0xff]
    %v1568 = vld [vmem:[%s1559 + $0x40] sm:$0xff]
    %v1569 = vld [vmem:[%s1559 + $0x48] sm:$0xff]
    %v1570 = vld [vmem:[%s1559 + $0x50] sm:$0xff]
    %v1571 = vld [vmem:[%s1559 + $0x58] sm:$0xff]
    %v1572 = vld [vmem:[%s1559 + $0x60] sm:$0xff]
    %v1573 = vld [vmem:[%s1559 + $0x68] sm:$0xff]
    %v1574 = vld [vmem:[%s1559 + $0x70] sm:$0xff]
    %v1575 = vld [vmem:[%s1559 + $0x78] sm:$0xff]
    %1576 = vmatprep.subr.mxu0 0.0
    %1577 = vmatpush1.msra.mxu0 %v1575
    %1578 = vmatprep.subr.mxu0 0.0
    %1579 = vmatpush1.msra.mxu0 %v1574
    %1580 = vmatprep.subr.mxu0 0.0
    %1581 = vmatpush1.msra.mxu0 %v1573
    %1582 = vmatprep.subr.mxu0 0.0
    %1583 = vmatpush1.msra.mxu0 %v1572
    %1584 = vmatprep.subr.mxu0 0.0
    %1585 = vmatpush1.msra.mxu0 %v1571
    %1586 = vmatprep.subr.mxu0 0.0
    %1587 = vmatpush1.msra.mxu0 %v1570
    %1588 = vmatprep.subr.mxu0 0.0
    %1589 = vmatpush1.msra.mxu0 %v1569
    %1590 = vmatprep.subr.mxu0 0.0
    %1591 = vmatpush1.msra.mxu0 %v1568
    %1592 = vmatprep.subr.mxu0 0.0
    %1593 = vmatpush1.msra.mxu0 %v1567
    %1594 = vmatprep.subr.mxu0 0.0
    %1595 = vmatpush1.msra.mxu0 %v1566
    %1596 = vmatprep.subr.mxu0 0.0
    %1597 = vmatpush1.msra.mxu0 %v1565
    %1598 = vmatprep.subr.mxu0 0.0
    %1599 = vmatpush1.msra.mxu0 %v1564
    %1600 = vmatprep.subr.mxu0 0.0
    %1601 = vmatpush1.msra.mxu0 %v1563
    %1602 = vmatprep.subr.mxu0 0.0
    %1603 = vmatpush1.msra.mxu0 %v1562
    %1604 = vmatprep.subr.mxu0 0.0
    %1605 = vmatpush1.msra.mxu0 %v1561
    %1606 = vmatprep.subr.mxu0 0.0
    %1607 = vmatpush1.msra.mxu0 %v1560
    %1608 = vmatprep.subr.mxu0 0.0
    %1609 = vmatpush2.msra.mxu0 0.0
    %1610 = vmatprep.subr.mxu0 0.0
    %1611 = vmatpush2.msra.mxu0 0.0
    %1612 = vmatprep.subr.mxu0 0.0
    %1613 = vmatpush2.msra.mxu0 0.0
    %1614 = vmatprep.subr.mxu0 0.0
    %1615 = vmatpush2.msra.mxu0 0.0
    %1616 = vmatprep.subr.mxu0 0.0
    %1617 = vmatpush2.msra.mxu0 0.0
    %1618 = vmatprep.subr.mxu0 0.0
    %1619 = vmatpush2.msra.mxu0 0.0
    %1620 = vmatprep.subr.mxu0 0.0
    %1621 = vmatpush2.msra.mxu0 0.0
    %1622 = vmatprep.subr.mxu0 0.0
    %1623 = vmatpush2.msra.mxu0 0.0
    %1624 = vmatprep.subr.mxu0 0.0
    %1625 = vmatpush2.msra.mxu0 0.0
    %1626 = vmatprep.subr.mxu0 0.0
    %1627 = vmatpush2.msra.mxu0 0.0
    %1628 = vmatprep.subr.mxu0 0.0
    %1629 = vmatpush2.msra.mxu0 0.0
    %1630 = vmatprep.subr.mxu0 0.0
    %1631 = vmatpush2.msra.mxu0 0.0
    %1632 = vmatprep.subr.mxu0 0.0
    %1633 = vmatpush2.msra.mxu0 0.0
    %1634 = vmatprep.subr.mxu0 0.0
    %1635 = vmatpush2.msra.mxu0 0.0
    %1636 = vmatprep.subr.mxu0 0.0
    %1637 = vmatpush2.msra.mxu0 0.0
    %1638 = vmatprep.subr.mxu0 0.0
    %1639 = vmatpush2.msra.mxu0 0.0
    %1640 = vmatprep.mubr.f32.mxu0 0.0
    %1641 = vmatmul.mubr.f32.gmra.mxu0 %v95
    %v1642 = vpop.f32.mrf.mxu0
    %v1643 = vadd.f32 0.0, %v1642
    %v1644 = vpop.f32.mrf.mxu0
    %1645 = vmatprep.mubr.f32.mxu0 0.0
    %1646 = vmatmul.mubr.f32.gmra.mxu0 %v96
    %v1647 = vpop.f32.mrf.mxu0
    %v1648 = vadd.f32 0.0, %v1647
    %v1649 = vpop.f32.mrf.mxu0
    %1650 = vdwg.mxu0
    %s1651 = scalar_lea.vmem %s3, 256
    %v1652 = vld [vmem:[%s1651] sm:$0xff]
    %v1653 = vld [vmem:[%s1651 + $0x8] sm:$0xff]
    %v1654 = vld [vmem:[%s1651 + $0x10] sm:$0xff]
    %v1655 = vld [vmem:[%s1651 + $0x18] sm:$0xff]
    %v1656 = vld [vmem:[%s1651 + $0x20] sm:$0xff]
    %v1657 = vld [vmem:[%s1651 + $0x28] sm:$0xff]
    %v1658 = vld [vmem:[%s1651 + $0x30] sm:$0xff]
    %v1659 = vld [vmem:[%s1651 + $0x38] sm:$0xff]
    %v1660 = vld [vmem:[%s1651 + $0x40] sm:$0xff]
    %v1661 = vld [vmem:[%s1651 + $0x48] sm:$0xff]
    %v1662 = vld [vmem:[%s1651 + $0x50] sm:$0xff]
    %v1663 = vld [vmem:[%s1651 + $0x58] sm:$0xff]
    %v1664 = vld [vmem:[%s1651 + $0x60] sm:$0xff]
    %v1665 = vld [vmem:[%s1651 + $0x68] sm:$0xff]
    %v1666 = vld [vmem:[%s1651 + $0x70] sm:$0xff]
    %v1667 = vld [vmem:[%s1651 + $0x78] sm:$0xff]
    %1668 = vmatprep.subr.mxu0 0.0
    %1669 = vmatpush1.msra.mxu0 %v1667
    %1670 = vmatprep.subr.mxu0 0.0
    %1671 = vmatpush1.msra.mxu0 %v1666
    %1672 = vmatprep.subr.mxu0 0.0
    %1673 = vmatpush1.msra.mxu0 %v1665
    %1674 = vmatprep.subr.mxu0 0.0
    %1675 = vmatpush1.msra.mxu0 %v1664
    %1676 = vmatprep.subr.mxu0 0.0
    %1677 = vmatpush1.msra.mxu0 %v1663
    %1678 = vmatprep.subr.mxu0 0.0
    %1679 = vmatpush1.msra.mxu0 %v1662
    %1680 = vmatprep.subr.mxu0 0.0
    %1681 = vmatpush1.msra.mxu0 %v1661
    %1682 = vmatprep.subr.mxu0 0.0
    %1683 = vmatpush1.msra.mxu0 %v1660
    %1684 = vmatprep.subr.mxu0 0.0
    %1685 = vmatpush1.msra.mxu0 %v1659
    %1686 = vmatprep.subr.mxu0 0.0
    %1687 = vmatpush1.msra.mxu0 %v1658
    %1688 = vmatprep.subr.mxu0 0.0
    %1689 = vmatpush1.msra.mxu0 %v1657
    %1690 = vmatprep.subr.mxu0 0.0
    %1691 = vmatpush1.msra.mxu0 %v1656
    %1692 = vmatprep.subr.mxu0 0.0
    %1693 = vmatpush1.msra.mxu0 %v1655
    %1694 = vmatprep.subr.mxu0 0.0
    %1695 = vmatpush1.msra.mxu0 %v1654
    %1696 = vmatprep.subr.mxu0 0.0
    %1697 = vmatpush1.msra.mxu0 %v1653
    %1698 = vmatprep.subr.mxu0 0.0
    %1699 = vmatpush1.msra.mxu0 %v1652
    %1700 = vmatprep.subr.mxu0 0.0
    %1701 = vmatpush2.msra.mxu0 0.0
    %1702 = vmatprep.subr.mxu0 0.0
    %1703 = vmatpush2.msra.mxu0 0.0
    %1704 = vmatprep.subr.mxu0 0.0
    %1705 = vmatpush2.msra.mxu0 0.0
    %1706 = vmatprep.subr.mxu0 0.0
    %1707 = vmatpush2.msra.mxu0 0.0
    %1708 = vmatprep.subr.mxu0 0.0
    %1709 = vmatpush2.msra.mxu0 0.0
    %1710 = vmatprep.subr.mxu0 0.0
    %1711 = vmatpush2.msra.mxu0 0.0
    %1712 = vmatprep.subr.mxu0 0.0
    %1713 = vmatpush2.msra.mxu0 0.0
    %1714 = vmatprep.subr.mxu0 0.0
    %1715 = vmatpush2.msra.mxu0 0.0
    %1716 = vmatprep.subr.mxu0 0.0
    %1717 = vmatpush2.msra.mxu0 0.0
    %1718 = vmatprep.subr.mxu0 0.0
    %1719 = vmatpush2.msra.mxu0 0.0
    %1720 = vmatprep.subr.mxu0 0.0
    %1721 = vmatpush2.msra.mxu0 0.0
    %1722 = vmatprep.subr.mxu0 0.0
    %1723 = vmatpush2.msra.mxu0 0.0
    %1724 = vmatprep.subr.mxu0 0.0
    %1725 = vmatpush2.msra.mxu0 0.0
    %1726 = vmatprep.subr.mxu0 0.0
    %1727 = vmatpush2.msra.mxu0 0.0
    %1728 = vmatprep.subr.mxu0 0.0
    %1729 = vmatpush2.msra.mxu0 0.0
    %1730 = vmatprep.subr.mxu0 0.0
    %1731 = vmatpush2.msra.mxu0 0.0
    %1732 = vmatprep.mubr.f32.mxu0 0.0
    %1733 = vmatmul.mubr.f32.gmra.mxu0 %v95
    %v1734 = vpop.f32.mrf.mxu0
    %v1735 = vadd.f32 0.0, %v1734
    %v1736 = vpop.f32.mrf.mxu0
    %1737 = vmatprep.mubr.f32.mxu0 0.0
    %1738 = vmatmul.mubr.f32.gmra.mxu0 %v96
    %v1739 = vpop.f32.mrf.mxu0
    %v1740 = vadd.f32 0.0, %v1739
    %v1741 = vpop.f32.mrf.mxu0
    %1742 = vdwg.mxu0
    %v1744 = vsel %vm375, %v1557, 0
    %v1747 = vsel %vm375, %v1643, 0
    %1749 = vmatprep.subr.mxu0 0.0
    %1750 = vmatpush1.xpose.msra.mxu0 0.0
    %1751 = vmatprep.subr.mxu0 0.0
    %1752 = vmatpush1.xpose.msra.mxu0 0.0
    %1753 = vmatprep.subr.mxu0 0.0
    %1754 = vmatpush1.xpose.msra.mxu0 0.0
    %1755 = vmatprep.subr.mxu0 0.0
    %1756 = vmatpush1.xpose.msra.mxu0 0.0
    %1757 = vmatprep.subr.mxu0 0.0
    %1758 = vmatpush1.xpose.msra.mxu0 0.0
    %1759 = vmatprep.subr.mxu0 0.0
    %1760 = vmatpush1.xpose.msra.mxu0 0.0
    %1761 = vmatprep.subr.mxu0 0.0
    %1762 = vmatpush1.xpose.msra.mxu0 0.0
    %1763 = vmatprep.subr.mxu0 0.0
    %1764 = vmatpush1.xpose.msra.mxu0 0.0
    %1765 = vmatprep.subr.mxu0 0.0
    %1766 = vmatpush1.xpose.msra.mxu0 0.0
    %1767 = vmatprep.subr.mxu0 0.0
    %1768 = vmatpush1.xpose.msra.mxu0 0.0
    %1769 = vmatprep.subr.mxu0 0.0
    %1770 = vmatpush1.xpose.msra.mxu0 0.0
    %1771 = vmatprep.subr.mxu0 0.0
    %1772 = vmatpush1.xpose.msra.mxu0 0.0
    %1773 = vmatprep.subr.mxu0 0.0
    %1774 = vmatpush1.xpose.msra.mxu0 0.0
    %1775 = vmatprep.subr.mxu0 0.0
    %1776 = vmatpush1.xpose.msra.mxu0 0.0
    %1777 = vmatprep.subr.mxu0 0.0
    %1778 = vmatpush1.xpose.msra.mxu0 0.0
    %1779 = vmatprep.subr.mxu0 0.0
    %1780 = vmatpush1.xpose.msra.mxu0 %v1747
    %1781 = vmatprep.subr.mxu0 0.0
    %1782 = vmatpush2.xpose.msra.mxu0 0.0
    %1783 = vmatprep.subr.mxu0 0.0
    %1784 = vmatpush2.xpose.msra.mxu0 0.0
    %1785 = vmatprep.subr.mxu0 0.0
    %1786 = vmatpush2.xpose.msra.mxu0 0.0
    %1787 = vmatprep.subr.mxu0 0.0
    %1788 = vmatpush2.xpose.msra.mxu0 0.0
    %1789 = vmatprep.subr.mxu0 0.0
    %1790 = vmatpush2.xpose.msra.mxu0 0.0
    %1791 = vmatprep.subr.mxu0 0.0
    %1792 = vmatpush2.xpose.msra.mxu0 0.0
    %1793 = vmatprep.subr.mxu0 0.0
    %1794 = vmatpush2.xpose.msra.mxu0 0.0
    %1795 = vmatprep.subr.mxu0 0.0
    %1796 = vmatpush2.xpose.msra.mxu0 0.0
    %1797 = vmatprep.subr.mxu0 0.0
    %1798 = vmatpush2.xpose.msra.mxu0 0.0
    %1799 = vmatprep.subr.mxu0 0.0
    %1800 = vmatpush2.xpose.msra.mxu0 0.0
    %1801 = vmatprep.subr.mxu0 0.0
    %1802 = vmatpush2.xpose.msra.mxu0 0.0
    %1803 = vmatprep.subr.mxu0 0.0
    %1804 = vmatpush2.xpose.msra.mxu0 0.0
    %1805 = vmatprep.subr.mxu0 0.0
    %1806 = vmatpush2.xpose.msra.mxu0 0.0
    %1807 = vmatprep.subr.mxu0 0.0
    %1808 = vmatpush2.xpose.msra.mxu0 0.0
    %1809 = vmatprep.subr.mxu0 0.0
    %1810 = vmatpush2.xpose.msra.mxu0 0.0
    %1811 = vmatprep.subr.mxu0 0.0
    %1812 = vmatpush2.xpose.msra.mxu0 0.0
    %1813 = vmatprep.mubr.f32.mxu0 0.0
    %1814 = vmatmul.mubr.f32.gmra.mxu0 %v1744
    %v1815 = vpop.f32.mrf.mxu0
    %v1816 = vadd.f32 0.0, %v1815
    %v1817 = vpop.f32.mrf.mxu0
    %1818 = vdwg.mxu0
    %v1820 = vsel %vm375, %v1558, 0
    %v1823 = vsel %vm375, %v1648, 0
    %1825 = vmatprep.subr.mxu0 0.0
    %1826 = vmatpush1.xpose.msra.mxu0 0.0
    %1827 = vmatprep.subr.mxu0 0.0
    %1828 = vmatpush1.xpose.msra.mxu0 0.0
    %1829 = vmatprep.subr.mxu0 0.0
    %1830 = vmatpush1.xpose.msra.mxu0 0.0
    %1831 = vmatprep.subr.mxu0 0.0
    %1832 = vmatpush1.xpose.msra.mxu0 0.0
    %1833 = vmatprep.subr.mxu0 0.0
    %1834 = vmatpush1.xpose.msra.mxu0 0.0
    %1835 = vmatprep.subr.mxu0 0.0
    %1836 = vmatpush1.xpose.msra.mxu0 0.0
    %1837 = vmatprep.subr.mxu0 0.0
    %1838 = vmatpush1.xpose.msra.mxu0 0.0
    %1839 = vmatprep.subr.mxu0 0.0
    %1840 = vmatpush1.xpose.msra.mxu0 0.0
    %1841 = vmatprep.subr.mxu0 0.0
    %1842 = vmatpush1.xpose.msra.mxu0 0.0
    %1843 = vmatprep.subr.mxu0 0.0
    %1844 = vmatpush1.xpose.msra.mxu0 0.0
    %1845 = vmatprep.subr.mxu0 0.0
    %1846 = vmatpush1.xpose.msra.mxu0 0.0
    %1847 = vmatprep.subr.mxu0 0.0
    %1848 = vmatpush1.xpose.msra.mxu0 0.0
    %1849 = vmatprep.subr.mxu0 0.0
    %1850 = vmatpush1.xpose.msra.mxu0 0.0
    %1851 = vmatprep.subr.mxu0 0.0
    %1852 = vmatpush1.xpose.msra.mxu0 0.0
    %1853 = vmatprep.subr.mxu0 0.0
    %1854 = vmatpush1.xpose.msra.mxu0 0.0
    %1855 = vmatprep.subr.mxu0 0.0
    %1856 = vmatpush1.xpose.msra.mxu0 %v1823
    %1857 = vmatprep.subr.mxu0 0.0
    %1858 = vmatpush2.xpose.msra.mxu0 0.0
    %1859 = vmatprep.subr.mxu0 0.0
    %1860 = vmatpush2.xpose.msra.mxu0 0.0
    %1861 = vmatprep.subr.mxu0 0.0
    %1862 = vmatpush2.xpose.msra.mxu0 0.0
    %1863 = vmatprep.subr.mxu0 0.0
    %1864 = vmatpush2.xpose.msra.mxu0 0.0
    %1865 = vmatprep.subr.mxu0 0.0
    %1866 = vmatpush2.xpose.msra.mxu0 0.0
    %1867 = vmatprep.subr.mxu0 0.0
    %1868 = vmatpush2.xpose.msra.mxu0 0.0
    %1869 = vmatprep.subr.mxu0 0.0
    %1870 = vmatpush2.xpose.msra.mxu0 0.0
    %1871 = vmatprep.subr.mxu0 0.0
    %1872 = vmatpush2.xpose.msra.mxu0 0.0
    %1873 = vmatprep.subr.mxu0 0.0
    %1874 = vmatpush2.xpose.msra.mxu0 0.0
    %1875 = vmatprep.subr.mxu0 0.0
    %1876 = vmatpush2.xpose.msra.mxu0 0.0
    %1877 = vmatprep.subr.mxu0 0.0
    %1878 = vmatpush2.xpose.msra.mxu0 0.0
    %1879 = vmatprep.subr.mxu0 0.0
    %1880 = vmatpush2.xpose.msra.mxu0 0.0
    %1881 = vmatprep.subr.mxu0 0.0
    %1882 = vmatpush2.xpose.msra.mxu0 0.0
    %1883 = vmatprep.subr.mxu0 0.0
    %1884 = vmatpush2.xpose.msra.mxu0 0.0
    %1885 = vmatprep.subr.mxu0 0.0
    %1886 = vmatpush2.xpose.msra.mxu0 0.0
    %1887 = vmatprep.subr.mxu0 0.0
    %1888 = vmatpush2.xpose.msra.mxu0 0.0
    %1889 = vmatprep.mubr.f32.mxu0 0.0
    %1890 = vmatmul.mubr.f32.gmra.mxu0 %v1820
    %v1891 = vpop.f32.mrf.mxu0
    %v1892 = vadd.f32 0.0, %v1891
    %v1893 = vpop.f32.mrf.mxu0
    %1894 = vdwg.mxu0
    %v1895 = vsel %vm529, %v1816, -inf
    %v1896 = vsel %vm529, %v1892, -inf
    %v1897 = vsel %vm375, %v1895, -inf
    %1898 = vmax.xlane.f32.xlu0 %v1897
    %v1899 = vpop.xlane.xlu0 %1898
    %v1900 = vsel %vm375, %v1896, -inf
    %1901 = vmax.xlane.f32.xlu0 %v1900
    %v1902 = vpop.xlane.xlu0 %1901
    %v1903 = vsub.f32 %v1895, %v1899
    %v1904 = vsub.f32 %v1896, %v1902
    %v1905 = vmul.f32 %v1903, 1.442695
    %v1906 = vpow.pop %v1905
    %v1907 = vmul.f32 %v1904, 1.442695
    %v1908 = vpow.pop %v1907
    %v1909 = vsel %vm375, %v1906, 0.0
    %1910 = vadd.xlane.f32.xlu0 %v1909
    %v1911 = vpop.xlane.xlu0 %1910
    %v1912 = vsel %vm375, %v1908, 0.0
    %1913 = vadd.xlane.f32.xlu0 %v1912
    %v1914 = vpop.xlane.xlu0 %1913
    %v1915 = vrcp.pop %v1911
    %v1916 = vmul.f32 %v1906, %v1915
    %v1917 = vrcp.pop %v1914
    %v1918 = vmul.f32 %v1908, %v1917
    %v1920 = vsel %vm375, %v1916, 0
    %1922 = vmatprep.subr.mxu0 0.0
    %1923 = vmatpush1.msra.mxu0 0.0
    %1924 = vmatprep.subr.mxu0 0.0
    %1925 = vmatpush1.msra.mxu0 0.0
    %1926 = vmatprep.subr.mxu0 0.0
    %1927 = vmatpush1.msra.mxu0 0.0
    %1928 = vmatprep.subr.mxu0 0.0
    %1929 = vmatpush1.msra.mxu0 0.0
    %1930 = vmatprep.subr.mxu0 0.0
    %1931 = vmatpush1.msra.mxu0 0.0
    %1932 = vmatprep.subr.mxu0 0.0
    %1933 = vmatpush1.msra.mxu0 0.0
    %1934 = vmatprep.subr.mxu0 0.0
    %1935 = vmatpush1.msra.mxu0 0.0
    %1936 = vmatprep.subr.mxu0 0.0
    %1937 = vmatpush1.msra.mxu0 0.0
    %1938 = vmatprep.subr.mxu0 0.0
    %1939 = vmatpush1.msra.mxu0 0.0
    %1940 = vmatprep.subr.mxu0 0.0
    %1941 = vmatpush1.msra.mxu0 0.0
    %1942 = vmatprep.subr.mxu0 0.0
    %1943 = vmatpush1.msra.mxu0 0.0
    %1944 = vmatprep.subr.mxu0 0.0
    %1945 = vmatpush1.msra.mxu0 0.0
    %1946 = vmatprep.subr.mxu0 0.0
    %1947 = vmatpush1.msra.mxu0 0.0
    %1948 = vmatprep.subr.mxu0 0.0
    %1949 = vmatpush1.msra.mxu0 0.0
    %1950 = vmatprep.subr.mxu0 0.0
    %1951 = vmatpush1.msra.mxu0 0.0
    %1952 = vmatprep.subr.mxu0 0.0
    %1953 = vmatpush1.msra.mxu0 %v1735
    %1954 = vmatprep.subr.mxu0 0.0
    %1955 = vmatpush2.msra.mxu0 0.0
    %1956 = vmatprep.subr.mxu0 0.0
    %1957 = vmatpush2.msra.mxu0 0.0
    %1958 = vmatprep.subr.mxu0 0.0
    %1959 = vmatpush2.msra.mxu0 0.0
    %1960 = vmatprep.subr.mxu0 0.0
    %1961 = vmatpush2.msra.mxu0 0.0
    %1962 = vmatprep.subr.mxu0 0.0
    %1963 = vmatpush2.msra.mxu0 0.0
    %1964 = vmatprep.subr.mxu0 0.0
    %1965 = vmatpush2.msra.mxu0 0.0
    %1966 = vmatprep.subr.mxu0 0.0
    %1967 = vmatpush2.msra.mxu0 0.0
    %1968 = vmatprep.subr.mxu0 0.0
    %1969 = vmatpush2.msra.mxu0 0.0
    %1970 = vmatprep.subr.mxu0 0.0
    %1971 = vmatpush2.msra.mxu0 0.0
    %1972 = vmatprep.subr.mxu0 0.0
    %1973 = vmatpush2.msra.mxu0 0.0
    %1974 = vmatprep.subr.mxu0 0.0
    %1975 = vmatpush2.msra.mxu0 0.0
    %1976 = vmatprep.subr.mxu0 0.0
    %1977 = vmatpush2.msra.mxu0 0.0
    %1978 = vmatprep.subr.mxu0 0.0
    %1979 = vmatpush2.msra.mxu0 0.0
    %1980 = vmatprep.subr.mxu0 0.0
    %1981 = vmatpush2.msra.mxu0 0.0
    %1982 = vmatprep.subr.mxu0 0.0
    %1983 = vmatpush2.msra.mxu0 0.0
    %1984 = vmatprep.subr.mxu0 0.0
    %1985 = vmatpush2.msra.mxu0 0.0
    %1986 = vmatprep.mubr.f32.mxu0 0.0
    %1987 = vmatmul.mubr.f32.gmra.mxu0 %v1920
    %v1988 = vpop.f32.mrf.mxu0
    %v1989 = vadd.f32 0.0, %v1988
    %v1990 = vpop.f32.mrf.mxu0
    %1991 = vdwg.mxu0
    %v1993 = vsel %vm375, %v1918, 0
    %1995 = vmatprep.subr.mxu0 0.0
    %1996 = vmatpush1.msra.mxu0 0.0
    %1997 = vmatprep.subr.mxu0 0.0
    %1998 = vmatpush1.msra.mxu0 0.0
    %1999 = vmatprep.subr.mxu0 0.0
    %2000 = vmatpush1.msra.mxu0 0.0
    %2001 = vmatprep.subr.mxu0 0.0
    %2002 = vmatpush1.msra.mxu0 0.0
    %2003 = vmatprep.subr.mxu0 0.0
    %2004 = vmatpush1.msra.mxu0 0.0
    %2005 = vmatprep.subr.mxu0 0.0
    %2006 = vmatpush1.msra.mxu0 0.0
    %2007 = vmatprep.subr.mxu0 0.0
    %2008 = vmatpush1.msra.mxu0 0.0
    %2009 = vmatprep.subr.mxu0 0.0
    %2010 = vmatpush1.msra.mxu0 0.0
    %2011 = vmatprep.subr.mxu0 0.0
    %2012 = vmatpush1.msra.mxu0 0.0
    %2013 = vmatprep.subr.mxu0 0.0
    %2014 = vmatpush1.msra.mxu0 0.0
    %2015 = vmatprep.subr.mxu0 0.0
    %2016 = vmatpush1.msra.mxu0 0.0
    %2017 = vmatprep.subr.mxu0 0.0
    %2018 = vmatpush1.msra.mxu0 0.0
    %2019 = vmatprep.subr.mxu0 0.0
    %2020 = vmatpush1.msra.mxu0 0.0
    %2021 = vmatprep.subr.mxu0 0.0
    %2022 = vmatpush1.msra.mxu0 0.0
    %2023 = vmatprep.subr.mxu0 0.0
    %2024 = vmatpush1.msra.mxu0 0.0
    %2025 = vmatprep.subr.mxu0 0.0
    %2026 = vmatpush1.msra.mxu0 %v1740
    %2027 = vmatprep.subr.mxu0 0.0
    %2028 = vmatpush2.msra.mxu0 0.0
    %2029 = vmatprep.subr.mxu0 0.0
    %2030 = vmatpush2.msra.mxu0 0.0
    %2031 = vmatprep.subr.mxu0 0.0
    %2032 = vmatpush2.msra.mxu0 0.0
    %2033 = vmatprep.subr.mxu0 0.0
    %2034 = vmatpush2.msra.mxu0 0.0
    %2035 = vmatprep.subr.mxu0 0.0
    %2036 = vmatpush2.msra.mxu0 0.0
    %2037 = vmatprep.subr.mxu0 0.0
    %2038 = vmatpush2.msra.mxu0 0.0
    %2039 = vmatprep.subr.mxu0 0.0
    %2040 = vmatpush2.msra.mxu0 0.0
    %2041 = vmatprep.subr.mxu0 0.0
    %2042 = vmatpush2.msra.mxu0 0.0
    %2043 = vmatprep.subr.mxu0 0.0
    %2044 = vmatpush2.msra.mxu0 0.0
    %2045 = vmatprep.subr.mxu0 0.0
    %2046 = vmatpush2.msra.mxu0 0.0
    %2047 = vmatprep.subr.mxu0 0.0
    %2048 = vmatpush2.msra.mxu0 0.0
    %2049 = vmatprep.subr.mxu0 0.0
    %2050 = vmatpush2.msra.mxu0 0.0
    %2051 = vmatprep.subr.mxu0 0.0
    %2052 = vmatpush2.msra.mxu0 0.0
    %2053 = vmatprep.subr.mxu0 0.0
    %2054 = vmatpush2.msra.mxu0 0.0
    %2055 = vmatprep.subr.mxu0 0.0
    %2056 = vmatpush2.msra.mxu0 0.0
    %2057 = vmatprep.subr.mxu0 0.0
    %2058 = vmatpush2.msra.mxu0 0.0
    %2059 = vmatprep.mubr.f32.mxu0 0.0
    %2060 = vmatmul.mubr.f32.gmra.mxu0 %v1993
    %v2061 = vpop.f32.mrf.mxu0
    %v2062 = vadd.f32 0.0, %v2061
    %v2063 = vpop.f32.mrf.mxu0
    %2064 = vdwg.mxu0
    %s2065 = scalar_lea.vmem %s4, 16
    %v2066 = vld [vmem:[%s2065] sm:$0xff]
    %v2068 = vsel %vm375, %v1989, 0
    %v2071 = vsel %vm375, %v2062, 0
    %2073 = vmatprep.subr.mxu0 0.0
    %2074 = vmatpush1.msra.mxu0 0.0
    %2075 = vmatprep.subr.mxu0 0.0
    %2076 = vmatpush1.msra.mxu0 0.0
    %2077 = vmatprep.subr.mxu0 0.0
    %2078 = vmatpush1.msra.mxu0 0.0
    %2079 = vmatprep.subr.mxu0 0.0
    %2080 = vmatpush1.msra.mxu0 0.0
    %2081 = vmatprep.subr.mxu0 0.0
    %2082 = vmatpush1.msra.mxu0 0.0
    %2083 = vmatprep.subr.mxu0 0.0
    %2084 = vmatpush1.msra.mxu0 0.0
    %2085 = vmatprep.subr.mxu0 0.0
    %2086 = vmatpush1.msra.mxu0 0.0
    %2087 = vmatprep.subr.mxu0 0.0
    %2088 = vmatpush1.msra.mxu0 0.0
    %2089 = vmatprep.subr.mxu0 0.0
    %2090 = vmatpush1.msra.mxu0 0.0
    %2091 = vmatprep.subr.mxu0 0.0
    %2092 = vmatpush1.msra.mxu0 0.0
    %2093 = vmatprep.subr.mxu0 0.0
    %2094 = vmatpush1.msra.mxu0 0.0
    %2095 = vmatprep.subr.mxu0 0.0
    %2096 = vmatpush1.msra.mxu0 0.0
    %2097 = vmatprep.subr.mxu0 0.0
    %2098 = vmatpush1.msra.mxu0 0.0
    %2099 = vmatprep.subr.mxu0 0.0
    %2100 = vmatpush1.msra.mxu0 0.0
    %2101 = vmatprep.subr.mxu0 0.0
    %2102 = vmatpush1.msra.mxu0 0.0
    %2103 = vmatprep.subr.mxu0 0.0
    %2104 = vmatpush1.msra.mxu0 %v2066
    %2105 = vmatprep.subr.mxu0 0.0
    %2106 = vmatpush2.msra.mxu0 0.0
    %2107 = vmatprep.subr.mxu0 0.0
    %2108 = vmatpush2.msra.mxu0 0.0
    %2109 = vmatprep.subr.mxu0 0.0
    %2110 = vmatpush2.msra.mxu0 0.0
    %2111 = vmatprep.subr.mxu0 0.0
    %2112 = vmatpush2.msra.mxu0 0.0
    %2113 = vmatprep.subr.mxu0 0.0
    %2114 = vmatpush2.msra.mxu0 0.0
    %2115 = vmatprep.subr.mxu0 0.0
    %2116 = vmatpush2.msra.mxu0 0.0
    %2117 = vmatprep.subr.mxu0 0.0
    %2118 = vmatpush2.msra.mxu0 0.0
    %2119 = vmatprep.subr.mxu0 0.0
    %2120 = vmatpush2.msra.mxu0 0.0
    %2121 = vmatprep.subr.mxu0 0.0
    %2122 = vmatpush2.msra.mxu0 0.0
    %2123 = vmatprep.subr.mxu0 0.0
    %2124 = vmatpush2.msra.mxu0 0.0
    %2125 = vmatprep.subr.mxu0 0.0
    %2126 = vmatpush2.msra.mxu0 0.0
    %2127 = vmatprep.subr.mxu0 0.0
    %2128 = vmatpush2.msra.mxu0 0.0
    %2129 = vmatprep.subr.mxu0 0.0
    %2130 = vmatpush2.msra.mxu0 0.0
    %2131 = vmatprep.subr.mxu0 0.0
    %2132 = vmatpush2.msra.mxu0 0.0
    %2133 = vmatprep.subr.mxu0 0.0
    %2134 = vmatpush2.msra.mxu0 0.0
    %2135 = vmatprep.subr.mxu0 0.0
    %2136 = vmatpush2.msra.mxu0 0.0
    %2137 = vmatprep.mubr.f32.mxu0 0.0
    %2138 = vmatmul.mubr.f32.gmra.mxu0 %v2068
    %v2139 = vpop.f32.mrf.mxu0
    %v2140 = vadd.f32 0.0, %v2139
    %v2141 = vpop.f32.mrf.mxu0
    %2142 = vmatprep.mubr.f32.mxu0 0.0
    %2143 = vmatmul.mubr.f32.gmra.mxu0 %v2071
    %v2144 = vpop.f32.mrf.mxu0
    %v2145 = vadd.f32 0.0, %v2144
    %v2146 = vpop.f32.mrf.mxu0
    %2147 = vdwg.mxu0
    %v2148 = vadd.f32 %v1457, %v2140
    %v2149 = vadd.f32 %v1462, %v2145
    %s2150 = scalar_lea.vmem %s1, 384
    %v2151 = vld [vmem:[%s2150] sm:$0xff]
    %v2152 = vld [vmem:[%s2150 + $0x8] sm:$0xff]
    %v2153 = vld [vmem:[%s2150 + $0x10] sm:$0xff]
    %v2154 = vld [vmem:[%s2150 + $0x18] sm:$0xff]
    %v2155 = vld [vmem:[%s2150 + $0x20] sm:$0xff]
    %v2156 = vld [vmem:[%s2150 + $0x28] sm:$0xff]
    %v2157 = vld [vmem:[%s2150 + $0x30] sm:$0xff]
    %v2158 = vld [vmem:[%s2150 + $0x38] sm:$0xff]
    %v2159 = vld [vmem:[%s2150 + $0x40] sm:$0xff]
    %v2160 = vld [vmem:[%s2150 + $0x48] sm:$0xff]
    %v2161 = vld [vmem:[%s2150 + $0x50] sm:$0xff]
    %v2162 = vld [vmem:[%s2150 + $0x58] sm:$0xff]
    %v2163 = vld [vmem:[%s2150 + $0x60] sm:$0xff]
    %v2164 = vld [vmem:[%s2150 + $0x68] sm:$0xff]
    %v2165 = vld [vmem:[%s2150 + $0x70] sm:$0xff]
    %v2166 = vld [vmem:[%s2150 + $0x78] sm:$0xff]
    %2167 = vmatprep.subr.mxu0 0.0
    %2168 = vmatpush1.msra.mxu0 %v2166
    %2169 = vmatprep.subr.mxu0 0.0
    %2170 = vmatpush1.msra.mxu0 %v2165
    %2171 = vmatprep.subr.mxu0 0.0
    %2172 = vmatpush1.msra.mxu0 %v2164
    %2173 = vmatprep.subr.mxu0 0.0
    %2174 = vmatpush1.msra.mxu0 %v2163
    %2175 = vmatprep.subr.mxu0 0.0
    %2176 = vmatpush1.msra.mxu0 %v2162
    %2177 = vmatprep.subr.mxu0 0.0
    %2178 = vmatpush1.msra.mxu0 %v2161
    %2179 = vmatprep.subr.mxu0 0.0
    %2180 = vmatpush1.msra.mxu0 %v2160
    %2181 = vmatprep.subr.mxu0 0.0
    %2182 = vmatpush1.msra.mxu0 %v2159
    %2183 = vmatprep.subr.mxu0 0.0
    %2184 = vmatpush1.msra.mxu0 %v2158
    %2185 = vmatprep.subr.mxu0 0.0
    %2186 = vmatpush1.msra.mxu0 %v2157
    %2187 = vmatprep.subr.mxu0 0.0
    %2188 = vmatpush1.msra.mxu0 %v2156
    %2189 = vmatprep.subr.mxu0 0.0
    %2190 = vmatpush1.msra.mxu0 %v2155
    %2191 = vmatprep.subr.mxu0 0.0
    %2192 = vmatpush1.msra.mxu0 %v2154
    %2193 = vmatprep.subr.mxu0 0.0
    %2194 = vmatpush1.msra.mxu0 %v2153
    %2195 = vmatprep.subr.mxu0 0.0
    %2196 = vmatpush1.msra.mxu0 %v2152
    %2197 = vmatprep.subr.mxu0 0.0
    %2198 = vmatpush1.msra.mxu0 %v2151
    %2199 = vmatprep.subr.mxu0 0.0
    %2200 = vmatpush2.msra.mxu0 0.0
    %2201 = vmatprep.subr.mxu0 0.0
    %2202 = vmatpush2.msra.mxu0 0.0
    %2203 = vmatprep.subr.mxu0 0.0
    %2204 = vmatpush2.msra.mxu0 0.0
    %2205 = vmatprep.subr.mxu0 0.0
    %2206 = vmatpush2.msra.mxu0 0.0
    %2207 = vmatprep.subr.mxu0 0.0
    %2208 = vmatpush2.msra.mxu0 0.0
    %2209 = vmatprep.subr.mxu0 0.0
    %2210 = vmatpush2.msra.mxu0 0.0
    %2211 = vmatprep.subr.mxu0 0.0
    %2212 = vmatpush2.msra.mxu0 0.0
    %2213 = vmatprep.subr.mxu0 0.0
    %2214 = vmatpush2.msra.mxu0 0.0
    %2215 = vmatprep.subr.mxu0 0.0
    %2216 = vmatpush2.msra.mxu0 0.0
    %2217 = vmatprep.subr.mxu0 0.0
    %2218 = vmatpush2.msra.mxu0 0.0
    %2219 = vmatprep.subr.mxu0 0.0
    %2220 = vmatpush2.msra.mxu0 0.0
    %2221 = vmatprep.subr.mxu0 0.0
    %2222 = vmatpush2.msra.mxu0 0.0
    %2223 = vmatprep.subr.mxu0 0.0
    %2224 = vmatpush2.msra.mxu0 0.0
    %2225 = vmatprep.subr.mxu0 0.0
    %2226 = vmatpush2.msra.mxu0 0.0
    %2227 = vmatprep.subr.mxu0 0.0
    %2228 = vmatpush2.msra.mxu0 0.0
    %2229 = vmatprep.subr.mxu0 0.0
    %2230 = vmatpush2.msra.mxu0 0.0
    %2231 = vmatprep.mubr.f32.mxu0 0.0
    %2232 = vmatmul.mubr.f32.gmra.mxu0 %v95
    %v2233 = vpop.f32.mrf.mxu0
    %v2234 = vadd.f32 0.0, %v2233
    %v2235 = vpop.f32.mrf.mxu0
    %2236 = vmatprep.mubr.f32.mxu0 0.0
    %2237 = vmatmul.mubr.f32.gmra.mxu0 %v96
    %v2238 = vpop.f32.mrf.mxu0
    %v2239 = vadd.f32 0.0, %v2238
    %v2240 = vpop.f32.mrf.mxu0
    %2241 = vdwg.mxu0
    %v2242 = vmul.f32 %v2234, 0.17677669
    %v2243 = vmul.f32 %v2239, 0.17677669
    %s2244 = scalar_lea.vmem %s2, 384
    %v2245 = vld [vmem:[%s2244] sm:$0xff]
    %v2246 = vld [vmem:[%s2244 + $0x8] sm:$0xff]
    %v2247 = vld [vmem:[%s2244 + $0x10] sm:$0xff]
    %v2248 = vld [vmem:[%s2244 + $0x18] sm:$0xff]
    %v2249 = vld [vmem:[%s2244 + $0x20] sm:$0xff]
    %v2250 = vld [vmem:[%s2244 + $0x28] sm:$0xff]
    %v2251 = vld [vmem:[%s2244 + $0x30] sm:$0xff]
    %v2252 = vld [vmem:[%s2244 + $0x38] sm:$0xff]
    %v2253 = vld [vmem:[%s2244 + $0x40] sm:$0xff]
    %v2254 = vld [vmem:[%s2244 + $0x48] sm:$0xff]
    %v2255 = vld [vmem:[%s2244 + $0x50] sm:$0xff]
    %v2256 = vld [vmem:[%s2244 + $0x58] sm:$0xff]
    %v2257 = vld [vmem:[%s2244 + $0x60] sm:$0xff]
    %v2258 = vld [vmem:[%s2244 + $0x68] sm:$0xff]
    %v2259 = vld [vmem:[%s2244 + $0x70] sm:$0xff]
    %v2260 = vld [vmem:[%s2244 + $0x78] sm:$0xff]
    %2261 = vmatprep.subr.mxu0 0.0
    %2262 = vmatpush1.msra.mxu0 %v2260
    %2263 = vmatprep.subr.mxu0 0.0
    %2264 = vmatpush1.msra.mxu0 %v2259
    %2265 = vmatprep.subr.mxu0 0.0
    %2266 = vmatpush1.msra.mxu0 %v2258
    %2267 = vmatprep.subr.mxu0 0.0
    %2268 = vmatpush1.msra.mxu0 %v2257
    %2269 = vmatprep.subr.mxu0 0.0
    %2270 = vmatpush1.msra.mxu0 %v2256
    %2271 = vmatprep.subr.mxu0 0.0
    %2272 = vmatpush1.msra.mxu0 %v2255
    %2273 = vmatprep.subr.mxu0 0.0
    %2274 = vmatpush1.msra.mxu0 %v2254
    %2275 = vmatprep.subr.mxu0 0.0
    %2276 = vmatpush1.msra.mxu0 %v2253
    %2277 = vmatprep.subr.mxu0 0.0
    %2278 = vmatpush1.msra.mxu0 %v2252
    %2279 = vmatprep.subr.mxu0 0.0
    %2280 = vmatpush1.msra.mxu0 %v2251
    %2281 = vmatprep.subr.mxu0 0.0
    %2282 = vmatpush1.msra.mxu0 %v2250
    %2283 = vmatprep.subr.mxu0 0.0
    %2284 = vmatpush1.msra.mxu0 %v2249
    %2285 = vmatprep.subr.mxu0 0.0
    %2286 = vmatpush1.msra.mxu0 %v2248
    %2287 = vmatprep.subr.mxu0 0.0
    %2288 = vmatpush1.msra.mxu0 %v2247
    %2289 = vmatprep.subr.mxu0 0.0
    %2290 = vmatpush1.msra.mxu0 %v2246
    %2291 = vmatprep.subr.mxu0 0.0
    %2292 = vmatpush1.msra.mxu0 %v2245
    %2293 = vmatprep.subr.mxu0 0.0
    %2294 = vmatpush2.msra.mxu0 0.0
    %2295 = vmatprep.subr.mxu0 0.0
    %2296 = vmatpush2.msra.mxu0 0.0
    %2297 = vmatprep.subr.mxu0 0.0
    %2298 = vmatpush2.msra.mxu0 0.0
    %2299 = vmatprep.subr.mxu0 0.0
    %2300 = vmatpush2.msra.mxu0 0.0
    %2301 = vmatprep.subr.mxu0 0.0
    %2302 = vmatpush2.msra.mxu0 0.0
    %2303 = vmatprep.subr.mxu0 0.0
    %2304 = vmatpush2.msra.mxu0 0.0
    %2305 = vmatprep.subr.mxu0 0.0
    %2306 = vmatpush2.msra.mxu0 0.0
    %2307 = vmatprep.subr.mxu0 0.0
    %2308 = vmatpush2.msra.mxu0 0.0
    %2309 = vmatprep.subr.mxu0 0.0
    %2310 = vmatpush2.msra.mxu0 0.0
    %2311 = vmatprep.subr.mxu0 0.0
    %2312 = vmatpush2.msra.mxu0 0.0
    %2313 = vmatprep.subr.mxu0 0.0
    %2314 = vmatpush2.msra.mxu0 0.0
    %2315 = vmatprep.subr.mxu0 0.0
    %2316 = vmatpush2.msra.mxu0 0.0
    %2317 = vmatprep.subr.mxu0 0.0
    %2318 = vmatpush2.msra.mxu0 0.0
    %2319 = vmatprep.subr.mxu0 0.0
    %2320 = vmatpush2.msra.mxu0 0.0
    %2321 = vmatprep.subr.mxu0 0.0
    %2322 = vmatpush2.msra.mxu0 0.0
    %2323 = vmatprep.subr.mxu0 0.0
    %2324 = vmatpush2.msra.mxu0 0.0
    %2325 = vmatprep.mubr.f32.mxu0 0.0
    %2326 = vmatmul.mubr.f32.gmra.mxu0 %v95
    %v2327 = vpop.f32.mrf.mxu0
    %v2328 = vadd.f32 0.0, %v2327
    %v2329 = vpop.f32.mrf.mxu0
    %2330 = vmatprep.mubr.f32.mxu0 0.0
    %2331 = vmatmul.mubr.f32.gmra.mxu0 %v96
    %v2332 = vpop.f32.mrf.mxu0
    %v2333 = vadd.f32 0.0, %v2332
    %v2334 = vpop.f32.mrf.mxu0
    %2335 = vdwg.mxu0
    %s2336 = scalar_lea.vmem %s3, 384
    %v2337 = vld [vmem:[%s2336] sm:$0xff]
    %v2338 = vld [vmem:[%s2336 + $0x8] sm:$0xff]
    %v2339 = vld [vmem:[%s2336 + $0x10] sm:$0xff]
    %v2340 = vld [vmem:[%s2336 + $0x18] sm:$0xff]
    %v2341 = vld [vmem:[%s2336 + $0x20] sm:$0xff]
    %v2342 = vld [vmem:[%s2336 + $0x28] sm:$0xff]
    %v2343 = vld [vmem:[%s2336 + $0x30] sm:$0xff]
    %v2344 = vld [vmem:[%s2336 + $0x38] sm:$0xff]
    %v2345 = vld [vmem:[%s2336 + $0x40] sm:$0xff]
    %v2346 = vld [vmem:[%s2336 + $0x48] sm:$0xff]
    %v2347 = vld [vmem:[%s2336 + $0x50] sm:$0xff]
    %v2348 = vld [vmem:[%s2336 + $0x58] sm:$0xff]
    %v2349 = vld [vmem:[%s2336 + $0x60] sm:$0xff]
    %v2350 = vld [vmem:[%s2336 + $0x68] sm:$0xff]
    %v2351 = vld [vmem:[%s2336 + $0x70] sm:$0xff]
    %v2352 = vld [vmem:[%s2336 + $0x78] sm:$0xff]
    %2353 = vmatprep.subr.mxu0 0.0
    %2354 = vmatpush1.msra.mxu0 %v2352
    %2355 = vmatprep.subr.mxu0 0.0
    %2356 = vmatpush1.msra.mxu0 %v2351
    %2357 = vmatprep.subr.mxu0 0.0
    %2358 = vmatpush1.msra.mxu0 %v2350
    %2359 = vmatprep.subr.mxu0 0.0
    %2360 = vmatpush1.msra.mxu0 %v2349
    %2361 = vmatprep.subr.mxu0 0.0
    %2362 = vmatpush1.msra.mxu0 %v2348
    %2363 = vmatprep.subr.mxu0 0.0
    %2364 = vmatpush1.msra.mxu0 %v2347
    %2365 = vmatprep.subr.mxu0 0.0
    %2366 = vmatpush1.msra.mxu0 %v2346
    %2367 = vmatprep.subr.mxu0 0.0
    %2368 = vmatpush1.msra.mxu0 %v2345
    %2369 = vmatprep.subr.mxu0 0.0
    %2370 = vmatpush1.msra.mxu0 %v2344
    %2371 = vmatprep.subr.mxu0 0.0
    %2372 = vmatpush1.msra.mxu0 %v2343
    %2373 = vmatprep.subr.mxu0 0.0
    %2374 = vmatpush1.msra.mxu0 %v2342
    %2375 = vmatprep.subr.mxu0 0.0
    %2376 = vmatpush1.msra.mxu0 %v2341
    %2377 = vmatprep.subr.mxu0 0.0
    %2378 = vmatpush1.msra.mxu0 %v2340
    %2379 = vmatprep.subr.mxu0 0.0
    %2380 = vmatpush1.msra.mxu0 %v2339
    %2381 = vmatprep.subr.mxu0 0.0
    %2382 = vmatpush1.msra.mxu0 %v2338
    %2383 = vmatprep.subr.mxu0 0.0
    %2384 = vmatpush1.msra.mxu0 %v2337
    %2385 = vmatprep.subr.mxu0 0.0
    %2386 = vmatpush2.msra.mxu0 0.0
    %2387 = vmatprep.subr.mxu0 0.0
    %2388 = vmatpush2.msra.mxu0 0.0
    %2389 = vmatprep.subr.mxu0 0.0
    %2390 = vmatpush2.msra.mxu0 0.0
    %2391 = vmatprep.subr.mxu0 0.0
    %2392 = vmatpush2.msra.mxu0 0.0
    %2393 = vmatprep.subr.mxu0 0.0
    %2394 = vmatpush2.msra.mxu0 0.0
    %2395 = vmatprep.subr.mxu0 0.0
    %2396 = vmatpush2.msra.mxu0 0.0
    %2397 = vmatprep.subr.mxu0 0.0
    %2398 = vmatpush2.msra.mxu0 0.0
    %2399 = vmatprep.subr.mxu0 0.0
    %2400 = vmatpush2.msra.mxu0 0.0
    %2401 = vmatprep.subr.mxu0 0.0
    %2402 = vmatpush2.msra.mxu0 0.0
    %2403 = vmatprep.subr.mxu0 0.0
    %2404 = vmatpush2.msra.mxu0 0.0
    %2405 = vmatprep.subr.mxu0 0.0
    %2406 = vmatpush2.msra.mxu0 0.0
    %2407 = vmatprep.subr.mxu0 0.0
    %2408 = vmatpush2.msra.mxu0 0.0
    %2409 = vmatprep.subr.mxu0 0.0
    %2410 = vmatpush2.msra.mxu0 0.0
    %2411 = vmatprep.subr.mxu0 0.0
    %2412 = vmatpush2.msra.mxu0 0.0
    %2413 = vmatprep.subr.mxu0 0.0
    %2414 = vmatpush2.msra.mxu0 0.0
    %2415 = vmatprep.subr.mxu0 0.0
    %2416 = vmatpush2.msra.mxu0 0.0
    %2417 = vmatprep.mubr.f32.mxu0 0.0
    %2418 = vmatmul.mubr.f32.gmra.mxu0 %v95
    %v2419 = vpop.f32.mrf.mxu0
    %v2420 = vadd.f32 0.0, %v2419
    %v2421 = vpop.f32.mrf.mxu0
    %2422 = vmatprep.mubr.f32.mxu0 0.0
    %2423 = vmatmul.mubr.f32.gmra.mxu0 %v96
    %v2424 = vpop.f32.mrf.mxu0
    %v2425 = vadd.f32 0.0, %v2424
    %v2426 = vpop.f32.mrf.mxu0
    %2427 = vdwg.mxu0
    %v2429 = vsel %vm375, %v2242, 0
    %v2432 = vsel %vm375, %v2328, 0
    %2434 = vmatprep.subr.mxu0 0.0
    %2435 = vmatpush1.xpose.msra.mxu0 0.0
    %2436 = vmatprep.subr.mxu0 0.0
    %2437 = vmatpush1.xpose.msra.mxu0 0.0
    %2438 = vmatprep.subr.mxu0 0.0
    %2439 = vmatpush1.xpose.msra.mxu0 0.0
    %2440 = vmatprep.subr.mxu0 0.0
    %2441 = vmatpush1.xpose.msra.mxu0 0.0
    %2442 = vmatprep.subr.mxu0 0.0
    %2443 = vmatpush1.xpose.msra.mxu0 0.0
    %2444 = vmatprep.subr.mxu0 0.0
    %2445 = vmatpush1.xpose.msra.mxu0 0.0
    %2446 = vmatprep.subr.mxu0 0.0
    %2447 = vmatpush1.xpose.msra.mxu0 0.0
    %2448 = vmatprep.subr.mxu0 0.0
    %2449 = vmatpush1.xpose.msra.mxu0 0.0
    %2450 = vmatprep.subr.mxu0 0.0
    %2451 = vmatpush1.xpose.msra.mxu0 0.0
    %2452 = vmatprep.subr.mxu0 0.0
    %2453 = vmatpush1.xpose.msra.mxu0 0.0
    %2454 = vmatprep.subr.mxu0 0.0
    %2455 = vmatpush1.xpose.msra.mxu0 0.0
    %2456 = vmatprep.subr.mxu0 0.0
    %2457 = vmatpush1.xpose.msra.mxu0 0.0
    %2458 = vmatprep.subr.mxu0 0.0
    %2459 = vmatpush1.xpose.msra.mxu0 0.0
    %2460 = vmatprep.subr.mxu0 0.0
    %2461 = vmatpush1.xpose.msra.mxu0 0.0
    %2462 = vmatprep.subr.mxu0 0.0
    %2463 = vmatpush1.xpose.msra.mxu0 0.0
    %2464 = vmatprep.subr.mxu0 0.0
    %2465 = vmatpush1.xpose.msra.mxu0 %v2432
    %2466 = vmatprep.subr.mxu0 0.0
    %2467 = vmatpush2.xpose.msra.mxu0 0.0
    %2468 = vmatprep.subr.mxu0 0.0
    %2469 = vmatpush2.xpose.msra.mxu0 0.0
    %2470 = vmatprep.subr.mxu0 0.0
    %2471 = vmatpush2.xpose.msra.mxu0 0.0
    %2472 = vmatprep.subr.mxu0 0.0
    %2473 = vmatpush2.xpose.msra.mxu0 0.0
    %2474 = vmatprep.subr.mxu0 0.0
    %2475 = vmatpush2.xpose.msra.mxu0 0.0
    %2476 = vmatprep.subr.mxu0 0.0
    %2477 = vmatpush2.xpose.msra.mxu0 0.0
    %2478 = vmatprep.subr.mxu0 0.0
    %2479 = vmatpush2.xpose.msra.mxu0 0.0
    %2480 = vmatprep.subr.mxu0 0.0
    %2481 = vmatpush2.xpose.msra.mxu0 0.0
    %2482 = vmatprep.subr.mxu0 0.0
    %2483 = vmatpush2.xpose.msra.mxu0 0.0
    %2484 = vmatprep.subr.mxu0 0.0
    %2485 = vmatpush2.xpose.msra.mxu0 0.0
    %2486 = vmatprep.subr.mxu0 0.0
    %2487 = vmatpush2.xpose.msra.mxu0 0.0
    %2488 = vmatprep.subr.mxu0 0.0
    %2489 = vmatpush2.xpose.msra.mxu0 0.0
    %2490 = vmatprep.subr.mxu0 0.0
    %2491 = vmatpush2.xpose.msra.mxu0 0.0
    %2492 = vmatprep.subr.mxu0 0.0
    %2493 = vmatpush2.xpose.msra.mxu0 0.0
    %2494 = vmatprep.subr.mxu0 0.0
    %2495 = vmatpush2.xpose.msra.mxu0 0.0
    %2496 = vmatprep.subr.mxu0 0.0
    %2497 = vmatpush2.xpose.msra.mxu0 0.0
    %2498 = vmatprep.mubr.f32.mxu0 0.0
    %2499 = vmatmul.mubr.f32.gmra.mxu0 %v2429
    %v2500 = vpop.f32.mrf.mxu0
    %v2501 = vadd.f32 0.0, %v2500
    %v2502 = vpop.f32.mrf.mxu0
    %2503 = vdwg.mxu0
    %v2505 = vsel %vm375, %v2243, 0
    %v2508 = vsel %vm375, %v2333, 0
    %2510 = vmatprep.subr.mxu0 0.0
    %2511 = vmatpush1.xpose.msra.mxu0 0.0
    %2512 = vmatprep.subr.mxu0 0.0
    %2513 = vmatpush1.xpose.msra.mxu0 0.0
    %2514 = vmatprep.subr.mxu0 0.0
    %2515 = vmatpush1.xpose.msra.mxu0 0.0
    %2516 = vmatprep.subr.mxu0 0.0
    %2517 = vmatpush1.xpose.msra.mxu0 0.0
    %2518 = vmatprep.subr.mxu0 0.0
    %2519 = vmatpush1.xpose.msra.mxu0 0.0
    %2520 = vmatprep.subr.mxu0 0.0
    %2521 = vmatpush1.xpose.msra.mxu0 0.0
    %2522 = vmatprep.subr.mxu0 0.0
    %2523 = vmatpush1.xpose.msra.mxu0 0.0
    %2524 = vmatprep.subr.mxu0 0.0
    %2525 = vmatpush1.xpose.msra.mxu0 0.0
    %2526 = vmatprep.subr.mxu0 0.0
    %2527 = vmatpush1.xpose.msra.mxu0 0.0
    %2528 = vmatprep.subr.mxu0 0.0
    %2529 = vmatpush1.xpose.msra.mxu0 0.0
    %2530 = vmatprep.subr.mxu0 0.0
    %2531 = vmatpush1.xpose.msra.mxu0 0.0
    %2532 = vmatprep.subr.mxu0 0.0
    %2533 = vmatpush1.xpose.msra.mxu0 0.0
    %2534 = vmatprep.subr.mxu0 0.0
    %2535 = vmatpush1.xpose.msra.mxu0 0.0
    %2536 = vmatprep.subr.mxu0 0.0
    %2537 = vmatpush1.xpose.msra.mxu0 0.0
    %2538 = vmatprep.subr.mxu0 0.0
    %2539 = vmatpush1.xpose.msra.mxu0 0.0
    %2540 = vmatprep.subr.mxu0 0.0
    %2541 = vmatpush1.xpose.msra.mxu0 %v2508
    %2542 = vmatprep.subr.mxu0 0.0
    %2543 = vmatpush2.xpose.msra.mxu0 0.0
    %2544 = vmatprep.subr.mxu0 0.0
    %2545 = vmatpush2.xpose.msra.mxu0 0.0
    %2546 = vmatprep.subr.mxu0 0.0
    %2547 = vmatpush2.xpose.msra.mxu0 0.0
    %2548 = vmatprep.subr.mxu0 0.0
    %2549 = vmatpush2.xpose.msra.mxu0 0.0
    %2550 = vmatprep.subr.mxu0 0.0
    %2551 = vmatpush2.xpose.msra.mxu0 0.0
    %2552 = vmatprep.subr.mxu0 0.0
    %2553 = vmatpush2.xpose.msra.mxu0 0.0
    %2554 = vmatprep.subr.mxu0 0.0
    %2555 = vmatpush2.xpose.msra.mxu0 0.0
    %2556 = vmatprep.subr.mxu0 0.0
    %2557 = vmatpush2.xpose.msra.mxu0 0.0
    %2558 = vmatprep.subr.mxu0 0.0
    %2559 = vmatpush2.xpose.msra.mxu0 0.0
    %2560 = vmatprep.subr.mxu0 0.0
    %2561 = vmatpush2.xpose.msra.mxu0 0.0
    %2562 = vmatprep.subr.mxu0 0.0
    %2563 = vmatpush2.xpose.msra.mxu0 0.0
    %2564 = vmatprep.subr.mxu0 0.0
    %2565 = vmatpush2.xpose.msra.mxu0 0.0
    %2566 = vmatprep.subr.mxu0 0.0
    %2567 = vmatpush2.xpose.msra.mxu0 0.0
    %2568 = vmatprep.subr.mxu0 0.0
    %2569 = vmatpush2.xpose.msra.mxu0 0.0
    %2570 = vmatprep.subr.mxu0 0.0
    %2571 = vmatpush2.xpose.msra.mxu0 0.0
    %2572 = vmatprep.subr.mxu0 0.0
    %2573 = vmatpush2.xpose.msra.mxu0 0.0
    %2574 = vmatprep.mubr.f32.mxu0 0.0
    %2575 = vmatmul.mubr.f32.gmra.mxu0 %v2505
    %v2576 = vpop.f32.mrf.mxu0
    %v2577 = vadd.f32 0.0, %v2576
    %v2578 = vpop.f32.mrf.mxu0
    %2579 = vdwg.mxu0
    %v2580 = vsel %vm529, %v2501, -inf
    %v2581 = vsel %vm529, %v2577, -inf
    %v2582 = vsel %vm375, %v2580, -inf
    %2583 = vmax.xlane.f32.xlu0 %v2582
    %v2584 = vpop.xlane.xlu0 %2583
    %v2585 = vsel %vm375, %v2581, -inf
    %2586 = vmax.xlane.f32.xlu0 %v2585
    %v2587 = vpop.xlane.xlu0 %2586
    %v2588 = vsub.f32 %v2580, %v2584
    %v2589 = vsub.f32 %v2581, %v2587
    %v2590 = vmul.f32 %v2588, 1.442695
    %v2591 = vpow.pop %v2590
    %v2592 = vmul.f32 %v2589, 1.442695
    %v2593 = vpow.pop %v2592
    %v2594 = vsel %vm375, %v2591, 0.0
    %2595 = vadd.xlane.f32.xlu0 %v2594
    %v2596 = vpop.xlane.xlu0 %2595
    %v2597 = vsel %vm375, %v2593, 0.0
    %2598 = vadd.xlane.f32.xlu0 %v2597
    %v2599 = vpop.xlane.xlu0 %2598
    %v2600 = vrcp.pop %v2596
    %v2601 = vmul.f32 %v2591, %v2600
    %v2602 = vrcp.pop %v2599
    %v2603 = vmul.f32 %v2593, %v2602
    %v2605 = vsel %vm375, %v2601, 0
    %2607 = vmatprep.subr.mxu0 0.0
    %2608 = vmatpush1.msra.mxu0 0.0
    %2609 = vmatprep.subr.mxu0 0.0
    %2610 = vmatpush1.msra.mxu0 0.0
    %2611 = vmatprep.subr.mxu0 0.0
    %2612 = vmatpush1.msra.mxu0 0.0
    %2613 = vmatprep.subr.mxu0 0.0
    %2614 = vmatpush1.msra.mxu0 0.0
    %2615 = vmatprep.subr.mxu0 0.0
    %2616 = vmatpush1.msra.mxu0 0.0
    %2617 = vmatprep.subr.mxu0 0.0
    %2618 = vmatpush1.msra.mxu0 0.0
    %2619 = vmatprep.subr.mxu0 0.0
    %2620 = vmatpush1.msra.mxu0 0.0
    %2621 = vmatprep.subr.mxu0 0.0
    %2622 = vmatpush1.msra.mxu0 0.0
    %2623 = vmatprep.subr.mxu0 0.0
    %2624 = vmatpush1.msra.mxu0 0.0
    %2625 = vmatprep.subr.mxu0 0.0
    %2626 = vmatpush1.msra.mxu0 0.0
    %2627 = vmatprep.subr.mxu0 0.0
    %2628 = vmatpush1.msra.mxu0 0.0
    %2629 = vmatprep.subr.mxu0 0.0
    %2630 = vmatpush1.msra.mxu0 0.0
    %2631 = vmatprep.subr.mxu0 0.0
    %2632 = vmatpush1.msra.mxu0 0.0
    %2633 = vmatprep.subr.mxu0 0.0
    %2634 = vmatpush1.msra.mxu0 0.0
    %2635 = vmatprep.subr.mxu0 0.0
    %2636 = vmatpush1.msra.mxu0 0.0
    %2637 = vmatprep.subr.mxu0 0.0
    %2638 = vmatpush1.msra.mxu0 %v2420
    %2639 = vmatprep.subr.mxu0 0.0
    %2640 = vmatpush2.msra.mxu0 0.0
    %2641 = vmatprep.subr.mxu0 0.0
    %2642 = vmatpush2.msra.mxu0 0.0
    %2643 = vmatprep.subr.mxu0 0.0
    %2644 = vmatpush2.msra.mxu0 0.0
    %2645 = vmatprep.subr.mxu0 0.0
    %2646 = vmatpush2.msra.mxu0 0.0
    %2647 = vmatprep.subr.mxu0 0.0
    %2648 = vmatpush2.msra.mxu0 0.0
    %2649 = vmatprep.subr.mxu0 0.0
    %2650 = vmatpush2.msra.mxu0 0.0
    %2651 = vmatprep.subr.mxu0 0.0
    %2652 = vmatpush2.msra.mxu0 0.0
    %2653 = vmatprep.subr.mxu0 0.0
    %2654 = vmatpush2.msra.mxu0 0.0
    %2655 = vmatprep.subr.mxu0 0.0
    %2656 = vmatpush2.msra.mxu0 0.0
    %2657 = vmatprep.subr.mxu0 0.0
    %2658 = vmatpush2.msra.mxu0 0.0
    %2659 = vmatprep.subr.mxu0 0.0
    %2660 = vmatpush2.msra.mxu0 0.0
    %2661 = vmatprep.subr.mxu0 0.0
    %2662 = vmatpush2.msra.mxu0 0.0
    %2663 = vmatprep.subr.mxu0 0.0
    %2664 = vmatpush2.msra.mxu0 0.0
    %2665 = vmatprep.subr.mxu0 0.0
    %2666 = vmatpush2.msra.mxu0 0.0
    %2667 = vmatprep.subr.mxu0 0.0
    %2668 = vmatpush2.msra.mxu0 0.0
    %2669 = vmatprep.subr.mxu0 0.0
    %2670 = vmatpush2.msra.mxu0 0.0
    %2671 = vmatprep.mubr.f32.mxu0 0.0
    %2672 = vmatmul.mubr.f32.gmra.mxu0 %v2605
    %v2673 = vpop.f32.mrf.mxu0
    %v2674 = vadd.f32 0.0, %v2673
    %v2675 = vpop.f32.mrf.mxu0
    %2676 = vdwg.mxu0
    %v2678 = vsel %vm375, %v2603, 0
    %2680 = vmatprep.subr.mxu0 0.0
    %2681 = vmatpush1.msra.mxu0 0.0
    %2682 = vmatprep.subr.mxu0 0.0
    %2683 = vmatpush1.msra.mxu0 0.0
    %2684 = vmatprep.subr.mxu0 0.0
    %2685 = vmatpush1.msra.mxu0 0.0
    %2686 = vmatprep.subr.mxu0 0.0
    %2687 = vmatpush1.msra.mxu0 0.0
    %2688 = vmatprep.subr.mxu0 0.0
    %2689 = vmatpush1.msra.mxu0 0.0
    %2690 = vmatprep.subr.mxu0 0.0
    %2691 = vmatpush1.msra.mxu0 0.0
    %2692 = vmatprep.subr.mxu0 0.0
    %2693 = vmatpush1.msra.mxu0 0.0
    %2694 = vmatprep.subr.mxu0 0.0
    %2695 = vmatpush1.msra.mxu0 0.0
    %2696 = vmatprep.subr.mxu0 0.0
    %2697 = vmatpush1.msra.mxu0 0.0
    %2698 = vmatprep.subr.mxu0 0.0
    %2699 = vmatpush1.msra.mxu0 0.0
    %2700 = vmatprep.subr.mxu0 0.0
    %2701 = vmatpush1.msra.mxu0 0.0
    %2702 = vmatprep.subr.mxu0 0.0
    %2703 = vmatpush1.msra.mxu0 0.0
    %2704 = vmatprep.subr.mxu0 0.0
    %2705 = vmatpush1.msra.mxu0 0.0
    %2706 = vmatprep.subr.mxu0 0.0
    %2707 = vmatpush1.msra.mxu0 0.0
    %2708 = vmatprep.subr.mxu0 0.0
    %2709 = vmatpush1.msra.mxu0 0.0
    %2710 = vmatprep.subr.mxu0 0.0
    %2711 = vmatpush1.msra.mxu0 %v2425
    %2712 = vmatprep.subr.mxu0 0.0
    %2713 = vmatpush2.msra.mxu0 0.0
    %2714 = vmatprep.subr.mxu0 0.0
    %2715 = vmatpush2.msra.mxu0 0.0
    %2716 = vmatprep.subr.mxu0 0.0
    %2717 = vmatpush2.msra.mxu0 0.0
    %2718 = vmatprep.subr.mxu0 0.0
    %2719 = vmatpush2.msra.mxu0 0.0
    %2720 = vmatprep.subr.mxu0 0.0
    %2721 = vmatpush2.msra.mxu0 0.0
    %2722 = vmatprep.subr.mxu0 0.0
    %2723 = vmatpush2.msra.mxu0 0.0
    %2724 = vmatprep.subr.mxu0 0.0
    %2725 = vmatpush2.msra.mxu0 0.0
    %2726 = vmatprep.subr.mxu0 0.0
    %2727 = vmatpush2.msra.mxu0 0.0
    %2728 = vmatprep.subr.mxu0 0.0
    %2729 = vmatpush2.msra.mxu0 0.0
    %2730 = vmatprep.subr.mxu0 0.0
    %2731 = vmatpush2.msra.mxu0 0.0
    %2732 = vmatprep.subr.mxu0 0.0
    %2733 = vmatpush2.msra.mxu0 0.0
    %2734 = vmatprep.subr.mxu0 0.0
    %2735 = vmatpush2.msra.mxu0 0.0
    %2736 = vmatprep.subr.mxu0 0.0
    %2737 = vmatpush2.msra.mxu0 0.0
    %2738 = vmatprep.subr.mxu0 0.0
    %2739 = vmatpush2.msra.mxu0 0.0
    %2740 = vmatprep.subr.mxu0 0.0
    %2741 = vmatpush2.msra.mxu0 0.0
    %2742 = vmatprep.subr.mxu0 0.0
    %2743 = vmatpush2.msra.mxu0 0.0
    %2744 = vmatprep.mubr.f32.mxu0 0.0
    %2745 = vmatmul.mubr.f32.gmra.mxu0 %v2678
    %v2746 = vpop.f32.mrf.mxu0
    %v2747 = vadd.f32 0.0, %v2746
    %v2748 = vpop.f32.mrf.mxu0
    %2749 = vdwg.mxu0
    %s2750 = scalar_lea.vmem %s4, 24
    %v2751 = vld [vmem:[%s2750] sm:$0xff]
    %v2753 = vsel %vm375, %v2674, 0
    %v2756 = vsel %vm375, %v2747, 0
    %2758 = vmatprep.subr.mxu0 0.0
    %2759 = vmatpush1.msra.mxu0 0.0
    %2760 = vmatprep.subr.mxu0 0.0
    %2761 = vmatpush1.msra.mxu0 0.0
    %2762 = vmatprep.subr.mxu0 0.0
    %2763 = vmatpush1.msra.mxu0 0.0
    %2764 = vmatprep.subr.mxu0 0.0
    %2765 = vmatpush1.msra.mxu0 0.0
    %2766 = vmatprep.subr.mxu0 0.0
    %2767 = vmatpush1.msra.mxu0 0.0
    %2768 = vmatprep.subr.mxu0 0.0
    %2769 = vmatpush1.msra.mxu0 0.0
    %2770 = vmatprep.subr.mxu0 0.0
    %2771 = vmatpush1.msra.mxu0 0.0
    %2772 = vmatprep.subr.mxu0 0.0
    %2773 = vmatpush1.msra.mxu0 0.0
    %2774 = vmatprep.subr.mxu0 0.0
    %2775 = vmatpush1.msra.mxu0 0.0
    %2776 = vmatprep.subr.mxu0 0.0
    %2777 = vmatpush1.msra.mxu0 0.0
    %2778 = vmatprep.subr.mxu0 0.0
    %2779 = vmatpush1.msra.mxu0 0.0
    %2780 = vmatprep.subr.mxu0 0.0
    %2781 = vmatpush1.msra.mxu0 0.0
    %2782 = vmatprep.subr.mxu0 0.0
    %2783 = vmatpush1.msra.mxu0 0.0
    %2784 = vmatprep.subr.mxu0 0.0
    %2785 = vmatpush1.msra.mxu0 0.0
    %2786 = vmatprep.subr.mxu0 0.0
    %2787 = vmatpush1.msra.mxu0 0.0
    %2788 = vmatprep.subr.mxu0 0.0
    %2789 = vmatpush1.msra.mxu0 %v2751
    %2790 = vmatprep.subr.mxu0 0.0
    %2791 = vmatpush2.msra.mxu0 0.0
    %2792 = vmatprep.subr.mxu0 0.0
    %2793 = vmatpush2.msra.mxu0 0.0
    %2794 = vmatprep.subr.mxu0 0.0
    %2795 = vmatpush2.msra.mxu0 0.0
    %2796 = vmatprep.subr.mxu0 0.0
    %2797 = vmatpush2.msra.mxu0 0.0
    %2798 = vmatprep.subr.mxu0 0.0
    %2799 = vmatpush2.msra.mxu0 0.0
    %2800 = vmatprep.subr.mxu0 0.0
    %2801 = vmatpush2.msra.mxu0 0.0
    %2802 = vmatprep.subr.mxu0 0.0
    %2803 = vmatpush2.msra.mxu0 0.0
    %2804 = vmatprep.subr.mxu0 0.0
    %2805 = vmatpush2.msra.mxu0 0.0
    %2806 = vmatprep.subr.mxu0 0.0
    %2807 = vmatpush2.msra.mxu0 0.0
    %2808 = vmatprep.subr.mxu0 0.0
    %2809 = vmatpush2.msra.mxu0 0.0
    %2810 = vmatprep.subr.mxu0 0.0
    %2811 = vmatpush2.msra.mxu0 0.0
    %2812 = vmatprep.subr.mxu0 0.0
    %2813 = vmatpush2.msra.mxu0 0.0
    %2814 = vmatprep.subr.mxu0 0.0
    %2815 = vmatpush2.msra.mxu0 0.0
    %2816 = vmatprep.subr.mxu0 0.0
    %2817 = vmatpush2.msra.mxu0 0.0
    %2818 = vmatprep.subr.mxu0 0.0
    %2819 = vmatpush2.msra.mxu0 0.0
    %2820 = vmatprep.subr.mxu0 0.0
    %2821 = vmatpush2.msra.mxu0 0.0
    %2822 = vmatprep.mubr.f32.mxu0 0.0
    %2823 = vmatmul.mubr.f32.gmra.mxu0 %v2753
    %v2824 = vpop.f32.mrf.mxu0
    %v2825 = vadd.f32 0.0, %v2824
    %v2826 = vpop.f32.mrf.mxu0
    %2827 = vmatprep.mubr.f32.mxu0 0.0
    %2828 = vmatmul.mubr.f32.gmra.mxu0 %v2756
    %v2829 = vpop.f32.mrf.mxu0
    %v2830 = vadd.f32 0.0, %v2829
    %v2831 = vpop.f32.mrf.mxu0
    %2832 = vdwg.mxu0
    %v2833 = vadd.f32 %v2148, %v2825
    %v2834 = vadd.f32 %v2149, %v2830
    %v2835 = vadd.f32 %v48, %v2833
    %v2836 = vadd.f32 %v49, %v2834
    %v2837 = vld [vmem:[%s5] sm:$0x1]
    %v2839 = vlaneseq
    %v2840 = vshrl.u32 %v2839, 7
    %v2841 = vsub.s32 0, %v2840
    %v2842 = vrot.slane %v2837, %v2841
    %v2844 = vadd.f32 %v2835, %v2842
    %v2845 = vadd.f32 %v2836, %v2842
    %v2846 = vld [vmem:[%s8] sm:$0x1]
    %v2847 = vld [vmem:[%s9] sm:$0x1]
    %2848 = vadd.xlane.f32.xlu0 %v2844
    %v2849 = vpop.xlane.xlu0 %2848
    %2850 = vadd.xlane.f32.xlu0 %v2845
    %v2851 = vpop.xlane.xlu0 %2850
    %v2852 = vmul.f32 %v2849, 0.03125
    %v2853 = vmul.f32 %v2851, 0.03125
    %v2854 = vsub.f32 %v2844, %v2852
    %v2855 = vsub.f32 %v2845, %v2853
    %v2856 = vsel %vm64, %v2854, 0.0
    %v2857 = vsel %vm64, %v2855, 0.0
    %v2858 = vmul.f32 %v2856, %v2856
    %v2859 = vmul.f32 %v2857, %v2857
    %2860 = vadd.xlane.f32.xlu0 %v2858
    %v2861 = vpop.xlane.xlu0 %2860
    %2862 = vadd.xlane.f32.xlu0 %v2859
    %v2863 = vpop.xlane.xlu0 %2862
    %v2864 = vmul.f32 %v2861, 0.03125
    %v2865 = vmul.f32 %v2863, 0.03125
    %v2866 = vadd.f32 %v2864, 1e-05
    %v2867 = vadd.f32 %v2865, 1e-05
    %v2868 = vrsqrt.pop %v2866
    %v2869 = vrsqrt.pop %v2867
    %v2870 = vmul.f32 %v2856, %v2868
    %v2871 = vmul.f32 %v2857, %v2869
    %v2873 = vlaneseq
    %v2874 = vshrl.u32 %v2873, 7
    %v2875 = vsub.s32 0, %v2874
    %v2876 = vrot.slane %v2846, %v2875
    %v2878 = vmul.f32 %v2870, %v2876
    %v2879 = vmul.f32 %v2871, %v2876
    %v2881 = vlaneseq
    %v2882 = vshrl.u32 %v2881, 7
    %v2883 = vsub.s32 0, %v2882
    %v2884 = vrot.slane %v2847, %v2883
    %v2886 = vadd.f32 %v2878, %v2884
    %v2887 = vadd.f32 %v2879, %v2884
    %v2888 = vld [vmem:[%s10] sm:$0xff]
    %v2889 = vld [vmem:[%s10 + $0x8] sm:$0xff]
    %v2890 = vld [vmem:[%s10 + $0x10] sm:$0xff]
    %v2891 = vld [vmem:[%s10 + $0x18] sm:$0xff]
    %v2892 = vld [vmem:[%s10 + $0x20] sm:$0xff]
    %v2893 = vld [vmem:[%s10 + $0x28] sm:$0xff]
    %v2894 = vld [vmem:[%s10 + $0x30] sm:$0xff]
    %v2895 = vld [vmem:[%s10 + $0x38] sm:$0xff]
    %v2896 = vld [vmem:[%s10 + $0x40] sm:$0xff]
    %v2897 = vld [vmem:[%s10 + $0x48] sm:$0xff]
    %v2898 = vld [vmem:[%s10 + $0x50] sm:$0xff]
    %v2899 = vld [vmem:[%s10 + $0x58] sm:$0xff]
    %v2900 = vld [vmem:[%s10 + $0x60] sm:$0xff]
    %v2901 = vld [vmem:[%s10 + $0x68] sm:$0xff]
    %v2902 = vld [vmem:[%s10 + $0x70] sm:$0xff]
    %v2903 = vld [vmem:[%s10 + $0x78] sm:$0xff]
    %v2904 = vld [vmem:[%s11] sm:$0x1]
    %v2906 = vlaneseq
    %v2907 = vshrl.u32 %v2906, 7
    %v2908 = vsub.s32 0, %v2907
    %v2909 = vrot.slane %v2904, %v2908
    %2911 = vmatprep.subr.mxu0 0.0
    %2912 = vmatpush1.msra.mxu0 %v2903
    %2913 = vmatprep.subr.mxu0 0.0
    %2914 = vmatpush1.msra.mxu0 %v2902
    %2915 = vmatprep.subr.mxu0 0.0
    %2916 = vmatpush1.msra.mxu0 %v2901
    %2917 = vmatprep.subr.mxu0 0.0
    %2918 = vmatpush1.msra.mxu0 %v2900
    %2919 = vmatprep.subr.mxu0 0.0
    %2920 = vmatpush1.msra.mxu0 %v2899
    %2921 = vmatprep.subr.mxu0 0.0
    %2922 = vmatpush1.msra.mxu0 %v2898
    %2923 = vmatprep.subr.mxu0 0.0
    %2924 = vmatpush1.msra.mxu0 %v2897
    %2925 = vmatprep.subr.mxu0 0.0
    %2926 = vmatpush1.msra.mxu0 %v2896
    %2927 = vmatprep.subr.mxu0 0.0
    %2928 = vmatpush1.msra.mxu0 %v2895
    %2929 = vmatprep.subr.mxu0 0.0
    %2930 = vmatpush1.msra.mxu0 %v2894
    %2931 = vmatprep.subr.mxu0 0.0
    %2932 = vmatpush1.msra.mxu0 %v2893
    %2933 = vmatprep.subr.mxu0 0.0
    %2934 = vmatpush1.msra.mxu0 %v2892
    %2935 = vmatprep.subr.mxu0 0.0
    %2936 = vmatpush1.msra.mxu0 %v2891
    %2937 = vmatprep.subr.mxu0 0.0
    %2938 = vmatpush1.msra.mxu0 %v2890
    %2939 = vmatprep.subr.mxu0 0.0
    %2940 = vmatpush1.msra.mxu0 %v2889
    %2941 = vmatprep.subr.mxu0 0.0
    %2942 = vmatpush1.msra.mxu0 %v2888
    %2943 = vmatprep.subr.mxu0 0.0
    %2944 = vmatpush2.msra.mxu0 0.0
    %2945 = vmatprep.subr.mxu0 0.0
    %2946 = vmatpush2.msra.mxu0 0.0
    %2947 = vmatprep.subr.mxu0 0.0
    %2948 = vmatpush2.msra.mxu0 0.0
    %2949 = vmatprep.subr.mxu0 0.0
    %2950 = vmatpush2.msra.mxu0 0.0
    %2951 = vmatprep.subr.mxu0 0.0
    %2952 = vmatpush2.msra.mxu0 0.0
    %2953 = vmatprep.subr.mxu0 0.0
    %2954 = vmatpush2.msra.mxu0 0.0
    %2955 = vmatprep.subr.mxu0 0.0
    %2956 = vmatpush2.msra.mxu0 0.0
    %2957 = vmatprep.subr.mxu0 0.0
    %2958 = vmatpush2.msra.mxu0 0.0
    %2959 = vmatprep.subr.mxu0 0.0
    %2960 = vmatpush2.msra.mxu0 0.0
    %2961 = vmatprep.subr.mxu0 0.0
    %2962 = vmatpush2.msra.mxu0 0.0
    %2963 = vmatprep.subr.mxu0 0.0
    %2964 = vmatpush2.msra.mxu0 0.0
    %2965 = vmatprep.subr.mxu0 0.0
    %2966 = vmatpush2.msra.mxu0 0.0
    %2967 = vmatprep.subr.mxu0 0.0
    %2968 = vmatpush2.msra.mxu0 0.0
    %2969 = vmatprep.subr.mxu0 0.0
    %2970 = vmatpush2.msra.mxu0 0.0
    %2971 = vmatprep.subr.mxu0 0.0
    %2972 = vmatpush2.msra.mxu0 0.0
    %2973 = vmatprep.subr.mxu0 0.0
    %2974 = vmatpush2.msra.mxu0 0.0
    %2975 = vmatprep.mubr.f32.mxu0 0.0
    %2976 = vmatmul.mubr.f32.gmra.mxu0 %v2886
    %v2977 = vpop.f32.mrf.mxu0
    %v2978 = vadd.f32 %v2909, %v2977
    %v2979 = vpop.f32.mrf.mxu0
    %2980 = vmatprep.mubr.f32.mxu0 0.0
    %2981 = vmatmul.mubr.f32.gmra.mxu0 %v2887
    %v2982 = vpop.f32.mrf.mxu0
    %v2983 = vadd.f32 %v2909, %v2982
    %v2984 = vpop.f32.mrf.mxu0
    %2985 = vdwg.mxu0
    %v2986 = vmax.f32 %v2978, 0.0
    %v2987 = vmax.f32 %v2983, 0.0
    %v2988 = vld [vmem:[%s12] sm:$0xff]
    %v2989 = vld [vmem:[%s12 + $0x8] sm:$0xff]
    %v2990 = vld [vmem:[%s12 + $0x10] sm:$0xff]
    %v2991 = vld [vmem:[%s12 + $0x18] sm:$0xff]
    %v2992 = vld [vmem:[%s12 + $0x20] sm:$0xff]
    %v2993 = vld [vmem:[%s12 + $0x28] sm:$0xff]
    %v2994 = vld [vmem:[%s12 + $0x30] sm:$0xff]
    %v2995 = vld [vmem:[%s12 + $0x38] sm:$0xff]
    %v2996 = vld [vmem:[%s12 + $0x40] sm:$0xff]
    %v2997 = vld [vmem:[%s12 + $0x48] sm:$0xff]
    %v2998 = vld [vmem:[%s12 + $0x50] sm:$0xff]
    %v2999 = vld [vmem:[%s12 + $0x58] sm:$0xff]
    %v3000 = vld [vmem:[%s12 + $0x60] sm:$0xff]
    %v3001 = vld [vmem:[%s12 + $0x68] sm:$0xff]
    %v3002 = vld [vmem:[%s12 + $0x70] sm:$0xff]
    %v3003 = vld [vmem:[%s12 + $0x78] sm:$0xff]
    %v3004 = vld [vmem:[%s13] sm:$0x1]
    %v3006 = vlaneseq
    %v3007 = vshrl.u32 %v3006, 7
    %v3008 = vsub.s32 0, %v3007
    %v3009 = vrot.slane %v3004, %v3008
    %3011 = vmatprep.subr.mxu0 0.0
    %3012 = vmatpush1.msra.mxu0 %v3003
    %3013 = vmatprep.subr.mxu0 0.0
    %3014 = vmatpush1.msra.mxu0 %v3002
    %3015 = vmatprep.subr.mxu0 0.0
    %3016 = vmatpush1.msra.mxu0 %v3001
    %3017 = vmatprep.subr.mxu0 0.0
    %3018 = vmatpush1.msra.mxu0 %v3000
    %3019 = vmatprep.subr.mxu0 0.0
    %3020 = vmatpush1.msra.mxu0 %v2999
    %3021 = vmatprep.subr.mxu0 0.0
    %3022 = vmatpush1.msra.mxu0 %v2998
    %3023 = vmatprep.subr.mxu0 0.0
    %3024 = vmatpush1.msra.mxu0 %v2997
    %3025 = vmatprep.subr.mxu0 0.0
    %3026 = vmatpush1.msra.mxu0 %v2996
    %3027 = vmatprep.subr.mxu0 0.0
    %3028 = vmatpush1.msra.mxu0 %v2995
    %3029 = vmatprep.subr.mxu0 0.0
    %3030 = vmatpush1.msra.mxu0 %v2994
    %3031 = vmatprep.subr.mxu0 0.0
    %3032 = vmatpush1.msra.mxu0 %v2993
    %3033 = vmatprep.subr.mxu0 0.0
    %3034 = vmatpush1.msra.mxu0 %v2992
    %3035 = vmatprep.subr.mxu0 0.0
    %3036 = vmatpush1.msra.mxu0 %v2991
    %3037 = vmatprep.subr.mxu0 0.0
    %3038 = vmatpush1.msra.mxu0 %v2990
    %3039 = vmatprep.subr.mxu0 0.0
    %3040 = vmatpush1.msra.mxu0 %v2989
    %3041 = vmatprep.subr.mxu0 0.0
    %3042 = vmatpush1.msra.mxu0 %v2988
    %3043 = vmatprep.subr.mxu0 0.0
    %3044 = vmatpush2.msra.mxu0 0.0
    %3045 = vmatprep.subr.mxu0 0.0
    %3046 = vmatpush2.msra.mxu0 0.0
    %3047 = vmatprep.subr.mxu0 0.0
    %3048 = vmatpush2.msra.mxu0 0.0
    %3049 = vmatprep.subr.mxu0 0.0
    %3050 = vmatpush2.msra.mxu0 0.0
    %3051 = vmatprep.subr.mxu0 0.0
    %3052 = vmatpush2.msra.mxu0 0.0
    %3053 = vmatprep.subr.mxu0 0.0
    %3054 = vmatpush2.msra.mxu0 0.0
    %3055 = vmatprep.subr.mxu0 0.0
    %3056 = vmatpush2.msra.mxu0 0.0
    %3057 = vmatprep.subr.mxu0 0.0
    %3058 = vmatpush2.msra.mxu0 0.0
    %3059 = vmatprep.subr.mxu0 0.0
    %3060 = vmatpush2.msra.mxu0 0.0
    %3061 = vmatprep.subr.mxu0 0.0
    %3062 = vmatpush2.msra.mxu0 0.0
    %3063 = vmatprep.subr.mxu0 0.0
    %3064 = vmatpush2.msra.mxu0 0.0
    %3065 = vmatprep.subr.mxu0 0.0
    %3066 = vmatpush2.msra.mxu0 0.0
    %3067 = vmatprep.subr.mxu0 0.0
    %3068 = vmatpush2.msra.mxu0 0.0
    %3069 = vmatprep.subr.mxu0 0.0
    %3070 = vmatpush2.msra.mxu0 0.0
    %3071 = vmatprep.subr.mxu0 0.0
    %3072 = vmatpush2.msra.mxu0 0.0
    %3073 = vmatprep.subr.mxu0 0.0
    %3074 = vmatpush2.msra.mxu0 0.0
    %3075 = vmatprep.mubr.f32.mxu0 0.0
    %3076 = vmatmul.mubr.f32.gmra.mxu0 %v2986
    %v3077 = vpop.f32.mrf.mxu0
    %v3078 = vadd.f32 %v3009, %v3077
    %v3079 = vpop.f32.mrf.mxu0
    %3080 = vmatprep.mubr.f32.mxu0 0.0
    %3081 = vmatmul.mubr.f32.gmra.mxu0 %v2987
    %v3082 = vpop.f32.mrf.mxu0
    %v3083 = vadd.f32 %v3009, %v3082
    %v3084 = vpop.f32.mrf.mxu0
    %3085 = vdwg.mxu0
    %v3086 = vadd.f32 %v2844, %v3078
    %v3087 = vadd.f32 %v2845, %v3083
    %3088 = vst [vmem:[#allocation2] sm:$0xff] %v3086
    %3089 = vst [vmem:[#allocation2 + $0x8] sm:$0xff] %v3087
    // Predicated region
    $region58: #{tpu_custom_call.1} parent=1 // pred_check
      _
    $region59: #{tpu_custom_call.1} parent=1 // pred_check_branch
      %3091 = sbr.rel (0) target = $region61
    $region60: #{tpu_custom_call.1} parent=1 // pred_region
      %s3093 = ssub.s32 256, 256
      %3094 = vsyncadd [#allocation3], %s3093
      %s3095 = sshll.u32 [#allocation2], 4
      %s3096 = int_to_ptr.vmem [resolvable:$true] %s3095
      %3101 = dma.vmem_to_hbm [thread:$0]  %s3096, 256, %s14, [#allocation3], 128, 128, 8
    $region61: #{tpu_custom_call.1} parent=1 // pred_fallthru
      _
    // Predicated region
    $region62: #{tpu_custom_call.1} parent=1 // pred_check
      _
    $region63: #{tpu_custom_call.1} parent=1 // pred_check_branch
      %3103 = sbr.rel (0) target = $region65
    $region64: #{tpu_custom_call.1} parent=1 // pred_region
      %3104 = dma.done [#allocation3], 256
    $region65: #{tpu_custom_call.1} parent=1 // pred_fallthru
      _
    %3105 = vsyncpa [#allocation3], 1

</llo_original>
